<compile_context>
chip_gen: v7x
topology: tpu7x:2x2x1
jax: 0.10.0
libtpu: 0.0.40
codegen_flags: <defaults>
</compile_context>

<pallas_src>
import functools

import jax
import jax.numpy as jnp
from jax import lax
from jax.experimental import pallas as pl
from jax.experimental.pallas import tpu as pltpu


# ----------------------------------------------------------------------------
# Fused kernel: one grid step per batch element.
# ----------------------------------------------------------------------------
def _fused_coattention_conv_kernel(ex_ref, q_ref, we_ref, gwa_ref, gwb_ref,
                                   w13a_ref, w13b_ref, b13_ref,
                                   w24_ref, b24_ref,
                                   cw1_ref, cw2_ref, bns_ref, bnb_ref,
                                   colmask_ref,
                                   out1_ref, out2_ref,
                                   pad1_ref, pad2_ref,
                                   *, H, W, C, HID, OFF):
    D = H * W
    HALO = W + 1
    off = OFF
    f32 = jnp.float32
    bf16 = jnp.bfloat16

    ex = ex_ref[0]                      # (C, D) f32  exemplar_flat
    q = q_ref[0]                        # (C, D) f32  query_flat
    ex_bf = ex.astype(bf16)
    q_bf = q.astype(bf16)

    # ---- co-attention ------------------------------------------------------
    # exemplar_corr = exemplar_t @ We^T ; A = exemplar_corr @ query_flat
    m = jnp.dot(we_ref[...], ex_bf, preferred_element_type=f32)       # (C, D) == corr^T
    a = lax.dot_general(m.astype(bf16), q_bf, (((0,), (0,)), ((), ())),
                        preferred_element_type=f32)                    # (D, D)

    # A1 = softmax(A, dim=1)  -> per-batch softmax over axis 0
    e1 = jnp.exp(a - jnp.max(a, axis=0, keepdims=True))
    a1 = e1 * pl.reciprocal(jnp.sum(e1, axis=0, keepdims=True), approx=True)
    att2 = jnp.dot(ex_bf, a1.astype(bf16),
                   preferred_element_type=f32)                         # query_att (C, D)

    # B = softmax(A^T, dim=1) -> row-softmax of A, used transposed below
    e2 = jnp.exp(a - jnp.max(a, axis=1, keepdims=True))
    s2 = e2 * pl.reciprocal(jnp.sum(e2, axis=1, keepdims=True), approx=True)
    att1 = lax.dot_general(q_bf, s2.astype(bf16), (((1,), (1,)), ((), ())),
                           preferred_element_type=f32)                 # exemplar_att (C, D)

    # ---- gates + SE-style channel excitation (no (2C, D) concat) -----------
    att1_bf = att1.astype(bf16)
    att2_bf = att2.astype(bf16)
    masks = jax.nn.sigmoid(
        jnp.dot(gwa_ref[...], att1_bf, preferred_element_type=f32)
        + jnp.dot(gwb_ref[...], att2_bf, preferred_element_type=f32))  # (2, D)

    p1 = jnp.mean(att1, axis=1, keepdims=True).astype(bf16)            # (C, 1)
    p2 = jnp.mean(att2, axis=1, keepdims=True).astype(bf16)            # (C, 1)
    h = jnp.maximum(
        jnp.dot(w13a_ref[...], p1, preferred_element_type=f32)
        + jnp.dot(w13b_ref[...], p2, preferred_element_type=f32)
        + b13_ref[...], 0.0)                                           # (2*HID, 1)
    se = jax.nn.sigmoid(
        jnp.dot(w24_ref[...], h.astype(bf16), preferred_element_type=f32)
        + b24_ref[...])                                                # (2C, 1) = [out_e; out_q]
    out_e = se[:C]                                                     # (C, 1)
    out_q = se[C:]                                                     # (C, 1)

    g1 = (att1 * masks[0:1, :]) * out_q                                # gated exemplar_att
    g2 = (att2 * masks[1:2, :]) * out_e                                # gated query_att

    # ---- 3x3 conv (+ eval-mode BN + ReLU), both branches, in VMEM ----------
    # conv input per branch is [gated_att ; original] on 2C channels, laid into
    # a bf16 slab at a 128-aligned offset.  A flat column shift of s = dh*W+dw
    # realizes the (dh, dw) spatial tap; the H boundary is handled by the zero
    # halo, the W boundary by the precomputed column masks applied AFTER the
    # matmul to the (C, D) dw-group partial sums.
    halo_z = jnp.zeros((2 * C, HALO), bf16)
    # Zero only the halo columns, every step (scratch is per-core; with a
    # megacore-sharded grid one core never runs program_id == 0).
    pad1_ref[:, off - HALO:off] = halo_z
    pad1_ref[:, off + D:off + D + HALO] = halo_z
    pad2_ref[:, off - HALO:off] = halo_z
    pad2_ref[:, off + D:off + D + HALO] = halo_z

    pad1_ref[0:C, off:off + D] = g1.astype(bf16)
    pad1_ref[C:2 * C, off:off + D] = ex_bf
    pad2_ref[0:C, off:off + D] = g2.astype(bf16)
    pad2_ref[C:2 * C, off:off + D] = q_bf

    mask_dwm = colmask_ref[0:1, :]    # valid output columns when dw == -1
    mask_dwp = colmask_ref[1:2, :]    # valid output columns when dw == +1

    def conv_group(cw_ref, pad_ref, dw):
        part = None
        for dh in (-1, 0, 1):
            s = dh * W + dw
            t = (dh + 1) * 3 + (dw + 1)
            tap = pad_ref[:, off + s:off + s + D]                      # (2C, D) bf16
            r = jnp.dot(cw_ref[t], tap, preferred_element_type=f32)    # (C, D) f32
            part = r if part is None else part + r
        return part

    acc1 = (conv_group(cw1_ref, pad1_ref, 0)
            + conv_group(cw1_ref, pad1_ref, -1) * mask_dwm
            + conv_group(cw1_ref, pad1_ref, 1) * mask_dwp)
    acc2 = (conv_group(cw2_ref, pad2_ref, 0)
            + conv_group(cw2_ref, pad2_ref, -1) * mask_dwm
            + conv_group(cw2_ref, pad2_ref, 1) * mask_dwp)

    out1_ref[0] = jnp.maximum(acc1 * bns_ref[:, 0:1] + bnb_ref[:, 0:1], 0.0)
    out2_ref[0] = jnp.maximum(acc2 * bns_ref[:, 1:2] + bnb_ref[:, 1:2], 0.0)


# ----------------------------------------------------------------------------
# Wrapper
# ----------------------------------------------------------------------------
def coattention_forward(p, exemplar, query):
    N, C, H, W = exemplar.shape
    D = H * W
    HID = p['fc1_w'].shape[0]
    HALO = W + 1
    OFF = 128                                   # 128-aligned interior slab offset
    Dp = OFF + ((D + HALO + 127) // 128) * 128  # slab width (multiple of 128)
    f32 = jnp.float32
    bf16 = jnp.bfloat16

    ex_flat = exemplar.reshape(N, C, D).astype(f32)
    q_flat = query.reshape(N, C, D).astype(f32)

    # ---- parameter packing (glue, runs once under jit) ----------------------
    we = p['linear_e_w'].astype(bf16)                                   # (C, C)
    gw = jnp.concatenate([p['gate1_w'], p['gate2_w']], axis=0)          # (2, 2C)
    gwa = gw[:, :C].astype(bf16)                                        # (2, C)
    gwb = gw[:, C:].astype(bf16)                                        # (2, C)
    w13 = jnp.concatenate([p['fc1_w'], p['fc3_w']], axis=0)             # (2H, 2C)
    w13a = w13[:, :C].astype(bf16)                                      # (2H, C)
    w13b = w13[:, C:].astype(bf16)                                      # (2H, C)
    b13 = jnp.concatenate([p['fc1_b'], p['fc3_b']],
                          axis=0).reshape(2 * HID, 1).astype(f32)
    zpad = jnp.zeros((C, HID), f32)
    w24 = jnp.concatenate(
        [jnp.concatenate([p['fc2_w'], zpad], axis=1),
         jnp.concatenate([zpad, p['fc4_w']], axis=1)],
        axis=0).astype(bf16)                                            # (2C, 2H) block-diag
    b24 = jnp.concatenate([p['fc2_b'], p['fc4_b']],
                          axis=0).reshape(2 * C, 1).astype(f32)

    # conv weights as 9 taps of (C_out, C_in): (kh, kw, C, 2C), bf16
    cw1 = jnp.transpose(p['conv1_w'], (2, 3, 0, 1)).reshape(9, C, 2 * C).astype(bf16)
    cw2 = jnp.transpose(p['conv2_w'], (2, 3, 0, 1)).reshape(9, C, 2 * C).astype(bf16)

    # eval-mode BN folded into scale/bias, packed per branch (f32)
    eps = 1e-5
    sc1 = p['bn1_gamma'] / jnp.sqrt(p['bn1_var'] + eps)
    sc2 = p['bn2_gamma'] / jnp.sqrt(p['bn2_var'] + eps)
    bns = jnp.stack([sc1, sc2], axis=1)                                 # (C, 2)
    bnb = jnp.stack([p['bn1_beta'] - p['bn1_mean'] * sc1,
                     p['bn2_beta'] - p['bn2_mean'] * sc2], axis=1)      # (C, 2)

    # column-validity masks for dw = -1 / +1 taps (applied post-matmul)
    w_idx = jnp.arange(D, dtype=jnp.int32) % W
    colmask = jnp.stack([(w_idx >= 1).astype(f32),
                         (w_idx <= W - 2).astype(f32)], axis=0)         # (2, D)

    def full(shape):
        return pl.BlockSpec(shape, lambda n, _s=shape: (0,) * len(_s))

    def batch():
        return pl.BlockSpec((1, C, D), lambda n: (n, 0, 0))

    kernel = functools.partial(_fused_coattention_conv_kernel,
                               H=H, W=W, C=C, HID=HID, OFF=OFF)

    # advisory cost hint for XLA scheduling
    flops = int(N * (2 * C * C * D + 6 * C * D * D + 8 * C * D
                     + 16 * HID * C + 72 * C * C * D))
    transcendentals = int(N * (2 * D * D + 4 * D + 2 * C))
    bytes_accessed = int(4 * 4 * N * C * D
                         + 2 * (37 * C * C + 8 * HID * C)
                         + 4 * (8 * C + 4 * D))

    out1, out2 = pl.pallas_call(
        kernel,
        out_shape=(jax.ShapeDtypeStruct((N, C, D), f32),
                   jax.ShapeDtypeStruct((N, C, D), f32)),
        grid=(N,),
        in_specs=[batch(), batch(),
                  full((C, C)),
                  full((2, C)), full((2, C)),
                  full((2 * HID, C)), full((2 * HID, C)), full((2 * HID, 1)),
                  full((2 * C, 2 * HID)), full((2 * C, 1)),
                  full((9, C, 2 * C)), full((9, C, 2 * C)),
                  full((C, 2)), full((C, 2)),
                  full((2, D))],
        out_specs=(pl.BlockSpec((1, C, D), lambda n: (n, 0, 0)),
                   pl.BlockSpec((1, C, D), lambda n: (n, 0, 0))),
        scratch_shapes=[pltpu.VMEM((2 * C, Dp), bf16),
                        pltpu.VMEM((2 * C, Dp), bf16)],
        compiler_params=pltpu.CompilerParams(
            dimension_semantics=("parallel",),
            vmem_limit_bytes=48 * 1024 * 1024),
        cost_estimate=pl.CostEstimate(flops=flops,
                                      transcendentals=transcendentals,
                                      bytes_accessed=bytes_accessed),
    )(ex_flat, q_flat, we, gwa, gwb, w13a, w13b, b13, w24, b24,
      cw1, cw2, bns, bnb, colmask)

    # channel-major (lane-dense) outputs: plain reshape, no transpose
    return out1.reshape(N, C, H, W), out2.reshape(N, C, H, W)


# ----------------------------------------------------------------------------
# Pure-JAX reference (mirrors the PyTorch forward, eval-mode BN)
# ----------------------------------------------------------------------------
def reference_forward(p, exemplar, query):
    N, C, H, W = exemplar.shape
    D = H * W
    ex_flat = exemplar.reshape(N, C, D)
    q_flat = query.reshape(N, C, D)
    ex_t = jnp.transpose(ex_flat, (0, 2, 1))                       # (N, D, C)
    corr = jnp.einsum('ndc,kc->ndk', ex_t, p['linear_e_w'])        # x @ W^T
    A = jnp.einsum('ndk,nkm->ndm', corr, q_flat)                   # (N, D, D)
    A1 = jax.nn.softmax(A, axis=1)
    B = jax.nn.softmax(jnp.transpose(A, (0, 2, 1)), axis=1)
    query_att = jnp.einsum('ncd,ndm->ncm', ex_flat, A1)
    exemplar_att = jnp.einsum('ncd,ndm->ncm', q_flat, B)
    att1 = exemplar_att.reshape(N, C, H, W)
    att2 = query_att.reshape(N, C, H, W)
    cat = jnp.concatenate([att1, att2], axis=1)                    # (N, 2C, H, W)
    mask1 = jax.nn.sigmoid(jnp.einsum('oc,nchw->nohw', p['gate1_w'], cat))
    mask2 = jax.nn.sigmoid(jnp.einsum('oc,nchw->nohw', p['gate2_w'], cat))
    pooled = jnp.mean(cat, axis=(2, 3))                            # (N, 2C)
    h_e = jnp.maximum(pooled @ p['fc1_w'].T + p['fc1_b'], 0.0)
    out_e = jax.nn.sigmoid(h_e @ p['fc2_w'].T + p['fc2_b'])[:, :, None, None]
    h_q = jnp.maximum(pooled @ p['fc3_w'].T + p['fc3_b'], 0.0)
    out_q = jax.nn.sigmoid(h_q @ p['fc4_w'].T + p['fc4_b'])[:, :, None, None]
    att1 = out_q * (att1 * mask1)
    att2 = out_e * (att2 * mask2)
    x1 = jnp.concatenate([att1, exemplar], axis=1)
    x2 = jnp.concatenate([att2, query], axis=1)

    def conv_bn_relu(x, w, gamma, beta, rmean, rvar):
        y = lax.conv_general_dilated(x, w, (1, 1), ((1, 1), (1, 1)),
                                     dimension_numbers=('NCHW', 'OIHW', 'NCHW'))
        eps = 1e-5
        y = (y - rmean[None, :, None, None]) / jnp.sqrt(rvar + eps)[None, :, None, None]
        y = y * gamma[None, :, None, None] + beta[None, :, None, None]
        return jnp.maximum(y, 0.0)

    o1 = conv_bn_relu(x1, p['conv1_w'], p['bn1_gamma'], p['bn1_beta'],
                      p['bn1_mean'], p['bn1_var'])
    o2 = conv_bn_relu(x2, p['conv2_w'], p['bn2_gamma'], p['bn2_beta'],
                      p['bn2_mean'], p['bn2_var'])
    return o1, o2


if __name__ == "__main__":
    # small shapes consistent with the module: all_channel=C, all_dim=H*W
    N, C, H, W = 2, 32, 8, 8
    HID = 16
    f = jnp.float32
    key = jax.random.PRNGKey(0)
    ks = jax.random.split(key, 24)

    p = {
        'linear_e_w': jax.random.normal(ks[0], (C, C), f) * 0.02,
        'gate1_w': jax.random.normal(ks[1], (1, 2 * C), f) * 0.05,   # torch: (1, 2C, 1, 1)
        'gate2_w': jax.random.normal(ks[2], (1, 2 * C), f) * 0.05,
        'conv1_w': jax.random.normal(ks[3], (C, 2 * C, 3, 3), f) * 0.03,
        'conv2_w': jax.random.normal(ks[4], (C, 2 * C, 3, 3), f) * 0.03,
        'bn1_gamma': 1.0 + 0.1 * jax.random.normal(ks[5], (C,), f),
        'bn1_beta': 0.1 * jax.random.normal(ks[6], (C,), f),
        'bn1_mean': jnp.zeros((C,), f),
        'bn1_var': jnp.ones((C,), f),
        'bn2_gamma': 1.0 + 0.1 * jax.random.normal(ks[7], (C,), f),
        'bn2_beta': 0.1 * jax.random.normal(ks[8], (C,), f),
        'bn2_mean': jnp.zeros((C,), f),
        'bn2_var': jnp.ones((C,), f),
        'fc1_w': jax.random.normal(ks[9], (HID, 2 * C), f) * 0.05,
        'fc1_b': 0.05 * jax.random.normal(ks[10], (HID,), f),
        'fc2_w': jax.random.normal(ks[11], (C, HID), f) * 0.05,
        'fc2_b': 0.05 * jax.random.normal(ks[12], (C,), f),
        'fc3_w': jax.random.normal(ks[13], (HID, 2 * C), f) * 0.05,
        'fc3_b': 0.05 * jax.random.normal(ks[14], (HID,), f),
        'fc4_w': jax.random.normal(ks[15], (C, HID), f) * 0.05,
        'fc4_b': 0.05 * jax.random.normal(ks[16], (C,), f),
    }

    exemplar = jax.random.normal(ks[20], (N, C, H, W), f)
    query = jax.random.normal(ks[21], (N, C, H, W), f)

    out1, out2 = jax.jit(coattention_forward)(p, exemplar, query)
    jax.block_until_ready((out1, out2))

    ref1, ref2 = reference_forward(p, exemplar, query)
    assert out1.shape == (N, C, H, W) and out2.shape == (N, C, H, W)
    assert bool(jnp.allclose(out1, ref1, rtol=4e-2, atol=4e-2)), \
        float(jnp.max(jnp.abs(out1 - ref1)))
    assert bool(jnp.allclose(out2, ref2, rtol=4e-2, atol=4e-2)), \
        float(jnp.max(jnp.abs(out2 - ref2)))

    print("KERNEL_OK")
</pallas_src>

<mosaic_0001>
module attributes {stable_mosaic.version = 11 : i64} {
  func.func @_fused_coattention_conv_kernel(%arg0: i32, %arg1: memref<1x32x64xf32, #tpu.memory_space<vmem>>, %arg2: memref<1x32x64xf32, #tpu.memory_space<vmem>>, %arg3: memref<32x32xbf16, #tpu.memory_space<vmem>>, %arg4: memref<2x32xbf16, #tpu.memory_space<vmem>>, %arg5: memref<2x32xbf16, #tpu.memory_space<vmem>>, %arg6: memref<32x32xbf16, #tpu.memory_space<vmem>>, %arg7: memref<32x32xbf16, #tpu.memory_space<vmem>>, %arg8: memref<32x1xf32, #tpu.memory_space<vmem>>, %arg9: memref<64x32xbf16, #tpu.memory_space<vmem>>, %arg10: memref<64x1xf32, #tpu.memory_space<vmem>>, %arg11: memref<9x32x64xbf16, #tpu.memory_space<vmem>>, %arg12: memref<9x32x64xbf16, #tpu.memory_space<vmem>>, %arg13: memref<32x2xf32, #tpu.memory_space<vmem>>, %arg14: memref<32x2xf32, #tpu.memory_space<vmem>>, %arg15: memref<2x64xf32, #tpu.memory_space<vmem>>, %arg16: memref<1x32x64xf32, #tpu.memory_space<vmem>>, %arg17: memref<1x32x64xf32, #tpu.memory_space<vmem>>, %arg18: memref<64x256xbf16, #tpu.memory_space<vmem>>, %arg19: memref<64x256xbf16, #tpu.memory_space<vmem>>) attributes {dimension_semantics = [#tpu.dimension_semantics<parallel>], iteration_bounds = array<i64: 2>, scalar_prefetch = 0 : i64, scratch_operands = 2 : i64, tpu.core_type = #tpu.core_type<tc>, window_params = [{transform_indices = @transform_0, window_bounds = array<i64: 1, 32, 64>}, {transform_indices = @transform_1, window_bounds = array<i64: 1, 32, 64>}, {pipeline_mode = #tpu.pipeline_mode<synchronous>, transform_indices = @transform_2, window_bounds = array<i64: 32, 32>}, {pipeline_mode = #tpu.pipeline_mode<synchronous>, transform_indices = @transform_3, window_bounds = array<i64: 2, 32>}, {pipeline_mode = #tpu.pipeline_mode<synchronous>, transform_indices = @transform_4, window_bounds = array<i64: 2, 32>}, {pipeline_mode = #tpu.pipeline_mode<synchronous>, transform_indices = @transform_5, window_bounds = array<i64: 32, 32>}, {pipeline_mode = #tpu.pipeline_mode<synchronous>, transform_indices = @transform_6, window_bounds = array<i64: 32, 32>}, {pipeline_mode = #tpu.pipeline_mode<synchronous>, transform_indices = @transform_7, window_bounds = array<i64: 32, 1>}, {pipeline_mode = #tpu.pipeline_mode<synchronous>, transform_indices = @transform_8, window_bounds = array<i64: 64, 32>}, {pipeline_mode = #tpu.pipeline_mode<synchronous>, transform_indices = @transform_9, window_bounds = array<i64: 64, 1>}, {pipeline_mode = #tpu.pipeline_mode<synchronous>, transform_indices = @transform_10, window_bounds = array<i64: 9, 32, 64>}, {pipeline_mode = #tpu.pipeline_mode<synchronous>, transform_indices = @transform_11, window_bounds = array<i64: 9, 32, 64>}, {pipeline_mode = #tpu.pipeline_mode<synchronous>, transform_indices = @transform_12, window_bounds = array<i64: 32, 2>}, {pipeline_mode = #tpu.pipeline_mode<synchronous>, transform_indices = @transform_13, window_bounds = array<i64: 32, 2>}, {pipeline_mode = #tpu.pipeline_mode<synchronous>, transform_indices = @transform_14, window_bounds = array<i64: 2, 64>}, {transform_indices = @transform_15, window_bounds = array<i64: 1, 32, 64>}, {transform_indices = @transform_16, window_bounds = array<i64: 1, 32, 64>}]} {
    %c0 = arith.constant 0 : index
    %c0_0 = arith.constant 0 : index
    %c0_1 = arith.constant 0 : index
    %0 = vector.load %arg1[%c0, %c0_0, %c0_1] : memref<1x32x64xf32, #tpu.memory_space<vmem>>, vector<1x32x64xf32>
    %1 = vector.shape_cast %0 : vector<1x32x64xf32> to vector<32x64xf32>
    %c0_2 = arith.constant 0 : index
    %c0_3 = arith.constant 0 : index
    %c0_4 = arith.constant 0 : index
    %2 = vector.load %arg2[%c0_2, %c0_3, %c0_4] : memref<1x32x64xf32, #tpu.memory_space<vmem>>, vector<1x32x64xf32>
    %3 = vector.shape_cast %2 : vector<1x32x64xf32> to vector<32x64xf32>
    %4 = arith.truncf %1 : vector<32x64xf32> to vector<32x64xbf16>
    %5 = arith.truncf %3 : vector<32x64xf32> to vector<32x64xbf16>
    %c0_5 = arith.constant 0 : index
    %c0_6 = arith.constant 0 : index
    %6 = vector.load %arg3[%c0_5, %c0_6] : memref<32x32xbf16, #tpu.memory_space<vmem>>, vector<32x32xbf16>
    %cst = arith.constant dense<0.000000e+00> : vector<32x64xf32>
    %7 = tpu.matmul %6, %4, %cst {dimension_numbers = #tpu.dot_dimension_numbers<[1], [0], [0], [1], [0, 0, 1, 1], [], []>} : vector<32x32xbf16>, vector<32x64xbf16>, vector<32x64xf32> -> vector<32x64xf32>
    %8 = arith.truncf %7 : vector<32x64xf32> to vector<32x64xbf16>
    %cst_7 = arith.constant dense<0.000000e+00> : vector<64x64xf32>
    %9 = tpu.matmul %8, %5, %cst_7 {dimension_numbers = #tpu.dot_dimension_numbers<[0], [0], [1], [1], [0, 1, 1, 1], [], []>} : vector<32x64xbf16>, vector<32x64xbf16>, vector<64x64xf32> -> vector<64x64xf32>
    %cst_8 = arith.constant dense<0xFF800000> : vector<64xf32>
    %10 = vector.multi_reduction <maximumf>, %9, %cst_8 [0] : vector<64x64xf32> to vector<64xf32>
    %11 = vector.shape_cast %10 : vector<64xf32> to vector<1x64xf32>
    %12 = vector.broadcast %11 : vector<1x64xf32> to vector<64x64xf32>
    %13 = arith.subf %9, %12 : vector<64x64xf32>
    %14 = math.exp %13 : vector<64x64xf32>
    %cst_9 = arith.constant dense<0.000000e+00> : vector<64xf32>
    %15 = vector.multi_reduction <add>, %14, %cst_9 [0] : vector<64x64xf32> to vector<64xf32>
    %16 = vector.shape_cast %15 : vector<64xf32> to vector<1x64xf32>
    %17 = tpu.reciprocal %16 {approx = true} : vector<1x64xf32> -> vector<1x64xf32>
    %18 = vector.broadcast %17 : vector<1x64xf32> to vector<64x64xf32>
    %19 = arith.mulf %14, %18 : vector<64x64xf32>
    %20 = arith.truncf %19 : vector<64x64xf32> to vector<64x64xbf16>
    %cst_10 = arith.constant dense<0.000000e+00> : vector<32x64xf32>
    %21 = tpu.matmul %4, %20, %cst_10 {dimension_numbers = #tpu.dot_dimension_numbers<[1], [0], [0], [1], [0, 0, 1, 1], [], []>} : vector<32x64xbf16>, vector<64x64xbf16>, vector<32x64xf32> -> vector<32x64xf32>
    %cst_11 = arith.constant dense<0xFF800000> : vector<64xf32>
    %22 = vector.multi_reduction <maximumf>, %9, %cst_11 [1] : vector<64x64xf32> to vector<64xf32>
    %23 = vector.shape_cast %22 : vector<64xf32> to vector<64x1xf32>
    %24 = vector.broadcast %23 : vector<64x1xf32> to vector<64x64xf32>
    %25 = arith.subf %9, %24 : vector<64x64xf32>
    %26 = math.exp %25 : vector<64x64xf32>
    %cst_12 = arith.constant dense<0.000000e+00> : vector<64xf32>
    %27 = vector.multi_reduction <add>, %26, %cst_12 [1] : vector<64x64xf32> to vector<64xf32>
    %28 = vector.shape_cast %27 : vector<64xf32> to vector<64x1xf32>
    %29 = tpu.reciprocal %28 {approx = true} : vector<64x1xf32> -> vector<64x1xf32>
    %30 = vector.broadcast %29 : vector<64x1xf32> to vector<64x64xf32>
    %31 = arith.mulf %26, %30 : vector<64x64xf32>
    %32 = arith.truncf %31 : vector<64x64xf32> to vector<64x64xbf16>
    %cst_13 = arith.constant dense<0.000000e+00> : vector<32x64xf32>
    %33 = tpu.matmul %5, %32, %cst_13 {dimension_numbers = #tpu.dot_dimension_numbers<[1], [1], [0], [0], [0, 0, 1, 0], [], []>} : vector<32x64xbf16>, vector<64x64xbf16>, vector<32x64xf32> -> vector<32x64xf32>
    %34 = arith.truncf %33 : vector<32x64xf32> to vector<32x64xbf16>
    %35 = arith.truncf %21 : vector<32x64xf32> to vector<32x64xbf16>
    %c0_14 = arith.constant 0 : index
    %c0_15 = arith.constant 0 : index
    %36 = vector.load %arg4[%c0_14, %c0_15] : memref<2x32xbf16, #tpu.memory_space<vmem>>, vector<2x32xbf16>
    %cst_16 = arith.constant dense<0.000000e+00> : vector<2x64xf32>
    %37 = tpu.matmul %36, %34, %cst_16 {dimension_numbers = #tpu.dot_dimension_numbers<[1], [0], [0], [1], [0, 0, 1, 1], [], []>} : vector<2x32xbf16>, vector<32x64xbf16>, vector<2x64xf32> -> vector<2x64xf32>
    %c0_17 = arith.constant 0 : index
    %c0_18 = arith.constant 0 : index
    %38 = vector.load %arg5[%c0_17, %c0_18] : memref<2x32xbf16, #tpu.memory_space<vmem>>, vector<2x32xbf16>
    %cst_19 = arith.constant dense<0.000000e+00> : vector<2x64xf32>
    %39 = tpu.matmul %38, %35, %cst_19 {dimension_numbers = #tpu.dot_dimension_numbers<[1], [0], [0], [1], [0, 0, 1, 1], [], []>} : vector<2x32xbf16>, vector<32x64xbf16>, vector<2x64xf32> -> vector<2x64xf32>
    %40 = arith.addf %37, %39 : vector<2x64xf32>
    %41 = arith.negf %40 : vector<2x64xf32>
    %42 = math.exp %41 : vector<2x64xf32>
    %cst_20 = arith.constant 1.000000e+00 : f32
    %43 = vector.broadcast %cst_20 : f32 to vector<2x64xf32>
    %44 = arith.addf %43, %42 : vector<2x64xf32>
    %45 = arith.divf %43, %44 : vector<2x64xf32>
    %cst_21 = arith.constant dense<0.000000e+00> : vector<32xf32>
    %46 = vector.multi_reduction <add>, %33, %cst_21 [1] : vector<32x64xf32> to vector<32xf32>
    %47 = vector.shape_cast %46 : vector<32xf32> to vector<32x1xf32>
    %cst_22 = arith.constant 6.400000e+01 : f32
    %48 = vector.broadcast %cst_22 : f32 to vector<32x1xf32>
    %49 = arith.divf %47, %48 : vector<32x1xf32>
    %50 = arith.truncf %49 : vector<32x1xf32> to vector<32x1xbf16>
    %cst_23 = arith.constant dense<0.000000e+00> : vector<32xf32>
    %51 = vector.multi_reduction <add>, %21, %cst_23 [1] : vector<32x64xf32> to vector<32xf32>
    %52 = vector.shape_cast %51 : vector<32xf32> to vector<32x1xf32>
    %cst_24 = arith.constant 6.400000e+01 : f32
    %53 = vector.broadcast %cst_24 : f32 to vector<32x1xf32>
    %54 = arith.divf %52, %53 : vector<32x1xf32>
    %55 = arith.truncf %54 : vector<32x1xf32> to vector<32x1xbf16>
    %c0_25 = arith.constant 0 : index
    %c0_26 = arith.constant 0 : index
    %56 = vector.load %arg6[%c0_25, %c0_26] : memref<32x32xbf16, #tpu.memory_space<vmem>>, vector<32x32xbf16>
    %cst_27 = arith.constant dense<0.000000e+00> : vector<32x1xf32>
    %57 = tpu.matmul %56, %50, %cst_27 {dimension_numbers = #tpu.dot_dimension_numbers<[1], [0], [0], [1], [0, 0, 1, 1], [], []>} : vector<32x32xbf16>, vector<32x1xbf16>, vector<32x1xf32> -> vector<32x1xf32>
    %c0_28 = arith.constant 0 : index
    %c0_29 = arith.constant 0 : index
    %58 = vector.load %arg7[%c0_28, %c0_29] : memref<32x32xbf16, #tpu.memory_space<vmem>>, vector<32x32xbf16>
    %cst_30 = arith.constant dense<0.000000e+00> : vector<32x1xf32>
    %59 = tpu.matmul %58, %55, %cst_30 {dimension_numbers = #tpu.dot_dimension_numbers<[1], [0], [0], [1], [0, 0, 1, 1], [], []>} : vector<32x32xbf16>, vector<32x1xbf16>, vector<32x1xf32> -> vector<32x1xf32>
    %60 = arith.addf %57, %59 : vector<32x1xf32>
    %c0_31 = arith.constant 0 : index
    %c0_32 = arith.constant 0 : index
    %61 = vector.load %arg8[%c0_31, %c0_32] : memref<32x1xf32, #tpu.memory_space<vmem>>, vector<32x1xf32>
    %62 = arith.addf %60, %61 : vector<32x1xf32>
    %cst_33 = arith.constant 0.000000e+00 : f32
    %63 = vector.broadcast %cst_33 : f32 to vector<32x1xf32>
    %64 = arith.maximumf %62, %63 : vector<32x1xf32>
    %c0_34 = arith.constant 0 : index
    %c0_35 = arith.constant 0 : index
    %65 = vector.load %arg9[%c0_34, %c0_35] : memref<64x32xbf16, #tpu.memory_space<vmem>>, vector<64x32xbf16>
    %66 = arith.truncf %64 : vector<32x1xf32> to vector<32x1xbf16>
    %cst_36 = arith.constant dense<0.000000e+00> : vector<64x1xf32>
    %67 = tpu.matmul %65, %66, %cst_36 {dimension_numbers = #tpu.dot_dimension_numbers<[1], [0], [0], [1], [0, 0, 1, 1], [], []>} : vector<64x32xbf16>, vector<32x1xbf16>, vector<64x1xf32> -> vector<64x1xf32>
    %c0_37 = arith.constant 0 : index
    %c0_38 = arith.constant 0 : index
    %68 = vector.load %arg10[%c0_37, %c0_38] : memref<64x1xf32, #tpu.memory_space<vmem>>, vector<64x1xf32>
    %69 = arith.addf %67, %68 : vector<64x1xf32>
    %70 = arith.negf %69 : vector<64x1xf32>
    %71 = math.exp %70 : vector<64x1xf32>
    %cst_39 = arith.constant 1.000000e+00 : f32
    %72 = vector.broadcast %cst_39 : f32 to vector<64x1xf32>
    %73 = arith.addf %72, %71 : vector<64x1xf32>
    %74 = arith.divf %72, %73 : vector<64x1xf32>
    %75 = vector.extract_strided_slice %74 {offsets = [0, 0], sizes = [32, 1], strides = [1, 1]} : vector<64x1xf32> to vector<32x1xf32>
    %76 = vector.extract_strided_slice %74 {offsets = [32, 0], sizes = [32, 1], strides = [1, 1]} : vector<64x1xf32> to vector<32x1xf32>
    %77 = vector.extract_strided_slice %45 {offsets = [0, 0], sizes = [1, 64], strides = [1, 1]} : vector<2x64xf32> to vector<1x64xf32>
    %78 = vector.broadcast %77 : vector<1x64xf32> to vector<32x64xf32>
    %79 = arith.mulf %33, %78 : vector<32x64xf32>
    %80 = vector.broadcast %76 : vector<32x1xf32> to vector<32x64xf32>
    %81 = arith.mulf %79, %80 : vector<32x64xf32>
    %82 = vector.extract_strided_slice %45 {offsets = [1, 0], sizes = [1, 64], strides = [1, 1]} : vector<2x64xf32> to vector<1x64xf32>
    %83 = vector.broadcast %82 : vector<1x64xf32> to vector<32x64xf32>
    %84 = arith.mulf %21, %83 : vector<32x64xf32>
    %85 = vector.broadcast %75 : vector<32x1xf32> to vector<32x64xf32>
    %86 = arith.mulf %84, %85 : vector<32x64xf32>
    %cst_40 = arith.constant 0.000000e+00 : bf16
    %87 = vector.broadcast %cst_40 : bf16 to vector<64x9xbf16>
    %c0_41 = arith.constant 0 : index
    %c119 = arith.constant 119 : index
    %88 = vector.load %arg18[%c0_41, %c119] : memref<64x256xbf16, #tpu.memory_space<vmem>>, vector<64x9xbf16>
    tpu.vector_store %arg18[%c0_41, %c119], %87 {strides = array<i32>} : memref<64x256xbf16, #tpu.memory_space<vmem>>, vector<64x9xbf16>,
    %c0_42 = arith.constant 0 : index
    %c192 = arith.constant 192 : index
    %89 = vector.load %arg18[%c0_42, %c192] : memref<64x256xbf16, #tpu.memory_space<vmem>>, vector<64x9xbf16>
    tpu.vector_store %arg18[%c0_42, %c192], %87 {strides = array<i32>} : memref<64x256xbf16, #tpu.memory_space<vmem>>, vector<64x9xbf16>,
    %c0_43 = arith.constant 0 : index
    %c119_44 = arith.constant 119 : index
    %90 = vector.load %arg19[%c0_43, %c119_44] : memref<64x256xbf16, #tpu.memory_space<vmem>>, vector<64x9xbf16>
    tpu.vector_store %arg19[%c0_43, %c119_44], %87 {strides = array<i32>} : memref<64x256xbf16, #tpu.memory_space<vmem>>, vector<64x9xbf16>,
    %c0_45 = arith.constant 0 : index
    %c192_46 = arith.constant 192 : index
    %91 = vector.load %arg19[%c0_45, %c192_46] : memref<64x256xbf16, #tpu.memory_space<vmem>>, vector<64x9xbf16>
    tpu.vector_store %arg19[%c0_45, %c192_46], %87 {strides = array<i32>} : memref<64x256xbf16, #tpu.memory_space<vmem>>, vector<64x9xbf16>,
    %92 = arith.truncf %81 : vector<32x64xf32> to vector<32x64xbf16>
    %c0_47 = arith.constant 0 : index
    %c128 = arith.constant 128 : index
    %93 = vector.load %arg18[%c0_47, %c128] : memref<64x256xbf16, #tpu.memory_space<vmem>>, vector<32x64xbf16>
    tpu.vector_store %arg18[%c0_47, %c128], %92 {strides = array<i32>} : memref<64x256xbf16, #tpu.memory_space<vmem>>, vector<32x64xbf16>,
    %c32 = arith.constant 32 : index
    %c128_48 = arith.constant 128 : index
    %94 = vector.load %arg18[%c32, %c128_48] : memref<64x256xbf16, #tpu.memory_space<vmem>>, vector<32x64xbf16>
    tpu.vector_store %arg18[%c32, %c128_48], %4 {strides = array<i32>} : memref<64x256xbf16, #tpu.memory_space<vmem>>, vector<32x64xbf16>,
    %95 = arith.truncf %86 : vector<32x64xf32> to vector<32x64xbf16>
    %c0_49 = arith.constant 0 : index
    %c128_50 = arith.constant 128 : index
    %96 = vector.load %arg19[%c0_49, %c128_50] : memref<64x256xbf16, #tpu.memory_space<vmem>>, vector<32x64xbf16>
    tpu.vector_store %arg19[%c0_49, %c128_50], %95 {strides = array<i32>} : memref<64x256xbf16, #tpu.memory_space<vmem>>, vector<32x64xbf16>,
    %c32_51 = arith.constant 32 : index
    %c128_52 = arith.constant 128 : index
    %97 = vector.load %arg19[%c32_51, %c128_52] : memref<64x256xbf16, #tpu.memory_space<vmem>>, vector<32x64xbf16>
    tpu.vector_store %arg19[%c32_51, %c128_52], %5 {strides = array<i32>} : memref<64x256xbf16, #tpu.memory_space<vmem>>, vector<32x64xbf16>,
    %c0_53 = arith.constant 0 : index
    %c0_54 = arith.constant 0 : index
    %98 = vector.load %arg15[%c0_53, %c0_54] : memref<2x64xf32, #tpu.memory_space<vmem>>, vector<1x64xf32>
    %c1 = arith.constant 1 : index
    %c0_55 = arith.constant 0 : index
    %99 = vector.load %arg15[%c1, %c0_55] : memref<2x64xf32, #tpu.memory_space<vmem>>, vector<1x64xf32>
    %c0_56 = arith.constant 0 : index
    %c120 = arith.constant 120 : index
    %100 = vector.load %arg18[%c0_56, %c120] : memref<64x256xbf16, #tpu.memory_space<vmem>>, vector<64x64xbf16>
    %c1_57 = arith.constant 1 : index
    %c0_58 = arith.constant 0 : index
    %c0_59 = arith.constant 0 : index
    %101 = vector.load %arg11[%c1_57, %c0_58, %c0_59] : memref<9x32x64xbf16, #tpu.memory_space<vmem>>, vector<1x32x64xbf16>
    %102 = vector.shape_cast %101 : vector<1x32x64xbf16> to vector<32x64xbf16>
    %cst_60 = arith.constant dense<0.000000e+00> : vector<32x64xf32>
    %103 = tpu.matmul %102, %100, %cst_60 {dimension_numbers = #tpu.dot_dimension_numbers<[1], [0], [0], [1], [0, 0, 1, 1], [], []>} : vector<32x64xbf16>, vector<64x64xbf16>, vector<32x64xf32> -> vector<32x64xf32>
    %c0_61 = arith.constant 0 : index
    %c128_62 = arith.constant 128 : index
    %104 = vector.load %arg18[%c0_61, %c128_62] : memref<64x256xbf16, #tpu.memory_space<vmem>>, vector<64x64xbf16>
    %c4 = arith.constant 4 : index
    %c0_63 = arith.constant 0 : index
    %c0_64 = arith.constant 0 : index
    %105 = vector.load %arg11[%c4, %c0_63, %c0_64] : memref<9x32x64xbf16, #tpu.memory_space<vmem>>, vector<1x32x64xbf16>
    %106 = vector.shape_cast %105 : vector<1x32x64xbf16> to vector<32x64xbf16>
    %cst_65 = arith.constant dense<0.000000e+00> : vector<32x64xf32>
    %107 = tpu.matmul %106, %104, %cst_65 {dimension_numbers = #tpu.dot_dimension_numbers<[1], [0], [0], [1], [0, 0, 1, 1], [], []>} : vector<32x64xbf16>, vector<64x64xbf16>, vector<32x64xf32> -> vector<32x64xf32>
    %108 = arith.addf %103, %107 : vector<32x64xf32>
    %c0_66 = arith.constant 0 : index
    %c136 = arith.constant 136 : index
    %109 = vector.load %arg18[%c0_66, %c136] : memref<64x256xbf16, #tpu.memory_space<vmem>>, vector<64x64xbf16>
    %c7 = arith.constant 7 : index
    %c0_67 = arith.constant 0 : index
    %c0_68 = arith.constant 0 : index
    %110 = vector.load %arg11[%c7, %c0_67, %c0_68] : memref<9x32x64xbf16, #tpu.memory_space<vmem>>, vector<1x32x64xbf16>
    %111 = vector.shape_cast %110 : vector<1x32x64xbf16> to vector<32x64xbf16>
    %cst_69 = arith.constant dense<0.000000e+00> : vector<32x64xf32>
    %112 = tpu.matmul %111, %109, %cst_69 {dimension_numbers = #tpu.dot_dimension_numbers<[1], [0], [0], [1], [0, 0, 1, 1], [], []>} : vector<32x64xbf16>, vector<64x64xbf16>, vector<32x64xf32> -> vector<32x64xf32>
    %113 = arith.addf %108, %112 : vector<32x64xf32>
    %c0_70 = arith.constant 0 : index
    %c119_71 = arith.constant 119 : index
    %114 = vector.load %arg18[%c0_70, %c119_71] : memref<64x256xbf16, #tpu.memory_space<vmem>>, vector<64x64xbf16>
    %c0_72 = arith.constant 0 : index
    %c0_73 = arith.constant 0 : index
    %c0_74 = arith.constant 0 : index
    %115 = vector.load %arg11[%c0_72, %c0_73, %c0_74] : memref<9x32x64xbf16, #tpu.memory_space<vmem>>, vector<1x32x64xbf16>
    %116 = vector.shape_cast %115 : vector<1x32x64xbf16> to vector<32x64xbf16>
    %cst_75 = arith.constant dense<0.000000e+00> : vector<32x64xf32>
    %117 = tpu.matmul %116, %114, %cst_75 {dimension_numbers = #tpu.dot_dimension_numbers<[1], [0], [0], [1], [0, 0, 1, 1], [], []>} : vector<32x64xbf16>, vector<64x64xbf16>, vector<32x64xf32> -> vector<32x64xf32>
    %c0_76 = arith.constant 0 : index
    %c127 = arith.constant 127 : index
    %118 = vector.load %arg18[%c0_76, %c127] : memref<64x256xbf16, #tpu.memory_space<vmem>>, vector<64x64xbf16>
    %c3 = arith.constant 3 : index
    %c0_77 = arith.constant 0 : index
    %c0_78 = arith.constant 0 : index
    %119 = vector.load %arg11[%c3, %c0_77, %c0_78] : memref<9x32x64xbf16, #tpu.memory_space<vmem>>, vector<1x32x64xbf16>
    %120 = vector.shape_cast %119 : vector<1x32x64xbf16> to vector<32x64xbf16>
    %cst_79 = arith.constant dense<0.000000e+00> : vector<32x64xf32>
    %121 = tpu.matmul %120, %118, %cst_79 {dimension_numbers = #tpu.dot_dimension_numbers<[1], [0], [0], [1], [0, 0, 1, 1], [], []>} : vector<32x64xbf16>, vector<64x64xbf16>, vector<32x64xf32> -> vector<32x64xf32>
    %122 = arith.addf %117, %121 : vector<32x64xf32>
    %c0_80 = arith.constant 0 : index
    %c135 = arith.constant 135 : index
    %123 = vector.load %arg18[%c0_80, %c135] : memref<64x256xbf16, #tpu.memory_space<vmem>>, vector<64x64xbf16>
    %c6 = arith.constant 6 : index
    %c0_81 = arith.constant 0 : index
    %c0_82 = arith.constant 0 : index
    %124 = vector.load %arg11[%c6, %c0_81, %c0_82] : memref<9x32x64xbf16, #tpu.memory_space<vmem>>, vector<1x32x64xbf16>
    %125 = vector.shape_cast %124 : vector<1x32x64xbf16> to vector<32x64xbf16>
    %cst_83 = arith.constant dense<0.000000e+00> : vector<32x64xf32>
    %126 = tpu.matmul %125, %123, %cst_83 {dimension_numbers = #tpu.dot_dimension_numbers<[1], [0], [0], [1], [0, 0, 1, 1], [], []>} : vector<32x64xbf16>, vector<64x64xbf16>, vector<32x64xf32> -> vector<32x64xf32>
    %127 = arith.addf %122, %126 : vector<32x64xf32>
    %128 = vector.broadcast %98 : vector<1x64xf32> to vector<32x64xf32>
    %129 = arith.mulf %127, %128 : vector<32x64xf32>
    %130 = arith.addf %113, %129 : vector<32x64xf32>
    %c0_84 = arith.constant 0 : index
    %c121 = arith.constant 121 : index
    %131 = vector.load %arg18[%c0_84, %c121] : memref<64x256xbf16, #tpu.memory_space<vmem>>, vector<64x64xbf16>
    %c2 = arith.constant 2 : index
    %c0_85 = arith.constant 0 : index
    %c0_86 = arith.constant 0 : index
    %132 = vector.load %arg11[%c2, %c0_85, %c0_86] : memref<9x32x64xbf16, #tpu.memory_space<vmem>>, vector<1x32x64xbf16>
    %133 = vector.shape_cast %132 : vector<1x32x64xbf16> to vector<32x64xbf16>
    %cst_87 = arith.constant dense<0.000000e+00> : vector<32x64xf32>
    %134 = tpu.matmul %133, %131, %cst_87 {dimension_numbers = #tpu.dot_dimension_numbers<[1], [0], [0], [1], [0, 0, 1, 1], [], []>} : vector<32x64xbf16>, vector<64x64xbf16>, vector<32x64xf32> -> vector<32x64xf32>
    %c0_88 = arith.constant 0 : index
    %c129 = arith.constant 129 : index
    %135 = vector.load %arg18[%c0_88, %c129] : memref<64x256xbf16, #tpu.memory_space<vmem>>, vector<64x64xbf16>
    %c5 = arith.constant 5 : index
    %c0_89 = arith.constant 0 : index
    %c0_90 = arith.constant 0 : index
    %136 = vector.load %arg11[%c5, %c0_89, %c0_90] : memref<9x32x64xbf16, #tpu.memory_space<vmem>>, vector<1x32x64xbf16>
    %137 = vector.shape_cast %136 : vector<1x32x64xbf16> to vector<32x64xbf16>
    %cst_91 = arith.constant dense<0.000000e+00> : vector<32x64xf32>
    %138 = tpu.matmul %137, %135, %cst_91 {dimension_numbers = #tpu.dot_dimension_numbers<[1], [0], [0], [1], [0, 0, 1, 1], [], []>} : vector<32x64xbf16>, vector<64x64xbf16>, vector<32x64xf32> -> vector<32x64xf32>
    %139 = arith.addf %134, %138 : vector<32x64xf32>
    %c0_92 = arith.constant 0 : index
    %c137 = arith.constant 137 : index
    %140 = vector.load %arg18[%c0_92, %c137] : memref<64x256xbf16, #tpu.memory_space<vmem>>, vector<64x64xbf16>
    %c8 = arith.constant 8 : index
    %c0_93 = arith.constant 0 : index
    %c0_94 = arith.constant 0 : index
    %141 = vector.load %arg11[%c8, %c0_93, %c0_94] : memref<9x32x64xbf16, #tpu.memory_space<vmem>>, vector<1x32x64xbf16>
    %142 = vector.shape_cast %141 : vector<1x32x64xbf16> to vector<32x64xbf16>
    %cst_95 = arith.constant dense<0.000000e+00> : vector<32x64xf32>
    %143 = tpu.matmul %142, %140, %cst_95 {dimension_numbers = #tpu.dot_dimension_numbers<[1], [0], [0], [1], [0, 0, 1, 1], [], []>} : vector<32x64xbf16>, vector<64x64xbf16>, vector<32x64xf32> -> vector<32x64xf32>
    %144 = arith.addf %139, %143 : vector<32x64xf32>
    %145 = vector.broadcast %99 : vector<1x64xf32> to vector<32x64xf32>
    %146 = arith.mulf %144, %145 : vector<32x64xf32>
    %147 = arith.addf %130, %146 : vector<32x64xf32>
    %c0_96 = arith.constant 0 : index
    %c120_97 = arith.constant 120 : index
    %148 = vector.load %arg19[%c0_96, %c120_97] : memref<64x256xbf16, #tpu.memory_space<vmem>>, vector<64x64xbf16>
    %c1_98 = arith.constant 1 : index
    %c0_99 = arith.constant 0 : index
    %c0_100 = arith.constant 0 : index
    %149 = vector.load %arg12[%c1_98, %c0_99, %c0_100] : memref<9x32x64xbf16, #tpu.memory_space<vmem>>, vector<1x32x64xbf16>
    %150 = vector.shape_cast %149 : vector<1x32x64xbf16> to vector<32x64xbf16>
    %cst_101 = arith.constant dense<0.000000e+00> : vector<32x64xf32>
    %151 = tpu.matmul %150, %148, %cst_101 {dimension_numbers = #tpu.dot_dimension_numbers<[1], [0], [0], [1], [0, 0, 1, 1], [], []>} : vector<32x64xbf16>, vector<64x64xbf16>, vector<32x64xf32> -> vector<32x64xf32>
    %c0_102 = arith.constant 0 : index
    %c128_103 = arith.constant 128 : index
    %152 = vector.load %arg19[%c0_102, %c128_103] : memref<64x256xbf16, #tpu.memory_space<vmem>>, vector<64x64xbf16>
    %c4_104 = arith.constant 4 : index
    %c0_105 = arith.constant 0 : index
    %c0_106 = arith.constant 0 : index
    %153 = vector.load %arg12[%c4_104, %c0_105, %c0_106] : memref<9x32x64xbf16, #tpu.memory_space<vmem>>, vector<1x32x64xbf16>
    %154 = vector.shape_cast %153 : vector<1x32x64xbf16> to vector<32x64xbf16>
    %cst_107 = arith.constant dense<0.000000e+00> : vector<32x64xf32>
    %155 = tpu.matmul %154, %152, %cst_107 {dimension_numbers = #tpu.dot_dimension_numbers<[1], [0], [0], [1], [0, 0, 1, 1], [], []>} : vector<32x64xbf16>, vector<64x64xbf16>, vector<32x64xf32> -> vector<32x64xf32>
    %156 = arith.addf %151, %155 : vector<32x64xf32>
    %c0_108 = arith.constant 0 : index
    %c136_109 = arith.constant 136 : index
    %157 = vector.load %arg19[%c0_108, %c136_109] : memref<64x256xbf16, #tpu.memory_space<vmem>>, vector<64x64xbf16>
    %c7_110 = arith.constant 7 : index
    %c0_111 = arith.constant 0 : index
    %c0_112 = arith.constant 0 : index
    %158 = vector.load %arg12[%c7_110, %c0_111, %c0_112] : memref<9x32x64xbf16, #tpu.memory_space<vmem>>, vector<1x32x64xbf16>
    %159 = vector.shape_cast %158 : vector<1x32x64xbf16> to vector<32x64xbf16>
    %cst_113 = arith.constant dense<0.000000e+00> : vector<32x64xf32>
    %160 = tpu.matmul %159, %157, %cst_113 {dimension_numbers = #tpu.dot_dimension_numbers<[1], [0], [0], [1], [0, 0, 1, 1], [], []>} : vector<32x64xbf16>, vector<64x64xbf16>, vector<32x64xf32> -> vector<32x64xf32>
    %161 = arith.addf %156, %160 : vector<32x64xf32>
    %c0_114 = arith.constant 0 : index
    %c119_115 = arith.constant 119 : index
    %162 = vector.load %arg19[%c0_114, %c119_115] : memref<64x256xbf16, #tpu.memory_space<vmem>>, vector<64x64xbf16>
    %c0_116 = arith.constant 0 : index
    %c0_117 = arith.constant 0 : index
    %c0_118 = arith.constant 0 : index
    %163 = vector.load %arg12[%c0_116, %c0_117, %c0_118] : memref<9x32x64xbf16, #tpu.memory_space<vmem>>, vector<1x32x64xbf16>
    %164 = vector.shape_cast %163 : vector<1x32x64xbf16> to vector<32x64xbf16>
    %cst_119 = arith.constant dense<0.000000e+00> : vector<32x64xf32>
    %165 = tpu.matmul %164, %162, %cst_119 {dimension_numbers = #tpu.dot_dimension_numbers<[1], [0], [0], [1], [0, 0, 1, 1], [], []>} : vector<32x64xbf16>, vector<64x64xbf16>, vector<32x64xf32> -> vector<32x64xf32>
    %c0_120 = arith.constant 0 : index
    %c127_121 = arith.constant 127 : index
    %166 = vector.load %arg19[%c0_120, %c127_121] : memref<64x256xbf16, #tpu.memory_space<vmem>>, vector<64x64xbf16>
    %c3_122 = arith.constant 3 : index
    %c0_123 = arith.constant 0 : index
    %c0_124 = arith.constant 0 : index
    %167 = vector.load %arg12[%c3_122, %c0_123, %c0_124] : memref<9x32x64xbf16, #tpu.memory_space<vmem>>, vector<1x32x64xbf16>
    %168 = vector.shape_cast %167 : vector<1x32x64xbf16> to vector<32x64xbf16>
    %cst_125 = arith.constant dense<0.000000e+00> : vector<32x64xf32>
    %169 = tpu.matmul %168, %166, %cst_125 {dimension_numbers = #tpu.dot_dimension_numbers<[1], [0], [0], [1], [0, 0, 1, 1], [], []>} : vector<32x64xbf16>, vector<64x64xbf16>, vector<32x64xf32> -> vector<32x64xf32>
    %170 = arith.addf %165, %169 : vector<32x64xf32>
    %c0_126 = arith.constant 0 : index
    %c135_127 = arith.constant 135 : index
    %171 = vector.load %arg19[%c0_126, %c135_127] : memref<64x256xbf16, #tpu.memory_space<vmem>>, vector<64x64xbf16>
    %c6_128 = arith.constant 6 : index
    %c0_129 = arith.constant 0 : index
    %c0_130 = arith.constant 0 : index
    %172 = vector.load %arg12[%c6_128, %c0_129, %c0_130] : memref<9x32x64xbf16, #tpu.memory_space<vmem>>, vector<1x32x64xbf16>
    %173 = vector.shape_cast %172 : vector<1x32x64xbf16> to vector<32x64xbf16>
    %cst_131 = arith.constant dense<0.000000e+00> : vector<32x64xf32>
    %174 = tpu.matmul %173, %171, %cst_131 {dimension_numbers = #tpu.dot_dimension_numbers<[1], [0], [0], [1], [0, 0, 1, 1], [], []>} : vector<32x64xbf16>, vector<64x64xbf16>, vector<32x64xf32> -> vector<32x64xf32>
    %175 = arith.addf %170, %174 : vector<32x64xf32>
    %176 = vector.broadcast %98 : vector<1x64xf32> to vector<32x64xf32>
    %177 = arith.mulf %175, %176 : vector<32x64xf32>
    %178 = arith.addf %161, %177 : vector<32x64xf32>
    %c0_132 = arith.constant 0 : index
    %c121_133 = arith.constant 121 : index
    %179 = vector.load %arg19[%c0_132, %c121_133] : memref<64x256xbf16, #tpu.memory_space<vmem>>, vector<64x64xbf16>
    %c2_134 = arith.constant 2 : index
    %c0_135 = arith.constant 0 : index
    %c0_136 = arith.constant 0 : index
    %180 = vector.load %arg12[%c2_134, %c0_135, %c0_136] : memref<9x32x64xbf16, #tpu.memory_space<vmem>>, vector<1x32x64xbf16>
    %181 = vector.shape_cast %180 : vector<1x32x64xbf16> to vector<32x64xbf16>
    %cst_137 = arith.constant dense<0.000000e+00> : vector<32x64xf32>
    %182 = tpu.matmul %181, %179, %cst_137 {dimension_numbers = #tpu.dot_dimension_numbers<[1], [0], [0], [1], [0, 0, 1, 1], [], []>} : vector<32x64xbf16>, vector<64x64xbf16>, vector<32x64xf32> -> vector<32x64xf32>
    %c0_138 = arith.constant 0 : index
    %c129_139 = arith.constant 129 : index
    %183 = vector.load %arg19[%c0_138, %c129_139] : memref<64x256xbf16, #tpu.memory_space<vmem>>, vector<64x64xbf16>
    %c5_140 = arith.constant 5 : index
    %c0_141 = arith.constant 0 : index
    %c0_142 = arith.constant 0 : index
    %184 = vector.load %arg12[%c5_140, %c0_141, %c0_142] : memref<9x32x64xbf16, #tpu.memory_space<vmem>>, vector<1x32x64xbf16>
    %185 = vector.shape_cast %184 : vector<1x32x64xbf16> to vector<32x64xbf16>
    %cst_143 = arith.constant dense<0.000000e+00> : vector<32x64xf32>
    %186 = tpu.matmul %185, %183, %cst_143 {dimension_numbers = #tpu.dot_dimension_numbers<[1], [0], [0], [1], [0, 0, 1, 1], [], []>} : vector<32x64xbf16>, vector<64x64xbf16>, vector<32x64xf32> -> vector<32x64xf32>
    %187 = arith.addf %182, %186 : vector<32x64xf32>
    %c0_144 = arith.constant 0 : index
    %c137_145 = arith.constant 137 : index
    %188 = vector.load %arg19[%c0_144, %c137_145] : memref<64x256xbf16, #tpu.memory_space<vmem>>, vector<64x64xbf16>
    %c8_146 = arith.constant 8 : index
    %c0_147 = arith.constant 0 : index
    %c0_148 = arith.constant 0 : index
    %189 = vector.load %arg12[%c8_146, %c0_147, %c0_148] : memref<9x32x64xbf16, #tpu.memory_space<vmem>>, vector<1x32x64xbf16>
    %190 = vector.shape_cast %189 : vector<1x32x64xbf16> to vector<32x64xbf16>
    %cst_149 = arith.constant dense<0.000000e+00> : vector<32x64xf32>
    %191 = tpu.matmul %190, %188, %cst_149 {dimension_numbers = #tpu.dot_dimension_numbers<[1], [0], [0], [1], [0, 0, 1, 1], [], []>} : vector<32x64xbf16>, vector<64x64xbf16>, vector<32x64xf32> -> vector<32x64xf32>
    %192 = arith.addf %187, %191 : vector<32x64xf32>
    %193 = vector.broadcast %99 : vector<1x64xf32> to vector<32x64xf32>
    %194 = arith.mulf %192, %193 : vector<32x64xf32>
    %195 = arith.addf %178, %194 : vector<32x64xf32>
    %c0_150 = arith.constant 0 : index
    %c0_151 = arith.constant 0 : index
    %196 = vector.load %arg13[%c0_150, %c0_151] : memref<32x2xf32, #tpu.memory_space<vmem>>, vector<32x1xf32>
    %197 = vector.broadcast %196 : vector<32x1xf32> to vector<32x64xf32>
    %198 = arith.mulf %147, %197 : vector<32x64xf32>
    %c0_152 = arith.constant 0 : index
    %c0_153 = arith.constant 0 : index
    %199 = vector.load %arg14[%c0_152, %c0_153] : memref<32x2xf32, #tpu.memory_space<vmem>>, vector<32x1xf32>
    %200 = vector.broadcast %199 : vector<32x1xf32> to vector<32x64xf32>
    %201 = arith.addf %198, %200 : vector<32x64xf32>
    %cst_154 = arith.constant 0.000000e+00 : f32
    %202 = vector.broadcast %cst_154 : f32 to vector<32x64xf32>
    %203 = arith.maximumf %201, %202 : vector<32x64xf32>
    %c0_155 = arith.constant 0 : index
    %c0_156 = arith.constant 0 : index
    %c0_157 = arith.constant 0 : index
    %204 = vector.load %arg16[%c0_155, %c0_156, %c0_157] : memref<1x32x64xf32, #tpu.memory_space<vmem>>, vector<1x32x64xf32>
    %205 = vector.shape_cast %204 : vector<1x32x64xf32> to vector<32x64xf32>
    %206 = vector.shape_cast %203 : vector<32x64xf32> to vector<1x32x64xf32>
    tpu.vector_store %arg16[%c0_155, %c0_156, %c0_157], %206 {strides = array<i32>} : memref<1x32x64xf32, #tpu.memory_space<vmem>>, vector<1x32x64xf32>,
    %c0_158 = arith.constant 0 : index
    %c1_159 = arith.constant 1 : index
    %207 = vector.load %arg13[%c0_158, %c1_159] : memref<32x2xf32, #tpu.memory_space<vmem>>, vector<32x1xf32>
    %208 = vector.broadcast %207 : vector<32x1xf32> to vector<32x64xf32>
    %209 = arith.mulf %195, %208 : vector<32x64xf32>
    %c0_160 = arith.constant 0 : index
    %c1_161 = arith.constant 1 : index
    %210 = vector.load %arg14[%c0_160, %c1_161] : memref<32x2xf32, #tpu.memory_space<vmem>>, vector<32x1xf32>
    %211 = vector.broadcast %210 : vector<32x1xf32> to vector<32x64xf32>
    %212 = arith.addf %209, %211 : vector<32x64xf32>
    %cst_162 = arith.constant 0.000000e+00 : f32
    %213 = vector.broadcast %cst_162 : f32 to vector<32x64xf32>
    %214 = arith.maximumf %212, %213 : vector<32x64xf32>
    %c0_163 = arith.constant 0 : index
    %c0_164 = arith.constant 0 : index
    %c0_165 = arith.constant 0 : index
    %215 = vector.load %arg17[%c0_163, %c0_164, %c0_165] : memref<1x32x64xf32, #tpu.memory_space<vmem>>, vector<1x32x64xf32>
    %216 = vector.shape_cast %215 : vector<1x32x64xf32> to vector<32x64xf32>
    %217 = vector.shape_cast %214 : vector<32x64xf32> to vector<1x32x64xf32>
    tpu.vector_store %arg17[%c0_163, %c0_164, %c0_165], %217 {strides = array<i32>} : memref<1x32x64xf32, #tpu.memory_space<vmem>>, vector<1x32x64xf32>,
    return
  }
  func.func @transform_0(%arg0: i32) -> (i32, i32, i32) {
    %c0_i32 = arith.constant 0 : i32
    %c0_i32_0 = arith.constant 0 : i32
    %c0_i32_1 = arith.constant 0 : i32
    return %arg0, %c0_i32, %c0_i32_0 : i32, i32, i32
  }
  func.func @transform_1(%arg0: i32) -> (i32, i32, i32) {
    %c0_i32 = arith.constant 0 : i32
    %c0_i32_0 = arith.constant 0 : i32
    %c0_i32_1 = arith.constant 0 : i32
    return %arg0, %c0_i32, %c0_i32_0 : i32, i32, i32
  }
  func.func @transform_2(%arg0: i32) -> (i32, i32) {
    %c0_i32 = arith.constant 0 : i32
    %c0_i32_0 = arith.constant 0 : i32
    %c0_i32_1 = arith.constant 0 : i32
    return %c0_i32, %c0_i32_0 : i32, i32
  }
  func.func @transform_3(%arg0: i32) -> (i32, i32) {
    %c0_i32 = arith.constant 0 : i32
    %c0_i32_0 = arith.constant 0 : i32
    %c0_i32_1 = arith.constant 0 : i32
    return %c0_i32, %c0_i32_0 : i32, i32
  }
  func.func @transform_4(%arg0: i32) -> (i32, i32) {
    %c0_i32 = arith.constant 0 : i32
    %c0_i32_0 = arith.constant 0 : i32
    %c0_i32_1 = arith.constant 0 : i32
    return %c0_i32, %c0_i32_0 : i32, i32
  }
  func.func @transform_5(%arg0: i32) -> (i32, i32) {
    %c0_i32 = arith.constant 0 : i32
    %c0_i32_0 = arith.constant 0 : i32
    %c0_i32_1 = arith.constant 0 : i32
    return %c0_i32, %c0_i32_0 : i32, i32
  }
  func.func @transform_6(%arg0: i32) -> (i32, i32) {
    %c0_i32 = arith.constant 0 : i32
    %c0_i32_0 = arith.constant 0 : i32
    %c0_i32_1 = arith.constant 0 : i32
    return %c0_i32, %c0_i32_0 : i32, i32
  }
  func.func @transform_7(%arg0: i32) -> (i32, i32) {
    %c0_i32 = arith.constant 0 : i32
    %c0_i32_0 = arith.constant 0 : i32
    %c0_i32_1 = arith.constant 0 : i32
    return %c0_i32, %c0_i32_0 : i32, i32
  }
  func.func @transform_8(%arg0: i32) -> (i32, i32) {
    %c0_i32 = arith.constant 0 : i32
    %c0_i32_0 = arith.constant 0 : i32
    %c0_i32_1 = arith.constant 0 : i32
    return %c0_i32, %c0_i32_0 : i32, i32
  }
  func.func @transform_9(%arg0: i32) -> (i32, i32) {
    %c0_i32 = arith.constant 0 : i32
    %c0_i32_0 = arith.constant 0 : i32
    %c0_i32_1 = arith.constant 0 : i32
    return %c0_i32, %c0_i32_0 : i32, i32
  }
  func.func @transform_10(%arg0: i32) -> (i32, i32, i32) {
    %c0_i32 = arith.constant 0 : i32
    %c0_i32_0 = arith.constant 0 : i32
    %c0_i32_1 = arith.constant 0 : i32
    %c0_i32_2 = arith.constant 0 : i32
    return %c0_i32, %c0_i32_0, %c0_i32_1 : i32, i32, i32
  }
  func.func @transform_11(%arg0: i32) -> (i32, i32, i32) {
    %c0_i32 = arith.constant 0 : i32
    %c0_i32_0 = arith.constant 0 : i32
    %c0_i32_1 = arith.constant 0 : i32
    %c0_i32_2 = arith.constant 0 : i32
    return %c0_i32, %c0_i32_0, %c0_i32_1 : i32, i32, i32
  }
  func.func @transform_12(%arg0: i32) -> (i32, i32) {
    %c0_i32 = arith.constant 0 : i32
    %c0_i32_0 = arith.constant 0 : i32
    %c0_i32_1 = arith.constant 0 : i32
    return %c0_i32, %c0_i32_0 : i32, i32
  }
  func.func @transform_13(%arg0: i32) -> (i32, i32) {
    %c0_i32 = arith.constant 0 : i32
    %c0_i32_0 = arith.constant 0 : i32
    %c0_i32_1 = arith.constant 0 : i32
    return %c0_i32, %c0_i32_0 : i32, i32
  }
  func.func @transform_14(%arg0: i32) -> (i32, i32) {
    %c0_i32 = arith.constant 0 : i32
    %c0_i32_0 = arith.constant 0 : i32
    %c0_i32_1 = arith.constant 0 : i32
    return %c0_i32, %c0_i32_0 : i32, i32
  }
  func.func @transform_15(%arg0: i32) -> (i32, i32, i32) {
    %c0_i32 = arith.constant 0 : i32
    %c0_i32_0 = arith.constant 0 : i32
    %c0_i32_1 = arith.constant 0 : i32
    return %arg0, %c0_i32, %c0_i32_0 : i32, i32, i32
  }
  func.func @transform_16(%arg0: i32) -> (i32, i32, i32) {
    %c0_i32 = arith.constant 0 : i32
    %c0_i32_0 = arith.constant 0 : i32
    %c0_i32_1 = arith.constant 0 : i32
    return %arg0, %c0_i32, %c0_i32_0 : i32, i32, i32
  }
}

</mosaic_0001>

<llo_original>
// kernel: coattention_forward.1
$region0: #{coattention_forward.1}
  #allocation0 [shape = 'u32[]', space=smem, size = 0x4, offset = 0x4, fixed_abs, tag = 'smem constant byte address 0x4 - core index']
  #allocation1 [shape = 'u32[144,128]{1,0:T(1,128)}', space=vmem, size = 0x12000, scoped, tag = 'internal scratch']
  #allocation2 [shape = 'bf16[64,256]{1,0:T(16,128)(2,1)}', space=vmem, size = 0x8000, scoped, tag = 'scratch operand']
  #allocation3 [shape = 'bf16[64,256]{1,0:T(16,128)(2,1)}', space=vmem, size = 0x8000, scoped, tag = 'scratch operand']
  %s0 = inlined_call_operand.vmem [shape: f32[2,32,64], index: 0, kind: input, shape index: {}]
  %s1 = inlined_call_operand.vmem [shape: f32[2,32,64], index: 1, kind: input, shape index: {}]
  %s2 = inlined_call_operand.vmem [shape: bf16[32,32], index: 2, kind: input, shape index: {}]
  %s3 = inlined_call_operand.vmem [shape: bf16[2,32], index: 3, kind: input, shape index: {}]
  %s4 = inlined_call_operand.vmem [shape: bf16[2,32], index: 4, kind: input, shape index: {}]
  %s5 = inlined_call_operand.vmem [shape: bf16[32,32], index: 5, kind: input, shape index: {}]
  %s6 = inlined_call_operand.vmem [shape: bf16[32,32], index: 6, kind: input, shape index: {}]
  %s7 = inlined_call_operand.vmem [shape: f32[32,1], index: 7, kind: input, shape index: {}]
  %s8 = inlined_call_operand.vmem [shape: bf16[64,32], index: 8, kind: input, shape index: {}]
  %s9 = inlined_call_operand.vmem [shape: f32[64,1], index: 9, kind: input, shape index: {}]
  %s10 = inlined_call_operand.vmem [shape: bf16[9,32,64], index: 10, kind: input, shape index: {}]
  %s11 = inlined_call_operand.vmem [shape: bf16[9,32,64], index: 11, kind: input, shape index: {}]
  %s12 = inlined_call_operand.vmem [shape: f32[32,2], index: 12, kind: input, shape index: {}]
  %s13 = inlined_call_operand.vmem [shape: f32[32,2], index: 13, kind: input, shape index: {}]
  %s14 = inlined_call_operand.vmem [shape: f32[2,64], index: 14, kind: input, shape index: {}]
  %s15 = inlined_call_operand.vmem [shape: f32[2,32,64], index: 15, kind: output, shape index: {0}]
  %s16 = inlined_call_operand.vmem [shape: f32[2,32,64], index: 16, kind: output, shape index: {1}]
  %17 = xla_tuple %s15, %s16
  %s18 = sld [smem:[#allocation0]]
  $region101: #{coattention_forward.1} parent=0
    _
  %s20 = ssub.s32 1, %s18
  %s21 = scalar_select 0, %s20, %s18
  loop: start=0, step=1, limit=4
  $region2: #{coattention_forward.1} parent=0 // loop_pre_header
    _
  $region3: #{coattention_forward.1} parent=0 // loop_header
    %s23 = sphi 0, %s27
    %p24 = scmp.ge.s32.totalorder %s23, 4
    %s33 = sphi 0, %s35
    %s36 = sphi 0, %s33
    %s37 = sphi 0, %s36
    %s53 = sphi 0, %s37
    %s59 = sphi 0, %s61
    %s62 = sphi 0, %s59
    %s63 = sphi 0, %s62
    %s79 = sphi 0, %s63
    %s83 = sphi 0, %s83
    %s85 = sphi 0, %s83
    %s86 = sphi 0, %s85
    %s100 = sphi 0, %s86
    %s104 = sphi 0, %s104
    %s106 = sphi 0, %s104
    %s107 = sphi 0, %s106
    %s121 = sphi 0, %s107
    %s125 = sphi 0, %s125
    %s127 = sphi 0, %s125
    %s128 = sphi 0, %s127
    %s142 = sphi 0, %s128
    %s146 = sphi 0, %s146
    %s148 = sphi 0, %s146
    %s149 = sphi 0, %s148
    %s163 = sphi 0, %s149
    %s167 = sphi 0, %s167
    %s169 = sphi 0, %s167
    %s170 = sphi 0, %s169
    %s184 = sphi 0, %s170
    %s188 = sphi 0, %s188
    %s190 = sphi 0, %s188
    %s191 = sphi 0, %s190
    %s205 = sphi 0, %s191
    %s209 = sphi 0, %s209
    %s211 = sphi 0, %s209
    %s212 = sphi 0, %s211
    %s226 = sphi 0, %s212
    %s230 = sphi 0, %s230
    %s232 = sphi 0, %s230
    %s233 = sphi 0, %s232
    %s247 = sphi 0, %s233
    %s251 = sphi 0, %s251
    %s253 = sphi 0, %s251
    %s254 = sphi 0, %s253
    %s268 = sphi 0, %s254
    %s272 = sphi 0, %s272
    %s274 = sphi 0, %s272
    %s275 = sphi 0, %s274
    %s289 = sphi 0, %s275
    %s293 = sphi 0, %s293
    %s295 = sphi 0, %s293
    %s296 = sphi 0, %s295
    %s310 = sphi 0, %s296
    %s314 = sphi 0, %s314
    %s316 = sphi 0, %s314
    %s317 = sphi 0, %s316
    %s331 = sphi 0, %s317
    %s335 = sphi 0, %s335
    %s337 = sphi 0, %s335
    %s338 = sphi 0, %s337
    %s352 = sphi 0, %s338
    %s358 = sphi 0, %s360
    %s361 = sphi 0, %s358
    %s362 = sphi 0, %s361
    %s378 = sphi 0, %s362
    %s384 = sphi 0, %s386
    %s387 = sphi 0, %s384
    %s388 = sphi 0, %s387
    %s404 = sphi 0, %s388
  $region4: #{coattention_forward.1} parent=0 // loop_header_branch
    %26 = sbr.rel (%p24) target = $region8
  $region5: #{coattention_forward.1} parent=0 // loop_body
    %s28 = ssub.s32 %s23, 1
    %s29 = ssub.s32 %s23, 2
    %s30 = sadd.s32 %s23, 1
    %s31 = ssub.s32 %s23, %s30
    %p32 = scmp.eq.s32.totalorder %s31, 0
    %s34 = sadd.s32 %s33, 1
    %s35 = scalar_select %p32, %s33, %s34
    %p38 = pneg %p32
    %p39 = scmp.eq.s32.totalorder %s23, 1
    %p40 = por %p38, %p39
    %p41 = scmp.ne.s32.totalorder %s33, %s36
    %p42 = scmp.eq.s32.totalorder %s23, 0
    %p43 = por %p41, %p42
    %p44 = scmp.ne.s32.totalorder %s33, %s36
    %p45 = scmp.eq.s32.totalorder %s28, 1
    %p46 = por %p44, %p45
    %p47 = scmp.ne.s32.totalorder %s36, %s37
    %p48 = scmp.eq.s32.totalorder %s28, 0
    %p49 = por %p47, %p48
    %p50 = scmp.ne.s32.totalorder %s36, %s37
    %p51 = scmp.eq.s32.totalorder %s29, 1
    %p52 = por %p50, %p51
    %p54 = scmp.ne.s32.totalorder %s37, %s53
    %p55 = scmp.eq.s32.totalorder %s29, 0
    %p56 = por %p54, %p55
    %s57 = ssub.s32 %s23, %s30
    %p58 = scmp.eq.s32.totalorder %s57, 0
    %s60 = sadd.s32 %s59, 1
    %s61 = scalar_select %p58, %s59, %s60
    %p64 = pneg %p58
    %p65 = scmp.eq.s32.totalorder %s23, 1
    %p66 = por %p64, %p65
    %p67 = scmp.ne.s32.totalorder %s59, %s62
    %p68 = scmp.eq.s32.totalorder %s23, 0
    %p69 = por %p67, %p68
    %p70 = scmp.ne.s32.totalorder %s59, %s62
    %p71 = scmp.eq.s32.totalorder %s28, 1
    %p72 = por %p70, %p71
    %p73 = scmp.ne.s32.totalorder %s62, %s63
    %p74 = scmp.eq.s32.totalorder %s28, 0
    %p75 = por %p73, %p74
    %p76 = scmp.ne.s32.totalorder %s62, %s63
    %p77 = scmp.eq.s32.totalorder %s29, 1
    %p78 = por %p76, %p77
    %p80 = scmp.ne.s32.totalorder %s63, %s79
    %p81 = scmp.eq.s32.totalorder %s29, 0
    %p82 = por %p80, %p81
    %s84 = sadd.s32 %s83, 1
    %p87 = scmp.eq.s32.totalorder %s23, 1
    %p88 = scmp.ne.s32.totalorder %s83, %s85
    %p89 = scmp.eq.s32.totalorder %s23, 0
    %p90 = por %p88, %p89
    %p91 = scmp.ne.s32.totalorder %s83, %s85
    %p92 = scmp.eq.s32.totalorder %s28, 1
    %p93 = por %p91, %p92
    %p94 = scmp.ne.s32.totalorder %s85, %s86
    %p95 = scmp.eq.s32.totalorder %s28, 0
    %p96 = por %p94, %p95
    %p97 = scmp.ne.s32.totalorder %s85, %s86
    %p98 = scmp.eq.s32.totalorder %s29, 1
    %p99 = por %p97, %p98
    %p101 = scmp.ne.s32.totalorder %s86, %s100
    %p102 = scmp.eq.s32.totalorder %s29, 0
    %p103 = por %p101, %p102
    %s105 = sadd.s32 %s104, 1
    %p108 = scmp.eq.s32.totalorder %s23, 1
    %p109 = scmp.ne.s32.totalorder %s104, %s106
    %p110 = scmp.eq.s32.totalorder %s23, 0
    %p111 = por %p109, %p110
    %p112 = scmp.ne.s32.totalorder %s104, %s106
    %p113 = scmp.eq.s32.totalorder %s28, 1
    %p114 = por %p112, %p113
    %p115 = scmp.ne.s32.totalorder %s106, %s107
    %p116 = scmp.eq.s32.totalorder %s28, 0
    %p117 = por %p115, %p116
    %p118 = scmp.ne.s32.totalorder %s106, %s107
    %p119 = scmp.eq.s32.totalorder %s29, 1
    %p120 = por %p118, %p119
    %p122 = scmp.ne.s32.totalorder %s107, %s121
    %p123 = scmp.eq.s32.totalorder %s29, 0
    %p124 = por %p122, %p123
    %s126 = sadd.s32 %s125, 1
    %p129 = scmp.eq.s32.totalorder %s23, 1
    %p130 = scmp.ne.s32.totalorder %s125, %s127
    %p131 = scmp.eq.s32.totalorder %s23, 0
    %p132 = por %p130, %p131
    %p133 = scmp.ne.s32.totalorder %s125, %s127
    %p134 = scmp.eq.s32.totalorder %s28, 1
    %p135 = por %p133, %p134
    %p136 = scmp.ne.s32.totalorder %s127, %s128
    %p137 = scmp.eq.s32.totalorder %s28, 0
    %p138 = por %p136, %p137
    %p139 = scmp.ne.s32.totalorder %s127, %s128
    %p140 = scmp.eq.s32.totalorder %s29, 1
    %p141 = por %p139, %p140
    %p143 = scmp.ne.s32.totalorder %s128, %s142
    %p144 = scmp.eq.s32.totalorder %s29, 0
    %p145 = por %p143, %p144
    %s147 = sadd.s32 %s146, 1
    %p150 = scmp.eq.s32.totalorder %s23, 1
    %p151 = scmp.ne.s32.totalorder %s146, %s148
    %p152 = scmp.eq.s32.totalorder %s23, 0
    %p153 = por %p151, %p152
    %p154 = scmp.ne.s32.totalorder %s146, %s148
    %p155 = scmp.eq.s32.totalorder %s28, 1
    %p156 = por %p154, %p155
    %p157 = scmp.ne.s32.totalorder %s148, %s149
    %p158 = scmp.eq.s32.totalorder %s28, 0
    %p159 = por %p157, %p158
    %p160 = scmp.ne.s32.totalorder %s148, %s149
    %p161 = scmp.eq.s32.totalorder %s29, 1
    %p162 = por %p160, %p161
    %p164 = scmp.ne.s32.totalorder %s149, %s163
    %p165 = scmp.eq.s32.totalorder %s29, 0
    %p166 = por %p164, %p165
    %s168 = sadd.s32 %s167, 1
    %p171 = scmp.eq.s32.totalorder %s23, 1
    %p172 = scmp.ne.s32.totalorder %s167, %s169
    %p173 = scmp.eq.s32.totalorder %s23, 0
    %p174 = por %p172, %p173
    %p175 = scmp.ne.s32.totalorder %s167, %s169
    %p176 = scmp.eq.s32.totalorder %s28, 1
    %p177 = por %p175, %p176
    %p178 = scmp.ne.s32.totalorder %s169, %s170
    %p179 = scmp.eq.s32.totalorder %s28, 0
    %p180 = por %p178, %p179
    %p181 = scmp.ne.s32.totalorder %s169, %s170
    %p182 = scmp.eq.s32.totalorder %s29, 1
    %p183 = por %p181, %p182
    %p185 = scmp.ne.s32.totalorder %s170, %s184
    %p186 = scmp.eq.s32.totalorder %s29, 0
    %p187 = por %p185, %p186
    %s189 = sadd.s32 %s188, 1
    %p192 = scmp.eq.s32.totalorder %s23, 1
    %p193 = scmp.ne.s32.totalorder %s188, %s190
    %p194 = scmp.eq.s32.totalorder %s23, 0
    %p195 = por %p193, %p194
    %p196 = scmp.ne.s32.totalorder %s188, %s190
    %p197 = scmp.eq.s32.totalorder %s28, 1
    %p198 = por %p196, %p197
    %p199 = scmp.ne.s32.totalorder %s190, %s191
    %p200 = scmp.eq.s32.totalorder %s28, 0
    %p201 = por %p199, %p200
    %p202 = scmp.ne.s32.totalorder %s190, %s191
    %p203 = scmp.eq.s32.totalorder %s29, 1
    %p204 = por %p202, %p203
    %p206 = scmp.ne.s32.totalorder %s191, %s205
    %p207 = scmp.eq.s32.totalorder %s29, 0
    %p208 = por %p206, %p207
    %s210 = sadd.s32 %s209, 1
    %p213 = scmp.eq.s32.totalorder %s23, 1
    %p214 = scmp.ne.s32.totalorder %s209, %s211
    %p215 = scmp.eq.s32.totalorder %s23, 0
    %p216 = por %p214, %p215
    %p217 = scmp.ne.s32.totalorder %s209, %s211
    %p218 = scmp.eq.s32.totalorder %s28, 1
    %p219 = por %p217, %p218
    %p220 = scmp.ne.s32.totalorder %s211, %s212
    %p221 = scmp.eq.s32.totalorder %s28, 0
    %p222 = por %p220, %p221
    %p223 = scmp.ne.s32.totalorder %s211, %s212
    %p224 = scmp.eq.s32.totalorder %s29, 1
    %p225 = por %p223, %p224
    %p227 = scmp.ne.s32.totalorder %s212, %s226
    %p228 = scmp.eq.s32.totalorder %s29, 0
    %p229 = por %p227, %p228
    %s231 = sadd.s32 %s230, 1
    %p234 = scmp.eq.s32.totalorder %s23, 1
    %p235 = scmp.ne.s32.totalorder %s230, %s232
    %p236 = scmp.eq.s32.totalorder %s23, 0
    %p237 = por %p235, %p236
    %p238 = scmp.ne.s32.totalorder %s230, %s232
    %p239 = scmp.eq.s32.totalorder %s28, 1
    %p240 = por %p238, %p239
    %p241 = scmp.ne.s32.totalorder %s232, %s233
    %p242 = scmp.eq.s32.totalorder %s28, 0
    %p243 = por %p241, %p242
    %p244 = scmp.ne.s32.totalorder %s232, %s233
    %p245 = scmp.eq.s32.totalorder %s29, 1
    %p246 = por %p244, %p245
    %p248 = scmp.ne.s32.totalorder %s233, %s247
    %p249 = scmp.eq.s32.totalorder %s29, 0
    %p250 = por %p248, %p249
    %s252 = sadd.s32 %s251, 1
    %p255 = scmp.eq.s32.totalorder %s23, 1
    %p256 = scmp.ne.s32.totalorder %s251, %s253
    %p257 = scmp.eq.s32.totalorder %s23, 0
    %p258 = por %p256, %p257
    %p259 = scmp.ne.s32.totalorder %s251, %s253
    %p260 = scmp.eq.s32.totalorder %s28, 1
    %p261 = por %p259, %p260
    %p262 = scmp.ne.s32.totalorder %s253, %s254
    %p263 = scmp.eq.s32.totalorder %s28, 0
    %p264 = por %p262, %p263
    %p265 = scmp.ne.s32.totalorder %s253, %s254
    %p266 = scmp.eq.s32.totalorder %s29, 1
    %p267 = por %p265, %p266
    %p269 = scmp.ne.s32.totalorder %s254, %s268
    %p270 = scmp.eq.s32.totalorder %s29, 0
    %p271 = por %p269, %p270
    %s273 = sadd.s32 %s272, 1
    %p276 = scmp.eq.s32.totalorder %s23, 1
    %p277 = scmp.ne.s32.totalorder %s272, %s274
    %p278 = scmp.eq.s32.totalorder %s23, 0
    %p279 = por %p277, %p278
    %p280 = scmp.ne.s32.totalorder %s272, %s274
    %p281 = scmp.eq.s32.totalorder %s28, 1
    %p282 = por %p280, %p281
    %p283 = scmp.ne.s32.totalorder %s274, %s275
    %p284 = scmp.eq.s32.totalorder %s28, 0
    %p285 = por %p283, %p284
    %p286 = scmp.ne.s32.totalorder %s274, %s275
    %p287 = scmp.eq.s32.totalorder %s29, 1
    %p288 = por %p286, %p287
    %p290 = scmp.ne.s32.totalorder %s275, %s289
    %p291 = scmp.eq.s32.totalorder %s29, 0
    %p292 = por %p290, %p291
    %s294 = sadd.s32 %s293, 1
    %p297 = scmp.eq.s32.totalorder %s23, 1
    %p298 = scmp.ne.s32.totalorder %s293, %s295
    %p299 = scmp.eq.s32.totalorder %s23, 0
    %p300 = por %p298, %p299
    %p301 = scmp.ne.s32.totalorder %s293, %s295
    %p302 = scmp.eq.s32.totalorder %s28, 1
    %p303 = por %p301, %p302
    %p304 = scmp.ne.s32.totalorder %s295, %s296
    %p305 = scmp.eq.s32.totalorder %s28, 0
    %p306 = por %p304, %p305
    %p307 = scmp.ne.s32.totalorder %s295, %s296
    %p308 = scmp.eq.s32.totalorder %s29, 1
    %p309 = por %p307, %p308
    %p311 = scmp.ne.s32.totalorder %s296, %s310
    %p312 = scmp.eq.s32.totalorder %s29, 0
    %p313 = por %p311, %p312
    %s315 = sadd.s32 %s314, 1
    %p318 = scmp.eq.s32.totalorder %s23, 1
    %p319 = scmp.ne.s32.totalorder %s314, %s316
    %p320 = scmp.eq.s32.totalorder %s23, 0
    %p321 = por %p319, %p320
    %p322 = scmp.ne.s32.totalorder %s314, %s316
    %p323 = scmp.eq.s32.totalorder %s28, 1
    %p324 = por %p322, %p323
    %p325 = scmp.ne.s32.totalorder %s316, %s317
    %p326 = scmp.eq.s32.totalorder %s28, 0
    %p327 = por %p325, %p326
    %p328 = scmp.ne.s32.totalorder %s316, %s317
    %p329 = scmp.eq.s32.totalorder %s29, 1
    %p330 = por %p328, %p329
    %p332 = scmp.ne.s32.totalorder %s317, %s331
    %p333 = scmp.eq.s32.totalorder %s29, 0
    %p334 = por %p332, %p333
    %s336 = sadd.s32 %s335, 1
    %p339 = scmp.eq.s32.totalorder %s23, 1
    %p340 = scmp.ne.s32.totalorder %s335, %s337
    %p341 = scmp.eq.s32.totalorder %s23, 0
    %p342 = por %p340, %p341
    %p343 = scmp.ne.s32.totalorder %s335, %s337
    %p344 = scmp.eq.s32.totalorder %s28, 1
    %p345 = por %p343, %p344
    %p346 = scmp.ne.s32.totalorder %s337, %s338
    %p347 = scmp.eq.s32.totalorder %s28, 0
    %p348 = por %p346, %p347
    %p349 = scmp.ne.s32.totalorder %s337, %s338
    %p350 = scmp.eq.s32.totalorder %s29, 1
    %p351 = por %p349, %p350
    %p353 = scmp.ne.s32.totalorder %s338, %s352
    %p354 = scmp.eq.s32.totalorder %s29, 0
    %p355 = por %p353, %p354
    %s356 = ssub.s32 %s23, %s30
    %p357 = scmp.eq.s32.totalorder %s356, 0
    %s359 = sadd.s32 %s358, 1
    %s360 = scalar_select %p357, %s358, %s359
    %p363 = pneg %p357
    %p364 = scmp.eq.s32.totalorder %s23, 1
    %p365 = por %p363, %p364
    %p366 = scmp.ne.s32.totalorder %s358, %s361
    %p367 = scmp.eq.s32.totalorder %s23, 0
    %p368 = por %p366, %p367
    %p369 = scmp.ne.s32.totalorder %s358, %s361
    %p370 = scmp.eq.s32.totalorder %s28, 1
    %p371 = por %p369, %p370
    %p372 = scmp.ne.s32.totalorder %s361, %s362
    %p373 = scmp.eq.s32.totalorder %s28, 0
    %p374 = por %p372, %p373
    %p375 = scmp.ne.s32.totalorder %s361, %s362
    %p376 = scmp.eq.s32.totalorder %s29, 1
    %p377 = por %p375, %p376
    %p379 = scmp.ne.s32.totalorder %s362, %s378
    %p380 = scmp.eq.s32.totalorder %s29, 0
    %p381 = por %p379, %p380
    %s382 = ssub.s32 %s23, %s30
    %p383 = scmp.eq.s32.totalorder %s382, 0
    %s385 = sadd.s32 %s384, 1
    %s386 = scalar_select %p383, %s384, %s385
    %p389 = pneg %p383
    %p390 = scmp.eq.s32.totalorder %s23, 1
    %p391 = por %p389, %p390
    %p392 = scmp.ne.s32.totalorder %s384, %s387
    %p393 = scmp.eq.s32.totalorder %s23, 0
    %p394 = por %p392, %p393
    %p395 = scmp.ne.s32.totalorder %s384, %s387
    %p396 = scmp.eq.s32.totalorder %s28, 1
    %p397 = por %p395, %p396
    %p398 = scmp.ne.s32.totalorder %s387, %s388
    %p399 = scmp.eq.s32.totalorder %s28, 0
    %p400 = por %p398, %p399
    %p401 = scmp.ne.s32.totalorder %s387, %s388
    %p402 = scmp.eq.s32.totalorder %s29, 1
    %p403 = por %p401, %p402
    %p405 = scmp.ne.s32.totalorder %s388, %s404
    %p406 = scmp.eq.s32.totalorder %s29, 0
    %p407 = por %p405, %p406
    %p408 = scmp.le.s32.totalorder 1, %s23
    %p409 = scmp.lt.s32.totalorder %s23, 3
    %p410 = pnand %p408, %p409
    %p411 = pneg %p410
    // Predicated region
    $region9: #{coattention_forward.1} parent=5 // pred_check
      _
    $region10: #{coattention_forward.1} parent=5 // pred_check_branch
      %413 = sbr.rel (%p410) target = $region12
    $region11: #{coattention_forward.1} parent=5 // pred_region
      %s414 = ssub.s32 %s23, 1
      // Predicated region
      $region13: #{coattention_forward.1} parent=11 // pred_check
        %p415 = pneg %p96
      $region14: #{coattention_forward.1} parent=11 // pred_check_branch
        %417 = sbr.rel (%p415) target = $region16
      $region15: #{coattention_forward.1} parent=11 // pred_region
        _
      $region16: #{coattention_forward.1} parent=11 // pred_fallthru
        _
      // Predicated region
      $region17: #{coattention_forward.1} parent=11 // pred_check
        %p418 = pneg %p117
      $region18: #{coattention_forward.1} parent=11 // pred_check_branch
        %420 = sbr.rel (%p418) target = $region20
      $region19: #{coattention_forward.1} parent=11 // pred_region
        _
      $region20: #{coattention_forward.1} parent=11 // pred_fallthru
        _
      // Predicated region
      $region21: #{coattention_forward.1} parent=11 // pred_check
        %p421 = pneg %p138
      $region22: #{coattention_forward.1} parent=11 // pred_check_branch
        %423 = sbr.rel (%p421) target = $region24
      $region23: #{coattention_forward.1} parent=11 // pred_region
        _
      $region24: #{coattention_forward.1} parent=11 // pred_fallthru
        _
      // Predicated region
      $region25: #{coattention_forward.1} parent=11 // pred_check
        %p424 = pneg %p159
      $region26: #{coattention_forward.1} parent=11 // pred_check_branch
        %426 = sbr.rel (%p424) target = $region28
      $region27: #{coattention_forward.1} parent=11 // pred_region
        _
      $region28: #{coattention_forward.1} parent=11 // pred_fallthru
        _
      // Predicated region
      $region29: #{coattention_forward.1} parent=11 // pred_check
        %p427 = pneg %p180
      $region30: #{coattention_forward.1} parent=11 // pred_check_branch
        %429 = sbr.rel (%p427) target = $region32
      $region31: #{coattention_forward.1} parent=11 // pred_region
        _
      $region32: #{coattention_forward.1} parent=11 // pred_fallthru
        _
      // Predicated region
      $region33: #{coattention_forward.1} parent=11 // pred_check
        %p430 = pneg %p201
      $region34: #{coattention_forward.1} parent=11 // pred_check_branch
        %432 = sbr.rel (%p430) target = $region36
      $region35: #{coattention_forward.1} parent=11 // pred_region
        _
      $region36: #{coattention_forward.1} parent=11 // pred_fallthru
        _
      // Predicated region
      $region37: #{coattention_forward.1} parent=11 // pred_check
        %p433 = pneg %p222
      $region38: #{coattention_forward.1} parent=11 // pred_check_branch
        %435 = sbr.rel (%p433) target = $region40
      $region39: #{coattention_forward.1} parent=11 // pred_region
        _
      $region40: #{coattention_forward.1} parent=11 // pred_fallthru
        _
      // Predicated region
      $region41: #{coattention_forward.1} parent=11 // pred_check
        %p436 = pneg %p243
      $region42: #{coattention_forward.1} parent=11 // pred_check_branch
        %438 = sbr.rel (%p436) target = $region44
      $region43: #{coattention_forward.1} parent=11 // pred_region
        _
      $region44: #{coattention_forward.1} parent=11 // pred_fallthru
        _
      // Predicated region
      $region45: #{coattention_forward.1} parent=11 // pred_check
        %p439 = pneg %p264
      $region46: #{coattention_forward.1} parent=11 // pred_check_branch
        %441 = sbr.rel (%p439) target = $region48
      $region47: #{coattention_forward.1} parent=11 // pred_region
        _
      $region48: #{coattention_forward.1} parent=11 // pred_fallthru
        _
      // Predicated region
      $region49: #{coattention_forward.1} parent=11 // pred_check
        %p442 = pneg %p285
      $region50: #{coattention_forward.1} parent=11 // pred_check_branch
        %444 = sbr.rel (%p442) target = $region52
      $region51: #{coattention_forward.1} parent=11 // pred_region
        _
      $region52: #{coattention_forward.1} parent=11 // pred_fallthru
        _
      // Predicated region
      $region53: #{coattention_forward.1} parent=11 // pred_check
        %p445 = pneg %p306
      $region54: #{coattention_forward.1} parent=11 // pred_check_branch
        %447 = sbr.rel (%p445) target = $region56
      $region55: #{coattention_forward.1} parent=11 // pred_region
        _
      $region56: #{coattention_forward.1} parent=11 // pred_fallthru
        _
      // Predicated region
      $region57: #{coattention_forward.1} parent=11 // pred_check
        %p448 = pneg %p327
      $region58: #{coattention_forward.1} parent=11 // pred_check_branch
        %450 = sbr.rel (%p448) target = $region60
      $region59: #{coattention_forward.1} parent=11 // pred_region
        _
      $region60: #{coattention_forward.1} parent=11 // pred_fallthru
        _
      // Predicated region
      $region61: #{coattention_forward.1} parent=11 // pred_check
        %p451 = pneg %p348
      $region62: #{coattention_forward.1} parent=11 // pred_check_branch
        %453 = sbr.rel (%p451) target = $region64
      $region63: #{coattention_forward.1} parent=11 // pred_region
        _
      $region64: #{coattention_forward.1} parent=11 // pred_fallthru
        _
    $region12: #{coattention_forward.1} parent=5 // pred_fallthru
      _
    %p454 = scmp.lt.s32.totalorder %s23, 2
    // Predicated region
    $region65: #{coattention_forward.1} parent=5 // pred_check
      %p455 = pneg %p454
    $region66: #{coattention_forward.1} parent=5 // pred_check_branch
      %457 = sbr.rel (%p455) target = $region68
    $region67: #{coattention_forward.1} parent=5 // pred_region
      // Predicated region
      $region69: #{coattention_forward.1} parent=67 // pred_check
        %p458 = pneg %p43
      $region70: #{coattention_forward.1} parent=67 // pred_check_branch
        %460 = sbr.rel (%p458) target = $region72
      $region71: #{coattention_forward.1} parent=67 // pred_region
        %p461 = scmp.lt.s32.totalorder %s23, 1
        %s462 = scalar_select %p461, %s23, 1
        %s463 = smul.addr %s462, 4
        %s464 = smul.addr %s463, 8
        %s465 = scalar_lea.vmem %s0, %s464
      $region72: #{coattention_forward.1} parent=67 // pred_fallthru
        _
      // Predicated region
      $region73: #{coattention_forward.1} parent=67 // pred_check
        %p466 = pneg %p69
      $region74: #{coattention_forward.1} parent=67 // pred_check_branch
        %468 = sbr.rel (%p466) target = $region76
      $region75: #{coattention_forward.1} parent=67 // pred_region
        %p469 = scmp.lt.s32.totalorder %s23, 1
        %s470 = scalar_select %p469, %s23, 1
        %s471 = smul.addr %s470, 4
        %s472 = smul.addr %s471, 8
        %s473 = scalar_lea.vmem %s1, %s472
      $region76: #{coattention_forward.1} parent=67 // pred_fallthru
        _
    $region68: #{coattention_forward.1} parent=5 // pred_fallthru
      _
    %p474 = scmp.le.s32.totalorder 1, %s23
    %p475 = scmp.lt.s32.totalorder %s23, 3
    %p476 = pnand %p474, %p475
    %p477 = pneg %p476
    // Predicated region
    $region77: #{coattention_forward.1} parent=5 // pred_check
      _
    $region78: #{coattention_forward.1} parent=5 // pred_check_branch
      %479 = sbr.rel (%p476) target = $region80
    $region79: #{coattention_forward.1} parent=5 // pred_region
      %s480 = ssub.s32 %s23, 1
      %p481 = scmp.lt.s32.totalorder %s28, 1
      %s482 = scalar_select %p481, %s28, 1
      %s483 = smul.addr %s482, 4
      %s484 = smul.addr %s483, 8
      %s485 = scalar_lea.vmem %s0, %s484
      %p486 = pneg %p49
      %p487 = pneg %p46
      %p488 = scmp.lt.s32.totalorder %s28, 1
      %s489 = scalar_select %p488, %s28, 1
      %s490 = smul.addr %s489, 4
      %s491 = smul.addr %s490, 8
      %s492 = scalar_lea.vmem %s1, %s491
      %p493 = pneg %p75
      %p494 = pneg %p72
      %p495 = pneg %p96
      %p496 = pneg %p93
      %p497 = pneg %p117
      %p498 = pneg %p114
      %p499 = pneg %p138
      %p500 = pneg %p135
      %p501 = pneg %p159
      %p502 = pneg %p156
      %p503 = pneg %p180
      %p504 = pneg %p177
      %p505 = pneg %p201
      %p506 = pneg %p198
      %p507 = pneg %p222
      %p508 = pneg %p219
      %p509 = pneg %p243
      %p510 = pneg %p240
      %p511 = pneg %p264
      %p512 = pneg %p261
      %p513 = pneg %p285
      %p514 = pneg %p282
      %p515 = pneg %p306
      %p516 = pneg %p303
      %p517 = pneg %p327
      %p518 = pneg %p324
      %p519 = pneg %p348
      %p520 = pneg %p345
      %p521 = pneg %p374
      %p522 = pneg %p371
      %p523 = scmp.lt.s32.totalorder %s28, 1
      %s524 = scalar_select %p523, %s28, 1
      %s525 = smul.addr %s524, 4
      %s526 = smul.addr %s525, 8
      %s527 = scalar_lea.vmem %s15, %s526
      %p528 = pneg %p400
      %p529 = pneg %p397
      %p530 = scmp.lt.s32.totalorder %s28, 1
      %s531 = scalar_select %p530, %s28, 1
      %s532 = smul.addr %s531, 4
      %s533 = smul.addr %s532, 8
      %s534 = scalar_lea.vmem %s16, %s533
      %p535 = scmp.lt.s32.totalorder %s28, 1
      %s536 = scalar_select %p535, %s28, 1
      %s537 = smul.addr %s536, 4
      %s538 = smul.addr %s537, 8
      %s539 = scalar_lea.vmem %s0, %s538
      %p540 = scmp.lt.s32.totalorder %s28, 1
      %s541 = scalar_select %p540, %s28, 1
      %s542 = smul.addr %s541, 4
      %s543 = smul.addr %s542, 8
      %s544 = scalar_lea.vmem %s1, %s543
      %p545 = scmp.lt.s32.totalorder %s28, 1
      %s546 = scalar_select %p545, %s28, 1
      %s547 = smul.addr %s546, 4
      %s548 = smul.addr %s547, 8
      %s549 = scalar_lea.vmem %s15, %s548
      %p550 = scmp.lt.s32.totalorder %s28, 1
      %s551 = scalar_select %p550, %s28, 1
      %s552 = smul.addr %s551, 4
      %s553 = smul.addr %s552, 8
      %s554 = scalar_lea.vmem %s16, %s553
      %v556 = vld [vmem:[%s539] sm:$0xff]
      %v557 = vld [vmem:[%s539 + $0x8] sm:$0xff]
      %v558 = vld [vmem:[%s539 + $0x10] sm:$0xff]
      %v559 = vld [vmem:[%s539 + $0x18] sm:$0xff]
      %v560 = vld [vmem:[%s544] sm:$0xff]
      %v561 = vld [vmem:[%s544 + $0x8] sm:$0xff]
      %v562 = vld [vmem:[%s544 + $0x10] sm:$0xff]
      %v563 = vld [vmem:[%s544 + $0x18] sm:$0xff]
      %v564 = vpack.c.bf16 %v557, %v556
      %v565 = vpack.c.bf16 %v559, %v558
      %v566 = vpack.c.bf16 %v561, %v560
      %v567 = vpack.c.bf16 %v563, %v562
      %v568 = vld [vmem:[%s2] sm:$0xf]
      %v569 = vld [vmem:[%s2 + $0x4] sm:$0xf]
      %v570 = vld [vmem:[%s2 + $0x8] sm:$0xf]
      %v571 = vld [vmem:[%s2 + $0xc] sm:$0xf]
      %v576 = vunpack.c.l.b16 %v568
      %v577 = vunpack.c.l.b16 %v569
      %v578 = vunpack.c.l.b16 %v570
      %v579 = vunpack.c.l.b16 %v571
      %v580 = vpack.c.b16 %v577, %v576
      %v581 = vpack.c.b16 %v579, %v578
      %vm582 = vcmask 261120
      %v584 = vsel %vm582, %v580, 0
      %v587 = vsel %vm582, %v581, 0
      %589 = vmatprep.subr.bf16.mxu0 0
      %590 = vmatpush1.bf16.msra.mxu0 %v564
      %591 = vmatprep.subr.bf16.mxu0 0
      %592 = vmatpush1.bf16.msra.mxu0 %v565
      %593 = vmatprep.subr.bf16.mxu0 0
      %594 = vmatpush1.bf16.msra.mxu0 0
      %595 = vmatprep.subr.bf16.mxu0 0
      %596 = vmatpush1.bf16.msra.mxu0 0
      %597 = vmatprep.subr.bf16.mxu0 0
      %598 = vmatpush1.bf16.msra.mxu0 0
      %599 = vmatprep.subr.bf16.mxu0 0
      %600 = vmatpush1.bf16.msra.mxu0 0
      %601 = vmatprep.subr.bf16.mxu0 0
      %602 = vmatpush1.bf16.msra.mxu0 0
      %603 = vmatprep.subr.bf16.mxu0 0
      %604 = vmatpush1.bf16.msra.mxu0 0
      %605 = vmatprep.subr.bf16.mxu0 0
      %606 = vmatpush1.bf16.msra.mxu0 0
      %607 = vmatprep.subr.bf16.mxu0 0
      %608 = vmatpush1.bf16.msra.mxu0 0
      %609 = vmatprep.subr.bf16.mxu0 0
      %610 = vmatpush1.bf16.msra.mxu0 0
      %611 = vmatprep.subr.bf16.mxu0 0
      %612 = vmatpush1.bf16.msra.mxu0 0
      %613 = vmatprep.subr.bf16.mxu0 0
      %614 = vmatpush1.bf16.msra.mxu0 0
      %615 = vmatprep.subr.bf16.mxu0 0
      %616 = vmatpush1.bf16.msra.mxu0 0
      %617 = vmatprep.subr.bf16.mxu0 0
      %618 = vmatpush1.bf16.msra.mxu0 0
      %619 = vmatprep.subr.bf16.mxu0 0
      %620 = vmatpush1.bf16.msra.mxu0 0
      %621 = vmatprep.mubr.bf16.mxu0 0
      %622 = vmatmul.mubr.bf16.gmra.mrb[0].mxu0 %v584
      %v623 = vpop.f32.mrb[0].mxu0
      %v624 = vadd.f32 0.0, %v623
      %v625 = vpop.f32.mrb[0].mxu0
      %v626 = vpop.f32.mrb[0].mxu0
      %v627 = vadd.f32 0.0, %v626
      %v628 = vpop.f32.mrb[0].mxu0
      %629 = vmatprep.mubr.bf16.mxu0 0
      %630 = vmatmul.mubr.bf16.gmra.mrb[0].mxu0 %v587
      %v631 = vpop.f32.mrb[0].mxu0
      %v632 = vadd.f32 0.0, %v631
      %v633 = vpop.f32.mrb[0].mxu0
      %v634 = vpop.f32.mrb[0].mxu0
      %v635 = vadd.f32 0.0, %v634
      %v636 = vpop.f32.mrb[0].mxu0
      %637 = vdwg.mxu0
      %v638 = vpack.c.bf16 %v627, %v624
      %v639 = vpack.c.bf16 %v635, %v632
      %640 = vxpose.xlu0.c.b16.start [1/8] %v638, 128
      %641 = vxpose.xlu0.c.b16.cont [2/8] %v639, 128
      %642 = vxpose.xlu0.c.b16.cont [3/8] 0, 128
      %643 = vxpose.xlu0.c.b16.cont [4/8] 0, 128
      %644 = vxpose.xlu0.c.b16.cont [5/8] 0, 128
      %645 = vxpose.xlu0.c.b16.cont [6/8] 0, 128
      %646 = vxpose.xlu0.c.b16.cont [7/8] 0, 128
      %647 = vxpose.xlu0.c.b16.end [8/8] 0, 128
      %v648 = vpop.trf.xlu0
      %v649 = vpop.trf.xlu0
      %v650 = vpop.trf.xlu0
      %v651 = vpop.trf.xlu0
      %v652 = vpop.trf.xlu0
      %v653 = vpop.trf.xlu0
      %v654 = vpop.trf.xlu0
      %v655 = vpop.trf.xlu0
      %v657 = vsel %vm582, %v648, 0
      %v660 = vsel %vm582, %v649, 0
      %v663 = vsel %vm582, %v650, 0
      %v666 = vsel %vm582, %v651, 0
      %668 = vmatprep.subr.bf16.mxu0 0
      %669 = vmatpush1.bf16.msra.mxu0 %v566
      %670 = vmatprep.subr.bf16.mxu0 0
      %671 = vmatpush1.bf16.msra.mxu0 %v567
      %672 = vmatprep.subr.bf16.mxu0 0
      %673 = vmatpush1.bf16.msra.mxu0 0
      %674 = vmatprep.subr.bf16.mxu0 0
      %675 = vmatpush1.bf16.msra.mxu0 0
      %676 = vmatprep.subr.bf16.mxu0 0
      %677 = vmatpush1.bf16.msra.mxu0 0
      %678 = vmatprep.subr.bf16.mxu0 0
      %679 = vmatpush1.bf16.msra.mxu0 0
      %680 = vmatprep.subr.bf16.mxu0 0
      %681 = vmatpush1.bf16.msra.mxu0 0
      %682 = vmatprep.subr.bf16.mxu0 0
      %683 = vmatpush1.bf16.msra.mxu0 0
      %684 = vmatprep.subr.bf16.mxu0 0
      %685 = vmatpush1.bf16.msra.mxu0 0
      %686 = vmatprep.subr.bf16.mxu0 0
      %687 = vmatpush1.bf16.msra.mxu0 0
      %688 = vmatprep.subr.bf16.mxu0 0
      %689 = vmatpush1.bf16.msra.mxu0 0
      %690 = vmatprep.subr.bf16.mxu0 0
      %691 = vmatpush1.bf16.msra.mxu0 0
      %692 = vmatprep.subr.bf16.mxu0 0
      %693 = vmatpush1.bf16.msra.mxu0 0
      %694 = vmatprep.subr.bf16.mxu0 0
      %695 = vmatpush1.bf16.msra.mxu0 0
      %696 = vmatprep.subr.bf16.mxu0 0
      %697 = vmatpush1.bf16.msra.mxu0 0
      %698 = vmatprep.subr.bf16.mxu0 0
      %699 = vmatpush1.bf16.msra.mxu0 0
      %700 = vmatprep.mubr.bf16.mxu0 0
      %701 = vmatmul.mubr.bf16.gmra.mrb[0].mxu0 %v657
      %v702 = vpop.f32.mrb[0].mxu0
      %v703 = vadd.f32 0.0, %v702
      %v704 = vpop.f32.mrb[0].mxu0
      %v705 = vpop.f32.mrb[0].mxu0
      %v706 = vadd.f32 0.0, %v705
      %v707 = vpop.f32.mrb[0].mxu0
      %708 = vmatprep.mubr.bf16.mxu0 0
      %709 = vmatmul.mubr.bf16.gmra.mrb[0].mxu0 %v660
      %v710 = vpop.f32.mrb[0].mxu0
      %v711 = vadd.f32 0.0, %v710
      %v712 = vpop.f32.mrb[0].mxu0
      %v713 = vpop.f32.mrb[0].mxu0
      %v714 = vadd.f32 0.0, %v713
      %v715 = vpop.f32.mrb[0].mxu0
      %716 = vmatprep.mubr.bf16.mxu0 0
      %717 = vmatmul.mubr.bf16.gmra.mrb[0].mxu0 %v663
      %v718 = vpop.f32.mrb[0].mxu0
      %v719 = vadd.f32 0.0, %v718
      %v720 = vpop.f32.mrb[0].mxu0
      %v721 = vpop.f32.mrb[0].mxu0
      %v722 = vadd.f32 0.0, %v721
      %v723 = vpop.f32.mrb[0].mxu0
      %724 = vmatprep.mubr.bf16.mxu0 0
      %725 = vmatmul.mubr.bf16.gmra.mrb[0].mxu0 %v666
      %v726 = vpop.f32.mrb[0].mxu0
      %v727 = vadd.f32 0.0, %v726
      %v728 = vpop.f32.mrb[0].mxu0
      %v729 = vpop.f32.mrb[0].mxu0
      %v730 = vadd.f32 0.0, %v729
      %v731 = vpop.f32.mrb[0].mxu0
      %732 = vdwg.mxu0
      %vm733 = vcmask 523264
      %v734 = vsel %vm733, %v703, -inf
      %v735 = vsel %vm733, %v706, -inf
      %v736 = vsel %vm733, %v711, -inf
      %v737 = vsel %vm733, %v714, -inf
      %v738 = vsel %vm733, %v719, -inf
      %v739 = vmax.f32 %v734, %v738
      %v740 = vsel %vm733, %v722, -inf
      %v741 = vmax.f32 %v735, %v740
      %v742 = vsel %vm733, %v727, -inf
      %v743 = vmax.f32 %v736, %v742
      %v744 = vsel %vm733, %v730, -inf
      %v745 = vmax.f32 %v737, %v744
      %v746 = vmax.f32 %v739, %v741
      %v747 = vmax.f32 %v743, %v745
      %v748 = vmax.f32 %v746, %v747
      %v749 = vrot.slane %v748, 4
      %v750 = vmax.f32 %v748, %v749
      %v751 = vrot.slane %v750, 2
      %v752 = vmax.f32 %v750, %v751
      %v753 = vrot.slane %v752, 1
      %v754 = vmax.f32 %v752, %v753
      %v755 = vsub.f32 %v703, %v754
      %v756 = vsub.f32 %v706, %v754
      %v757 = vsub.f32 %v711, %v754
      %v758 = vsub.f32 %v714, %v754
      %v759 = vsub.f32 %v719, %v754
      %v760 = vsub.f32 %v722, %v754
      %v761 = vsub.f32 %v727, %v754
      %v762 = vsub.f32 %v730, %v754
      %v763 = vmul.f32 %v755, 1.442695
      %v764 = vpow.pop %v763
      %v765 = vmul.f32 %v756, 1.442695
      %v766 = vpow.pop %v765
      %v767 = vmul.f32 %v757, 1.442695
      %v768 = vpow.pop %v767
      %v769 = vmul.f32 %v758, 1.442695
      %v770 = vpow.pop %v769
      %v771 = vmul.f32 %v759, 1.442695
      %v772 = vpow.pop %v771
      %v773 = vmul.f32 %v760, 1.442695
      %v774 = vpow.pop %v773
      %v775 = vmul.f32 %v761, 1.442695
      %v776 = vpow.pop %v775
      %v777 = vmul.f32 %v762, 1.442695
      %v778 = vpow.pop %v777
      %v779 = vsel %vm733, %v764, 0.0
      %v780 = vsel %vm733, %v766, 0.0
      %v781 = vadd.f32 %v779, %v780
      %v782 = vsel %vm733, %v768, 0.0
      %v783 = vadd.f32 %v781, %v782
      %v784 = vsel %vm733, %v770, 0.0
      %v785 = vadd.f32 %v783, %v784
      %v786 = vsel %vm733, %v772, 0.0
      %v787 = vadd.f32 %v785, %v786
      %v788 = vsel %vm733, %v774, 0.0
      %v789 = vadd.f32 %v787, %v788
      %v790 = vsel %vm733, %v776, 0.0
      %v791 = vadd.f32 %v789, %v790
      %v792 = vsel %vm733, %v778, 0.0
      %v793 = vadd.f32 %v791, %v792
      %v794 = vrot.slane %v793, 4
      %v795 = vadd.f32 %v793, %v794
      %v796 = vrot.slane %v795, 2
      %v797 = vadd.f32 %v795, %v796
      %v798 = vrot.slane %v797, 1
      %v799 = vadd.f32 %v797, %v798
      %v800 = vrcp.pop %v799
      %v801 = vmul.f32 %v764, %v800
      %v802 = vmul.f32 %v766, %v800
      %v803 = vmul.f32 %v768, %v800
      %v804 = vmul.f32 %v770, %v800
      %v805 = vmul.f32 %v772, %v800
      %v806 = vmul.f32 %v774, %v800
      %v807 = vmul.f32 %v776, %v800
      %v808 = vmul.f32 %v778, %v800
      %v809 = vpack.c.bf16 %v802, %v801
      %v810 = vpack.c.bf16 %v804, %v803
      %v811 = vpack.c.bf16 %v806, %v805
      %v812 = vpack.c.bf16 %v808, %v807
      %v814 = vsel %vm733, %v564, 0
      %v817 = vsel %vm733, %v565, 0
      %819 = vmatprep.subr.bf16.mxu0 0
      %820 = vmatpush1.bf16.msra.mxu0 %v809
      %821 = vmatprep.subr.bf16.mxu0 0
      %822 = vmatpush1.bf16.msra.mxu0 %v810
      %823 = vmatprep.subr.bf16.mxu0 0
      %824 = vmatpush1.bf16.msra.mxu0 %v811
      %825 = vmatprep.subr.bf16.mxu0 0
      %826 = vmatpush1.bf16.msra.mxu0 %v812
      %827 = vmatprep.subr.bf16.mxu0 0
      %828 = vmatpush1.bf16.msra.mxu0 0
      %829 = vmatprep.subr.bf16.mxu0 0
      %830 = vmatpush1.bf16.msra.mxu0 0
      %831 = vmatprep.subr.bf16.mxu0 0
      %832 = vmatpush1.bf16.msra.mxu0 0
      %833 = vmatprep.subr.bf16.mxu0 0
      %834 = vmatpush1.bf16.msra.mxu0 0
      %835 = vmatprep.subr.bf16.mxu0 0
      %836 = vmatpush1.bf16.msra.mxu0 0
      %837 = vmatprep.subr.bf16.mxu0 0
      %838 = vmatpush1.bf16.msra.mxu0 0
      %839 = vmatprep.subr.bf16.mxu0 0
      %840 = vmatpush1.bf16.msra.mxu0 0
      %841 = vmatprep.subr.bf16.mxu0 0
      %842 = vmatpush1.bf16.msra.mxu0 0
      %843 = vmatprep.subr.bf16.mxu0 0
      %844 = vmatpush1.bf16.msra.mxu0 0
      %845 = vmatprep.subr.bf16.mxu0 0
      %846 = vmatpush1.bf16.msra.mxu0 0
      %847 = vmatprep.subr.bf16.mxu0 0
      %848 = vmatpush1.bf16.msra.mxu0 0
      %849 = vmatprep.subr.bf16.mxu0 0
      %850 = vmatpush1.bf16.msra.mxu0 0
      %851 = vmatprep.mubr.bf16.mxu0 0
      %852 = vmatmul.mubr.bf16.gmra.mrb[0].mxu0 %v814
      %v853 = vpop.f32.mrb[0].mxu0
      %v854 = vadd.f32 0.0, %v853
      %v855 = vpop.f32.mrb[0].mxu0
      %v856 = vpop.f32.mrb[0].mxu0
      %v857 = vadd.f32 0.0, %v856
      %v858 = vpop.f32.mrb[0].mxu0
      %859 = vmatprep.mubr.bf16.mxu0 0
      %860 = vmatmul.mubr.bf16.gmra.mrb[0].mxu0 %v817
      %v861 = vpop.f32.mrb[0].mxu0
      %v862 = vadd.f32 0.0, %v861
      %v863 = vpop.f32.mrb[0].mxu0
      %v864 = vpop.f32.mrb[0].mxu0
      %v865 = vadd.f32 0.0, %v864
      %v866 = vpop.f32.mrb[0].mxu0
      %867 = vdwg.mxu0
      %868 = vmax.xlane.f32.xlu0 %v734
      %v869 = vpop.xlane.xlu0 %868
      %870 = vmax.xlane.f32.xlu0 %v735
      %v871 = vpop.xlane.xlu0 %870
      %872 = vmax.xlane.f32.xlu0 %v736
      %v873 = vpop.xlane.xlu0 %872
      %874 = vmax.xlane.f32.xlu0 %v737
      %v875 = vpop.xlane.xlu0 %874
      %876 = vmax.xlane.f32.xlu0 %v738
      %v877 = vpop.xlane.xlu0 %876
      %878 = vmax.xlane.f32.xlu0 %v740
      %v879 = vpop.xlane.xlu0 %878
      %880 = vmax.xlane.f32.xlu0 %v742
      %v881 = vpop.xlane.xlu0 %880
      %882 = vmax.xlane.f32.xlu0 %v744
      %v883 = vpop.xlane.xlu0 %882
      %v884 = vsub.f32 %v703, %v869
      %v885 = vsub.f32 %v706, %v871
      %v886 = vsub.f32 %v711, %v873
      %v887 = vsub.f32 %v714, %v875
      %v888 = vsub.f32 %v719, %v877
      %v889 = vsub.f32 %v722, %v879
      %v890 = vsub.f32 %v727, %v881
      %v891 = vsub.f32 %v730, %v883
      %v892 = vmul.f32 %v884, 1.442695
      %v893 = vpow.pop %v892
      %v894 = vmul.f32 %v885, 1.442695
      %v895 = vpow.pop %v894
      %v896 = vmul.f32 %v886, 1.442695
      %v897 = vpow.pop %v896
      %v898 = vmul.f32 %v887, 1.442695
      %v899 = vpow.pop %v898
      %v900 = vmul.f32 %v888, 1.442695
      %v901 = vpow.pop %v900
      %v902 = vmul.f32 %v889, 1.442695
      %v903 = vpow.pop %v902
      %v904 = vmul.f32 %v890, 1.442695
      %v905 = vpow.pop %v904
      %v906 = vmul.f32 %v891, 1.442695
      %v907 = vpow.pop %v906
      %v908 = vsel %vm733, %v893, 0.0
      %909 = vadd.xlane.f32.xlu0 %v908
      %v910 = vpop.xlane.xlu0 %909
      %v911 = vsel %vm733, %v895, 0.0
      %912 = vadd.xlane.f32.xlu0 %v911
      %v913 = vpop.xlane.xlu0 %912
      %v914 = vsel %vm733, %v897, 0.0
      %915 = vadd.xlane.f32.xlu0 %v914
      %v916 = vpop.xlane.xlu0 %915
      %v917 = vsel %vm733, %v899, 0.0
      %918 = vadd.xlane.f32.xlu0 %v917
      %v919 = vpop.xlane.xlu0 %918
      %v920 = vsel %vm733, %v901, 0.0
      %921 = vadd.xlane.f32.xlu0 %v920
      %v922 = vpop.xlane.xlu0 %921
      %v923 = vsel %vm733, %v903, 0.0
      %924 = vadd.xlane.f32.xlu0 %v923
      %v925 = vpop.xlane.xlu0 %924
      %v926 = vsel %vm733, %v905, 0.0
      %927 = vadd.xlane.f32.xlu0 %v926
      %v928 = vpop.xlane.xlu0 %927
      %v929 = vsel %vm733, %v907, 0.0
      %930 = vadd.xlane.f32.xlu0 %v929
      %v931 = vpop.xlane.xlu0 %930
      %v932 = vrcp.pop %v910
      %v933 = vrcp.pop %v913
      %v934 = vrcp.pop %v916
      %v935 = vrcp.pop %v919
      %v936 = vrcp.pop %v922
      %v937 = vrcp.pop %v925
      %v938 = vrcp.pop %v928
      %v939 = vrcp.pop %v931
      %v940 = vmul.f32 %v893, %v932
      %v941 = vmul.f32 %v895, %v933
      %v942 = vmul.f32 %v897, %v934
      %v943 = vmul.f32 %v899, %v935
      %v944 = vmul.f32 %v901, %v936
      %v945 = vmul.f32 %v903, %v937
      %v946 = vmul.f32 %v905, %v938
      %v947 = vmul.f32 %v907, %v939
      %v948 = vpack.c.bf16 %v941, %v940
      %v949 = vpack.c.bf16 %v943, %v942
      %v950 = vpack.c.bf16 %v945, %v944
      %v951 = vpack.c.bf16 %v947, %v946
      %v953 = vsel %vm733, %v566, 0
      %v956 = vsel %vm733, %v567, 0
      %v959 = vsel %vm733, %v948, 0
      %v962 = vsel %vm733, %v949, 0
      %v965 = vsel %vm733, %v950, 0
      %v968 = vsel %vm733, %v951, 0
      %970 = vmatprep.subr.bf16.mxu0 0
      %971 = vmatpush1.bf16.xpose.msra.mxu0 %v959
      %972 = vmatprep.subr.bf16.mxu0 0
      %973 = vmatpush1.bf16.xpose.msra.mxu0 %v962
      %974 = vmatprep.subr.bf16.mxu0 0
      %975 = vmatpush1.bf16.xpose.msra.mxu0 %v965
      %976 = vmatprep.subr.bf16.mxu0 0
      %977 = vmatpush1.bf16.xpose.msra.mxu0 %v968
      %978 = vmatprep.subr.bf16.mxu0 0
      %979 = vmatpush1.bf16.xpose.msra.mxu0 0
      %980 = vmatprep.subr.bf16.mxu0 0
      %981 = vmatpush1.bf16.xpose.msra.mxu0 0
      %982 = vmatprep.subr.bf16.mxu0 0
      %983 = vmatpush1.bf16.xpose.msra.mxu0 0
      %984 = vmatprep.subr.bf16.mxu0 0
      %985 = vmatpush1.bf16.xpose.msra.mxu0 0
      %986 = vmatprep.subr.bf16.mxu0 0
      %987 = vmatpush1.bf16.xpose.msra.mxu0 0
      %988 = vmatprep.subr.bf16.mxu0 0
      %989 = vmatpush1.bf16.xpose.msra.mxu0 0
      %990 = vmatprep.subr.bf16.mxu0 0
      %991 = vmatpush1.bf16.xpose.msra.mxu0 0
      %992 = vmatprep.subr.bf16.mxu0 0
      %993 = vmatpush1.bf16.xpose.msra.mxu0 0
      %994 = vmatprep.subr.bf16.mxu0 0
      %995 = vmatpush1.bf16.xpose.msra.mxu0 0
      %996 = vmatprep.subr.bf16.mxu0 0
      %997 = vmatpush1.bf16.xpose.msra.mxu0 0
      %998 = vmatprep.subr.bf16.mxu0 0
      %999 = vmatpush1.bf16.xpose.msra.mxu0 0
      %1000 = vmatprep.subr.bf16.mxu0 0
      %1001 = vmatpush1.bf16.xpose.msra.mxu0 0
      %1002 = vmatprep.mubr.bf16.mxu0 0
      %1003 = vmatmul.mubr.bf16.gmra.mrb[0].mxu0 %v953
      %v1004 = vpop.f32.mrb[0].mxu0
      %v1005 = vadd.f32 0.0, %v1004
      %v1006 = vpop.f32.mrb[0].mxu0
      %v1007 = vpop.f32.mrb[0].mxu0
      %v1008 = vadd.f32 0.0, %v1007
      %v1009 = vpop.f32.mrb[0].mxu0
      %1010 = vmatprep.mubr.bf16.mxu0 0
      %1011 = vmatmul.mubr.bf16.gmra.mrb[0].mxu0 %v956
      %v1012 = vpop.f32.mrb[0].mxu0
      %v1013 = vadd.f32 0.0, %v1012
      %v1014 = vpop.f32.mrb[0].mxu0
      %v1015 = vpop.f32.mrb[0].mxu0
      %v1016 = vadd.f32 0.0, %v1015
      %v1017 = vpop.f32.mrb[0].mxu0
      %1018 = vdwg.mxu0
      %v1019 = vpack.c.bf16 %v1008, %v1005
      %v1020 = vpack.c.bf16 %v1016, %v1013
      %v1021 = vpack.c.bf16 %v857, %v854
      %v1022 = vpack.c.bf16 %v865, %v862
      %v1023 = vld [vmem:[%s3] sm:$0x1]
      %v1024 = vld [vmem:[%s4] sm:$0x1]
      %v1026 = vsel %vm582, %v1024, 0
      %1028 = vmatprep.subr.bf16.mxu0 0
      %1029 = vmatpush1.bf16.msra.mxu0 %v1021
      %1030 = vmatprep.subr.bf16.mxu0 0
      %1031 = vmatpush1.bf16.msra.mxu0 %v1022
      %1032 = vmatprep.subr.bf16.mxu0 0
      %1033 = vmatpush1.bf16.msra.mxu0 0
      %1034 = vmatprep.subr.bf16.mxu0 0
      %1035 = vmatpush1.bf16.msra.mxu0 0
      %1036 = vmatprep.subr.bf16.mxu0 0
      %1037 = vmatpush1.bf16.msra.mxu0 0
      %1038 = vmatprep.subr.bf16.mxu0 0
      %1039 = vmatpush1.bf16.msra.mxu0 0
      %1040 = vmatprep.subr.bf16.mxu0 0
      %1041 = vmatpush1.bf16.msra.mxu0 0
      %1042 = vmatprep.subr.bf16.mxu0 0
      %1043 = vmatpush1.bf16.msra.mxu0 0
      %1044 = vmatprep.subr.bf16.mxu0 0
      %1045 = vmatpush1.bf16.msra.mxu0 0
      %1046 = vmatprep.subr.bf16.mxu0 0
      %1047 = vmatpush1.bf16.msra.mxu0 0
      %1048 = vmatprep.subr.bf16.mxu0 0
      %1049 = vmatpush1.bf16.msra.mxu0 0
      %1050 = vmatprep.subr.bf16.mxu0 0
      %1051 = vmatpush1.bf16.msra.mxu0 0
      %1052 = vmatprep.subr.bf16.mxu0 0
      %1053 = vmatpush1.bf16.msra.mxu0 0
      %1054 = vmatprep.subr.bf16.mxu0 0
      %1055 = vmatpush1.bf16.msra.mxu0 0
      %1056 = vmatprep.subr.bf16.mxu0 0
      %1057 = vmatpush1.bf16.msra.mxu0 0
      %1058 = vmatprep.subr.bf16.mxu0 0
      %1059 = vmatpush1.bf16.msra.mxu0 0
      %1060 = vmatprep.mubr.bf16.mxu0 0
      %1061 = vmatmul.mubr.bf16.gmra.mrb[0].mxu0 %v1026
      %v1062 = vpop.f32.mrb[0].mxu0
      %v1063 = vadd.f32 0.0, %v1062
      %v1064 = vpop.f32.mrb[0].mxu0
      %v1065 = vpop.f32.mrb[0].mxu0
      %v1066 = vpop.f32.mrb[0].mxu0
      %1067 = vdwg.mxu0
      %v1069 = vsel %vm582, %v1023, 0
      %1071 = vmatprep.subr.bf16.mxu0 0
      %1072 = vmatpush1.bf16.msra.mxu0 %v1019
      %1073 = vmatprep.subr.bf16.mxu0 0
      %1074 = vmatpush1.bf16.msra.mxu0 %v1020
      %1075 = vmatprep.subr.bf16.mxu0 0
      %1076 = vmatpush1.bf16.msra.mxu0 0
      %1077 = vmatprep.subr.bf16.mxu0 0
      %1078 = vmatpush1.bf16.msra.mxu0 0
      %1079 = vmatprep.subr.bf16.mxu0 0
      %1080 = vmatpush1.bf16.msra.mxu0 0
      %1081 = vmatprep.subr.bf16.mxu0 0
      %1082 = vmatpush1.bf16.msra.mxu0 0
      %1083 = vmatprep.subr.bf16.mxu0 0
      %1084 = vmatpush1.bf16.msra.mxu0 0
      %1085 = vmatprep.subr.bf16.mxu0 0
      %1086 = vmatpush1.bf16.msra.mxu0 0
      %1087 = vmatprep.subr.bf16.mxu0 0
      %1088 = vmatpush1.bf16.msra.mxu0 0
      %1089 = vmatprep.subr.bf16.mxu0 0
      %1090 = vmatpush1.bf16.msra.mxu0 0
      %1091 = vmatprep.subr.bf16.mxu0 0
      %1092 = vmatpush1.bf16.msra.mxu0 0
      %1093 = vmatprep.subr.bf16.mxu0 0
      %1094 = vmatpush1.bf16.msra.mxu0 0
      %1095 = vmatprep.subr.bf16.mxu0 0
      %1096 = vmatpush1.bf16.msra.mxu0 0
      %1097 = vmatprep.subr.bf16.mxu0 0
      %1098 = vmatpush1.bf16.msra.mxu0 0
      %1099 = vmatprep.subr.bf16.mxu0 0
      %1100 = vmatpush1.bf16.msra.mxu0 0
      %1101 = vmatprep.subr.bf16.mxu0 0
      %1102 = vmatpush1.bf16.msra.mxu0 0
      %1103 = vmatprep.mubr.bf16.mxu0 0
      %1104 = vmatmul.mubr.bf16.gmra.mrb[0].mxu0 %v1069
      %v1105 = vpop.f32.mrb[0].mxu0
      %v1106 = vadd.f32 %v1063, %v1105
      %v1107 = vpop.f32.mrb[0].mxu0
      %v1108 = vpop.f32.mrb[0].mxu0
      %v1109 = vpop.f32.mrb[0].mxu0
      %1110 = vdwg.mxu0
      %v1111 = vxor.u32 %v1106, 2147483648
      %v1112 = vmul.f32 %v1111, 1.442695
      %v1113 = vpow.pop %v1112
      %v1114 = vadd.f32 %v1113, 1.0
      %v1115 = vrcp.pop %v1114
      %v1116 = vmul.f32 1.0, %v1115
      %v1117 = vsel %vm733, %v1005, 0.0
      %1118 = vadd.xlane.f32.xlu0 %v1117
      %v1119 = vpop.xlane.xlu0 %1118
      %v1120 = vsel %vm733, %v1008, 0.0
      %1121 = vadd.xlane.f32.xlu0 %v1120
      %v1122 = vpop.xlane.xlu0 %1121
      %v1123 = vsel %vm733, %v1013, 0.0
      %1124 = vadd.xlane.f32.xlu0 %v1123
      %v1125 = vpop.xlane.xlu0 %1124
      %v1126 = vsel %vm733, %v1016, 0.0
      %1127 = vadd.xlane.f32.xlu0 %v1126
      %v1128 = vpop.xlane.xlu0 %1127
      %v1129 = vrcp.pop 64.0
      %v1130 = vmul.f32 %v1119, %v1129
      %v1131 = vmul.f32 %v1122, %v1129
      %v1132 = vmul.f32 %v1125, %v1129
      %v1133 = vmul.f32 %v1128, %v1129
      %v1134 = vpack.c.bf16 %v1131, %v1130
      %v1135 = vpack.c.bf16 %v1133, %v1132
      %v1136 = vsel %vm733, %v854, 0.0
      %1137 = vadd.xlane.f32.xlu0 %v1136
      %v1138 = vpop.xlane.xlu0 %1137
      %v1139 = vsel %vm733, %v857, 0.0
      %1140 = vadd.xlane.f32.xlu0 %v1139
      %v1141 = vpop.xlane.xlu0 %1140
      %v1142 = vsel %vm733, %v862, 0.0
      %1143 = vadd.xlane.f32.xlu0 %v1142
      %v1144 = vpop.xlane.xlu0 %1143
      %v1145 = vsel %vm733, %v865, 0.0
      %1146 = vadd.xlane.f32.xlu0 %v1145
      %v1147 = vpop.xlane.xlu0 %1146
      %v1148 = vmul.f32 %v1138, %v1129
      %v1149 = vmul.f32 %v1141, %v1129
      %v1150 = vmul.f32 %v1144, %v1129
      %v1151 = vmul.f32 %v1147, %v1129
      %v1152 = vpack.c.bf16 %v1149, %v1148
      %v1153 = vpack.c.bf16 %v1151, %v1150
      %v1154 = vld [vmem:[%s5] sm:$0xf]
      %v1155 = vld [vmem:[%s5 + $0x4] sm:$0xf]
      %v1156 = vld [vmem:[%s5 + $0x8] sm:$0xf]
      %v1157 = vld [vmem:[%s5 + $0xc] sm:$0xf]
      %v1158 = vld [vmem:[%s6] sm:$0xf]
      %v1159 = vld [vmem:[%s6 + $0x4] sm:$0xf]
      %v1160 = vld [vmem:[%s6 + $0x8] sm:$0xf]
      %v1161 = vld [vmem:[%s6 + $0xc] sm:$0xf]
      %v1166 = vunpack.c.l.b16 %v1158
      %v1167 = vunpack.c.l.b16 %v1159
      %v1168 = vunpack.c.l.b16 %v1160
      %v1169 = vunpack.c.l.b16 %v1161
      %v1170 = vpack.c.b16 %v1167, %v1166
      %v1171 = vpack.c.b16 %v1169, %v1168
      %v1173 = vsel %vm582, %v1170, 0
      %v1176 = vsel %vm582, %v1171, 0
      %1178 = vmatprep.subr.bf16.mxu0 0
      %1179 = vmatpush1.bf16.msra.mxu0 %v1152
      %1180 = vmatprep.subr.bf16.mxu0 0
      %1181 = vmatpush1.bf16.msra.mxu0 %v1153
      %1182 = vmatprep.subr.bf16.mxu0 0
      %1183 = vmatpush1.bf16.msra.mxu0 0
      %1184 = vmatprep.subr.bf16.mxu0 0
      %1185 = vmatpush1.bf16.msra.mxu0 0
      %1186 = vmatprep.subr.bf16.mxu0 0
      %1187 = vmatpush1.bf16.msra.mxu0 0
      %1188 = vmatprep.subr.bf16.mxu0 0
      %1189 = vmatpush1.bf16.msra.mxu0 0
      %1190 = vmatprep.subr.bf16.mxu0 0
      %1191 = vmatpush1.bf16.msra.mxu0 0
      %1192 = vmatprep.subr.bf16.mxu0 0
      %1193 = vmatpush1.bf16.msra.mxu0 0
      %1194 = vmatprep.subr.bf16.mxu0 0
      %1195 = vmatpush1.bf16.msra.mxu0 0
      %1196 = vmatprep.subr.bf16.mxu0 0
      %1197 = vmatpush1.bf16.msra.mxu0 0
      %1198 = vmatprep.subr.bf16.mxu0 0
      %1199 = vmatpush1.bf16.msra.mxu0 0
      %1200 = vmatprep.subr.bf16.mxu0 0
      %1201 = vmatpush1.bf16.msra.mxu0 0
      %1202 = vmatprep.subr.bf16.mxu0 0
      %1203 = vmatpush1.bf16.msra.mxu0 0
      %1204 = vmatprep.subr.bf16.mxu0 0
      %1205 = vmatpush1.bf16.msra.mxu0 0
      %1206 = vmatprep.subr.bf16.mxu0 0
      %1207 = vmatpush1.bf16.msra.mxu0 0
      %1208 = vmatprep.subr.bf16.mxu0 0
      %1209 = vmatpush1.bf16.msra.mxu0 0
      %1210 = vmatprep.mubr.bf16.mxu0 0
      %1211 = vmatmul.mubr.bf16.gmra.mrb[0].mxu0 %v1173
      %v1212 = vpop.f32.mrb[0].mxu0
      %v1213 = vadd.f32 0.0, %v1212
      %v1214 = vpop.f32.mrb[0].mxu0
      %v1215 = vpop.f32.mrb[0].mxu0
      %v1216 = vadd.f32 0.0, %v1215
      %v1217 = vpop.f32.mrb[0].mxu0
      %1218 = vmatprep.mubr.bf16.mxu0 0
      %1219 = vmatmul.mubr.bf16.gmra.mrb[0].mxu0 %v1176
      %v1220 = vpop.f32.mrb[0].mxu0
      %v1221 = vadd.f32 0.0, %v1220
      %v1222 = vpop.f32.mrb[0].mxu0
      %v1223 = vpop.f32.mrb[0].mxu0
      %v1224 = vadd.f32 0.0, %v1223
      %v1225 = vpop.f32.mrb[0].mxu0
      %1226 = vdwg.mxu0
      %v1231 = vunpack.c.l.b16 %v1154
      %v1232 = vunpack.c.l.b16 %v1155
      %v1233 = vunpack.c.l.b16 %v1156
      %v1234 = vunpack.c.l.b16 %v1157
      %v1235 = vpack.c.b16 %v1232, %v1231
      %v1236 = vpack.c.b16 %v1234, %v1233
      %v1238 = vsel %vm582, %v1235, 0
      %v1241 = vsel %vm582, %v1236, 0
      %1243 = vmatprep.subr.bf16.mxu0 0
      %1244 = vmatpush1.bf16.msra.mxu0 %v1134
      %1245 = vmatprep.subr.bf16.mxu0 0
      %1246 = vmatpush1.bf16.msra.mxu0 %v1135
      %1247 = vmatprep.subr.bf16.mxu0 0
      %1248 = vmatpush1.bf16.msra.mxu0 0
      %1249 = vmatprep.subr.bf16.mxu0 0
      %1250 = vmatpush1.bf16.msra.mxu0 0
      %1251 = vmatprep.subr.bf16.mxu0 0
      %1252 = vmatpush1.bf16.msra.mxu0 0
      %1253 = vmatprep.subr.bf16.mxu0 0
      %1254 = vmatpush1.bf16.msra.mxu0 0
      %1255 = vmatprep.subr.bf16.mxu0 0
      %1256 = vmatpush1.bf16.msra.mxu0 0
      %1257 = vmatprep.subr.bf16.mxu0 0
      %1258 = vmatpush1.bf16.msra.mxu0 0
      %1259 = vmatprep.subr.bf16.mxu0 0
      %1260 = vmatpush1.bf16.msra.mxu0 0
      %1261 = vmatprep.subr.bf16.mxu0 0
      %1262 = vmatpush1.bf16.msra.mxu0 0
      %1263 = vmatprep.subr.bf16.mxu0 0
      %1264 = vmatpush1.bf16.msra.mxu0 0
      %1265 = vmatprep.subr.bf16.mxu0 0
      %1266 = vmatpush1.bf16.msra.mxu0 0
      %1267 = vmatprep.subr.bf16.mxu0 0
      %1268 = vmatpush1.bf16.msra.mxu0 0
      %1269 = vmatprep.subr.bf16.mxu0 0
      %1270 = vmatpush1.bf16.msra.mxu0 0
      %1271 = vmatprep.subr.bf16.mxu0 0
      %1272 = vmatpush1.bf16.msra.mxu0 0
      %1273 = vmatprep.subr.bf16.mxu0 0
      %1274 = vmatpush1.bf16.msra.mxu0 0
      %1275 = vmatprep.mubr.bf16.mxu0 0
      %1276 = vmatmul.mubr.bf16.gmra.mrb[0].mxu0 %v1238
      %v1277 = vpop.f32.mrb[0].mxu0
      %v1278 = vadd.f32 %v1213, %v1277
      %v1279 = vpop.f32.mrb[0].mxu0
      %v1280 = vpop.f32.mrb[0].mxu0
      %v1281 = vadd.f32 %v1216, %v1280
      %v1282 = vpop.f32.mrb[0].mxu0
      %1283 = vmatprep.mubr.bf16.mxu0 0
      %1284 = vmatmul.mubr.bf16.gmra.mrb[0].mxu0 %v1241
      %v1285 = vpop.f32.mrb[0].mxu0
      %v1286 = vadd.f32 %v1221, %v1285
      %v1287 = vpop.f32.mrb[0].mxu0
      %v1288 = vpop.f32.mrb[0].mxu0
      %v1289 = vadd.f32 %v1224, %v1288
      %v1290 = vpop.f32.mrb[0].mxu0
      %1291 = vdwg.mxu0
      %v1292 = vld [vmem:[%s7] sm:$0xff]
      %v1293 = vld [vmem:[%s7 + $0x8] sm:$0xff]
      %v1294 = vld [vmem:[%s7 + $0x10] sm:$0xff]
      %v1295 = vld [vmem:[%s7 + $0x18] sm:$0xff]
      %v1296 = vadd.f32 %v1278, %v1292
      %v1297 = vadd.f32 %v1281, %v1293
      %v1298 = vadd.f32 %v1286, %v1294
      %v1299 = vadd.f32 %v1289, %v1295
      %v1300 = vmax.f32 %v1296, 0.0
      %v1301 = vmax.f32 %v1297, 0.0
      %v1302 = vmax.f32 %v1298, 0.0
      %v1303 = vmax.f32 %v1299, 0.0
      %v1304 = vld [vmem:[%s8] sm:$0xf]
      %v1305 = vld [vmem:[%s8 + $0x4] sm:$0xf]
      %v1306 = vld [vmem:[%s8 + $0x8] sm:$0xf]
      %v1307 = vld [vmem:[%s8 + $0xc] sm:$0xf]
      %v1308 = vld [vmem:[%s8 + $0x10] sm:$0xf]
      %v1309 = vld [vmem:[%s8 + $0x14] sm:$0xf]
      %v1310 = vld [vmem:[%s8 + $0x18] sm:$0xf]
      %v1311 = vld [vmem:[%s8 + $0x1c] sm:$0xf]
      %v1312 = vpack.c.bf16 %v1301, %v1300
      %v1313 = vpack.c.bf16 %v1303, %v1302
      %v1314 = vld [vmem:[%s9] sm:$0xff]
      %v1315 = vld [vmem:[%s9 + $0x8] sm:$0xff]
      %v1316 = vld [vmem:[%s9 + $0x10] sm:$0xff]
      %v1317 = vld [vmem:[%s9 + $0x18] sm:$0xff]
      %v1318 = vld [vmem:[%s9 + $0x20] sm:$0xff]
      %v1319 = vld [vmem:[%s9 + $0x28] sm:$0xff]
      %v1320 = vld [vmem:[%s9 + $0x30] sm:$0xff]
      %v1321 = vld [vmem:[%s9 + $0x38] sm:$0xff]
      %v1330 = vunpack.c.l.b16 %v1304
      %v1331 = vunpack.c.l.b16 %v1305
      %v1332 = vunpack.c.l.b16 %v1306
      %v1333 = vunpack.c.l.b16 %v1307
      %v1334 = vunpack.c.l.b16 %v1308
      %v1335 = vunpack.c.l.b16 %v1309
      %v1336 = vunpack.c.l.b16 %v1310
      %v1337 = vunpack.c.l.b16 %v1311
      %v1338 = vpack.c.b16 %v1331, %v1330
      %v1339 = vpack.c.b16 %v1333, %v1332
      %v1340 = vpack.c.b16 %v1335, %v1334
      %v1341 = vpack.c.b16 %v1337, %v1336
      %v1343 = vsel %vm582, %v1338, 0
      %v1346 = vsel %vm582, %v1339, 0
      %v1349 = vsel %vm582, %v1340, 0
      %v1352 = vsel %vm582, %v1341, 0
      %1354 = vmatprep.subr.bf16.mxu0 0
      %1355 = vmatpush1.bf16.msra.mxu0 %v1312
      %1356 = vmatprep.subr.bf16.mxu0 0
      %1357 = vmatpush1.bf16.msra.mxu0 %v1313
      %1358 = vmatprep.subr.bf16.mxu0 0
      %1359 = vmatpush1.bf16.msra.mxu0 0
      %1360 = vmatprep.subr.bf16.mxu0 0
      %1361 = vmatpush1.bf16.msra.mxu0 0
      %1362 = vmatprep.subr.bf16.mxu0 0
      %1363 = vmatpush1.bf16.msra.mxu0 0
      %1364 = vmatprep.subr.bf16.mxu0 0
      %1365 = vmatpush1.bf16.msra.mxu0 0
      %1366 = vmatprep.subr.bf16.mxu0 0
      %1367 = vmatpush1.bf16.msra.mxu0 0
      %1368 = vmatprep.subr.bf16.mxu0 0
      %1369 = vmatpush1.bf16.msra.mxu0 0
      %1370 = vmatprep.subr.bf16.mxu0 0
      %1371 = vmatpush1.bf16.msra.mxu0 0
      %1372 = vmatprep.subr.bf16.mxu0 0
      %1373 = vmatpush1.bf16.msra.mxu0 0
      %1374 = vmatprep.subr.bf16.mxu0 0
      %1375 = vmatpush1.bf16.msra.mxu0 0
      %1376 = vmatprep.subr.bf16.mxu0 0
      %1377 = vmatpush1.bf16.msra.mxu0 0
      %1378 = vmatprep.subr.bf16.mxu0 0
      %1379 = vmatpush1.bf16.msra.mxu0 0
      %1380 = vmatprep.subr.bf16.mxu0 0
      %1381 = vmatpush1.bf16.msra.mxu0 0
      %1382 = vmatprep.subr.bf16.mxu0 0
      %1383 = vmatpush1.bf16.msra.mxu0 0
      %1384 = vmatprep.subr.bf16.mxu0 0
      %1385 = vmatpush1.bf16.msra.mxu0 0
      %1386 = vmatprep.mubr.bf16.mxu0 0
      %1387 = vmatmul.mubr.bf16.gmra.mrb[0].mxu0 %v1343
      %v1388 = vpop.f32.mrb[0].mxu0
      %v1389 = vadd.f32 %v1314, %v1388
      %v1390 = vpop.f32.mrb[0].mxu0
      %v1391 = vpop.f32.mrb[0].mxu0
      %v1392 = vadd.f32 %v1315, %v1391
      %v1393 = vpop.f32.mrb[0].mxu0
      %1394 = vmatprep.mubr.bf16.mxu0 0
      %1395 = vmatmul.mubr.bf16.gmra.mrb[0].mxu0 %v1346
      %v1396 = vpop.f32.mrb[0].mxu0
      %v1397 = vadd.f32 %v1316, %v1396
      %v1398 = vpop.f32.mrb[0].mxu0
      %v1399 = vpop.f32.mrb[0].mxu0
      %v1400 = vadd.f32 %v1317, %v1399
      %v1401 = vpop.f32.mrb[0].mxu0
      %1402 = vmatprep.mubr.bf16.mxu0 0
      %1403 = vmatmul.mubr.bf16.gmra.mrb[0].mxu0 %v1349
      %v1404 = vpop.f32.mrb[0].mxu0
      %v1405 = vadd.f32 %v1318, %v1404
      %v1406 = vpop.f32.mrb[0].mxu0
      %v1407 = vpop.f32.mrb[0].mxu0
      %v1408 = vadd.f32 %v1319, %v1407
      %v1409 = vpop.f32.mrb[0].mxu0
      %1410 = vmatprep.mubr.bf16.mxu0 0
      %1411 = vmatmul.mubr.bf16.gmra.mrb[0].mxu0 %v1352
      %v1412 = vpop.f32.mrb[0].mxu0
      %v1413 = vadd.f32 %v1320, %v1412
      %v1414 = vpop.f32.mrb[0].mxu0
      %v1415 = vpop.f32.mrb[0].mxu0
      %v1416 = vadd.f32 %v1321, %v1415
      %v1417 = vpop.f32.mrb[0].mxu0
      %1418 = vdwg.mxu0
      %v1419 = vxor.u32 %v1389, 2147483648
      %v1420 = vxor.u32 %v1392, 2147483648
      %v1421 = vxor.u32 %v1397, 2147483648
      %v1422 = vxor.u32 %v1400, 2147483648
      %v1423 = vxor.u32 %v1405, 2147483648
      %v1424 = vxor.u32 %v1408, 2147483648
      %v1425 = vxor.u32 %v1413, 2147483648
      %v1426 = vxor.u32 %v1416, 2147483648
      %v1427 = vmul.f32 %v1419, 1.442695
      %v1428 = vpow.pop %v1427
      %v1429 = vmul.f32 %v1420, 1.442695
      %v1430 = vpow.pop %v1429
      %v1431 = vmul.f32 %v1421, 1.442695
      %v1432 = vpow.pop %v1431
      %v1433 = vmul.f32 %v1422, 1.442695
      %v1434 = vpow.pop %v1433
      %v1435 = vmul.f32 %v1423, 1.442695
      %v1436 = vpow.pop %v1435
      %v1437 = vmul.f32 %v1424, 1.442695
      %v1438 = vpow.pop %v1437
      %v1439 = vmul.f32 %v1425, 1.442695
      %v1440 = vpow.pop %v1439
      %v1441 = vmul.f32 %v1426, 1.442695
      %v1442 = vpow.pop %v1441
      %v1443 = vadd.f32 %v1428, 1.0
      %v1444 = vadd.f32 %v1430, 1.0
      %v1445 = vadd.f32 %v1432, 1.0
      %v1446 = vadd.f32 %v1434, 1.0
      %v1447 = vadd.f32 %v1436, 1.0
      %v1448 = vadd.f32 %v1438, 1.0
      %v1449 = vadd.f32 %v1440, 1.0
      %v1450 = vadd.f32 %v1442, 1.0
      %v1451 = vrcp.pop %v1443
      %v1452 = vmul.f32 1.0, %v1451
      %v1453 = vrcp.pop %v1444
      %v1454 = vmul.f32 1.0, %v1453
      %v1455 = vrcp.pop %v1445
      %v1456 = vmul.f32 1.0, %v1455
      %v1457 = vrcp.pop %v1446
      %v1458 = vmul.f32 1.0, %v1457
      %v1459 = vrcp.pop %v1447
      %v1460 = vmul.f32 1.0, %v1459
      %v1461 = vrcp.pop %v1448
      %v1462 = vmul.f32 1.0, %v1461
      %v1463 = vrcp.pop %v1449
      %v1464 = vmul.f32 1.0, %v1463
      %v1465 = vrcp.pop %v1450
      %v1466 = vmul.f32 1.0, %v1465
      %v1467 = vlaneseq
      %v1468 = vshrl.u32 %v1467, 7
      %v1469 = vsub.s32 0, %v1468
      %v1470 = vrot.slane %v1116, %v1469
      %v1471 = vmul.f32 %v1005, %v1470
      %v1472 = vmul.f32 %v1008, %v1470
      %v1473 = vmul.f32 %v1013, %v1470
      %v1474 = vmul.f32 %v1016, %v1470
      %1476 = vset.pattern.permute.xlu0 0
      %1477 = vperm.xlu0 %1476, %v1460
      %v1478 = vpop.permute.xlu0 %1477
      %1481 = vset.pattern.permute.xlu0 0
      %1482 = vperm.xlu0 %1481, %v1462
      %v1483 = vpop.permute.xlu0 %1482
      %1486 = vset.pattern.permute.xlu0 0
      %1487 = vperm.xlu0 %1486, %v1464
      %v1488 = vpop.permute.xlu0 %1487
      %1491 = vset.pattern.permute.xlu0 0
      %1492 = vperm.xlu0 %1491, %v1466
      %v1493 = vpop.permute.xlu0 %1492
      %v1495 = vmul.f32 %v1471, %v1478
      %v1496 = vmul.f32 %v1472, %v1483
      %v1497 = vmul.f32 %v1473, %v1488
      %v1498 = vmul.f32 %v1474, %v1493
      %v1499 = vlaneseq
      %v1500 = vshrl.u32 %v1499, 7
      %v1501 = vsub.s32 1, %v1500
      %v1502 = vrot.slane %v1116, %v1501
      %v1503 = vmul.f32 %v854, %v1502
      %v1504 = vmul.f32 %v857, %v1502
      %v1505 = vmul.f32 %v862, %v1502
      %v1506 = vmul.f32 %v865, %v1502
      %1508 = vset.pattern.permute.xlu0 0
      %1509 = vperm.xlu0 %1508, %v1452
      %v1510 = vpop.permute.xlu0 %1509
      %1513 = vset.pattern.permute.xlu0 0
      %1514 = vperm.xlu0 %1513, %v1454
      %v1515 = vpop.permute.xlu0 %1514
      %1518 = vset.pattern.permute.xlu0 0
      %1519 = vperm.xlu0 %1518, %v1456
      %v1520 = vpop.permute.xlu0 %1519
      %1523 = vset.pattern.permute.xlu0 0
      %1524 = vperm.xlu0 %1523, %v1458
      %v1525 = vpop.permute.xlu0 %1524
      %v1527 = vmul.f32 %v1503, %v1510
      %v1528 = vmul.f32 %v1504, %v1515
      %v1529 = vmul.f32 %v1505, %v1520
      %v1530 = vmul.f32 %v1506, %v1525
      %vm1531 = vcmask 1048504
      %1532 = vst.msk [vmem:[#allocation2] sm:$0xff] %vm1531, 0
      %1533 = vst.msk [vmem:[#allocation2 + $0x10] sm:$0xff] %vm1531, 0
      %1534 = vst.msk [vmem:[#allocation2 + $0x20] sm:$0xff] %vm1531, 0
      %1535 = vst.msk [vmem:[#allocation2 + $0x30] sm:$0xff] %vm1531, 0
      %vm1536 = vcmask 597504
      %1537 = vst.msk [vmem:[#allocation2 + $0x8] sm:$0xff] %vm1536, 0
      %1538 = vst.msk [vmem:[#allocation2 + $0x18] sm:$0xff] %vm1536, 0
      %1539 = vst.msk [vmem:[#allocation2 + $0x28] sm:$0xff] %vm1536, 0
      %1540 = vst.msk [vmem:[#allocation2 + $0x38] sm:$0xff] %vm1536, 0
      %1541 = vst.msk [vmem:[#allocation3] sm:$0xff] %vm1531, 0
      %1542 = vst.msk [vmem:[#allocation3 + $0x10] sm:$0xff] %vm1531, 0
      %1543 = vst.msk [vmem:[#allocation3 + $0x20] sm:$0xff] %vm1531, 0
      %1544 = vst.msk [vmem:[#allocation3 + $0x30] sm:$0xff] %vm1531, 0
      %1545 = vst.msk [vmem:[#allocation3 + $0x8] sm:$0xff] %vm1536, 0
      %1546 = vst.msk [vmem:[#allocation3 + $0x18] sm:$0xff] %vm1536, 0
      %1547 = vst.msk [vmem:[#allocation3 + $0x28] sm:$0xff] %vm1536, 0
      %1548 = vst.msk [vmem:[#allocation3 + $0x38] sm:$0xff] %vm1536, 0
      %v1549 = vpack.c.bf16 %v1496, %v1495
      %v1550 = vpack.c.bf16 %v1498, %v1497
      %1551 = vst.msk [vmem:[#allocation2 + $0x8] sm:$0xff] %vm733, %v1549
      %1552 = vst.msk [vmem:[#allocation2 + $0x18] sm:$0xff] %vm733, %v1550
      %1553 = vst.msk [vmem:[#allocation2 + $0x28] sm:$0xff] %vm733, %v564
      %1554 = vst.msk [vmem:[#allocation2 + $0x38] sm:$0xff] %vm733, %v565
      %v1555 = vpack.c.bf16 %v1528, %v1527
      %v1556 = vpack.c.bf16 %v1530, %v1529
      %1557 = vst.msk [vmem:[#allocation3 + $0x8] sm:$0xff] %vm733, %v1555
      %1558 = vst.msk [vmem:[#allocation3 + $0x18] sm:$0xff] %vm733, %v1556
      %1559 = vst.msk [vmem:[#allocation3 + $0x28] sm:$0xff] %vm733, %v566
      %1560 = vst.msk [vmem:[#allocation3 + $0x38] sm:$0xff] %vm733, %v567
      %v1561 = vld [vmem:[%s14] sm:$0x1]
      %v1562 = vld [vmem:[%s14 + $0x1] sm:$0x1]
      %v1563 = vld [vmem:[#allocation2] sm:$0xff]
      %v1564 = vld [vmem:[#allocation2 + $0x8] sm:$0xff]
      %v1565 = vld [vmem:[#allocation2 + $0x10] sm:$0xff]
      %v1566 = vld [vmem:[#allocation2 + $0x18] sm:$0xff]
      %v1567 = vld [vmem:[#allocation2 + $0x20] sm:$0xff]
      %v1568 = vld [vmem:[#allocation2 + $0x28] sm:$0xff]
      %v1569 = vld [vmem:[#allocation2 + $0x30] sm:$0xff]
      %v1570 = vld [vmem:[#allocation2 + $0x38] sm:$0xff]
      %s1571 = scalar_lea.vmem %s10, 16
      %v1572 = vld [vmem:[%s1571] sm:$0xf]
      %v1573 = vld [vmem:[%s1571 + $0x4] sm:$0xf]
      %v1574 = vld [vmem:[%s1571 + $0x8] sm:$0xf]
      %v1575 = vld [vmem:[%s1571 + $0xc] sm:$0xf]
      %s1576 = scalar_lea.vmem %s10, 64
      %v1577 = vld [vmem:[%s1576] sm:$0xf]
      %v1578 = vld [vmem:[%s1576 + $0x4] sm:$0xf]
      %v1579 = vld [vmem:[%s1576 + $0x8] sm:$0xf]
      %v1580 = vld [vmem:[%s1576 + $0xc] sm:$0xf]
      %v1585 = vunpack.c.l.b16 %v1577
      %v1586 = vunpack.c.l.b16 %v1578
      %v1587 = vunpack.c.l.b16 %v1579
      %v1588 = vunpack.c.l.b16 %v1580
      %v1589 = vpack.c.b16 %v1586, %v1585
      %v1590 = vpack.c.b16 %v1588, %v1587
      %v1592 = vsel %vm733, %v1589, 0
      %v1595 = vsel %vm733, %v1590, 0
      %1597 = vmatprep.subr.bf16.mxu0 0
      %1598 = vmatpush1.bf16.msra.mxu0 %v1564
      %1599 = vmatprep.subr.bf16.mxu0 0
      %1600 = vmatpush1.bf16.msra.mxu0 %v1566
      %1601 = vmatprep.subr.bf16.mxu0 0
      %1602 = vmatpush1.bf16.msra.mxu0 %v1568
      %1603 = vmatprep.subr.bf16.mxu0 0
      %1604 = vmatpush1.bf16.msra.mxu0 %v1570
      %1605 = vmatprep.subr.bf16.mxu0 0
      %1606 = vmatpush1.bf16.msra.mxu0 0
      %1607 = vmatprep.subr.bf16.mxu0 0
      %1608 = vmatpush1.bf16.msra.mxu0 0
      %1609 = vmatprep.subr.bf16.mxu0 0
      %1610 = vmatpush1.bf16.msra.mxu0 0
      %1611 = vmatprep.subr.bf16.mxu0 0
      %1612 = vmatpush1.bf16.msra.mxu0 0
      %1613 = vmatprep.subr.bf16.mxu0 0
      %1614 = vmatpush1.bf16.msra.mxu0 0
      %1615 = vmatprep.subr.bf16.mxu0 0
      %1616 = vmatpush1.bf16.msra.mxu0 0
      %1617 = vmatprep.subr.bf16.mxu0 0
      %1618 = vmatpush1.bf16.msra.mxu0 0
      %1619 = vmatprep.subr.bf16.mxu0 0
      %1620 = vmatpush1.bf16.msra.mxu0 0
      %1621 = vmatprep.subr.bf16.mxu0 0
      %1622 = vmatpush1.bf16.msra.mxu0 0
      %1623 = vmatprep.subr.bf16.mxu0 0
      %1624 = vmatpush1.bf16.msra.mxu0 0
      %1625 = vmatprep.subr.bf16.mxu0 0
      %1626 = vmatpush1.bf16.msra.mxu0 0
      %1627 = vmatprep.subr.bf16.mxu0 0
      %1628 = vmatpush1.bf16.msra.mxu0 0
      %1629 = vmatprep.mubr.bf16.mxu0 0
      %1630 = vmatmul.mubr.bf16.gmra.mrb[0].mxu0 %v1592
      %v1631 = vpop.f32.mrb[0].mxu0
      %v1632 = vadd.f32 0.0, %v1631
      %v1633 = vpop.f32.mrb[0].mxu0
      %v1634 = vpop.f32.mrb[0].mxu0
      %v1635 = vadd.f32 0.0, %v1634
      %v1636 = vpop.f32.mrb[0].mxu0
      %1637 = vmatprep.mubr.bf16.mxu0 0
      %1638 = vmatmul.mubr.bf16.gmra.mrb[0].mxu0 %v1595
      %v1639 = vpop.f32.mrb[0].mxu0
      %v1640 = vadd.f32 0.0, %v1639
      %v1641 = vpop.f32.mrb[0].mxu0
      %v1642 = vpop.f32.mrb[0].mxu0
      %v1643 = vadd.f32 0.0, %v1642
      %v1644 = vpop.f32.mrb[0].mxu0
      %1645 = vdwg.mxu0
      %v1650 = vunpack.c.l.b16 %v1572
      %v1651 = vunpack.c.l.b16 %v1573
      %v1652 = vunpack.c.l.b16 %v1574
      %v1653 = vunpack.c.l.b16 %v1575
      %v1654 = vpack.c.b16 %v1651, %v1650
      %v1655 = vpack.c.b16 %v1653, %v1652
      %1664 = vrot.lane.b32.xlu0 %v1563, 8
      %v1665 = vpop.permute.xlu0 %1664
      %1666 = vrot.lane.b32.xlu0 %v1564, 8
      %v1667 = vpop.permute.xlu0 %1666
      %1668 = vrot.lane.b32.xlu0 %v1565, 8
      %v1669 = vpop.permute.xlu0 %1668
      %1670 = vrot.lane.b32.xlu0 %v1566, 8
      %v1671 = vpop.permute.xlu0 %1670
      %1672 = vrot.lane.b32.xlu0 %v1567, 8
      %v1673 = vpop.permute.xlu0 %1672
      %1674 = vrot.lane.b32.xlu0 %v1568, 8
      %v1675 = vpop.permute.xlu0 %1674
      %1676 = vrot.lane.b32.xlu0 %v1569, 8
      %v1677 = vpop.permute.xlu0 %1676
      %1678 = vrot.lane.b32.xlu0 %v1570, 8
      %v1679 = vpop.permute.xlu0 %1678
      %vm1680 = vcmask 64512
      %v1681 = vsel %vm1680, %v1665, %v1667
      %v1682 = vsel %vm1680, %v1669, %v1671
      %v1683 = vsel %vm1680, %v1673, %v1675
      %v1684 = vsel %vm1680, %v1677, %v1679
      %v1690 = vsel %vm733, %v1654, 0
      %v1693 = vsel %vm733, %v1655, 0
      %1695 = vmatprep.subr.bf16.mxu0 0
      %1696 = vmatpush1.bf16.msra.mxu0 %v1681
      %1697 = vmatprep.subr.bf16.mxu0 0
      %1698 = vmatpush1.bf16.msra.mxu0 %v1682
      %1699 = vmatprep.subr.bf16.mxu0 0
      %1700 = vmatpush1.bf16.msra.mxu0 %v1683
      %1701 = vmatprep.subr.bf16.mxu0 0
      %1702 = vmatpush1.bf16.msra.mxu0 %v1684
      %1703 = vmatprep.subr.bf16.mxu0 0
      %1704 = vmatpush1.bf16.msra.mxu0 0
      %1705 = vmatprep.subr.bf16.mxu0 0
      %1706 = vmatpush1.bf16.msra.mxu0 0
      %1707 = vmatprep.subr.bf16.mxu0 0
      %1708 = vmatpush1.bf16.msra.mxu0 0
      %1709 = vmatprep.subr.bf16.mxu0 0
      %1710 = vmatpush1.bf16.msra.mxu0 0
      %1711 = vmatprep.subr.bf16.mxu0 0
      %1712 = vmatpush1.bf16.msra.mxu0 0
      %1713 = vmatprep.subr.bf16.mxu0 0
      %1714 = vmatpush1.bf16.msra.mxu0 0
      %1715 = vmatprep.subr.bf16.mxu0 0
      %1716 = vmatpush1.bf16.msra.mxu0 0
      %1717 = vmatprep.subr.bf16.mxu0 0
      %1718 = vmatpush1.bf16.msra.mxu0 0
      %1719 = vmatprep.subr.bf16.mxu0 0
      %1720 = vmatpush1.bf16.msra.mxu0 0
      %1721 = vmatprep.subr.bf16.mxu0 0
      %1722 = vmatpush1.bf16.msra.mxu0 0
      %1723 = vmatprep.subr.bf16.mxu0 0
      %1724 = vmatpush1.bf16.msra.mxu0 0
      %1725 = vmatprep.subr.bf16.mxu0 0
      %1726 = vmatpush1.bf16.msra.mxu0 0
      %1727 = vmatprep.mubr.bf16.mxu0 0
      %1728 = vmatmul.mubr.bf16.gmra.mrb[0].mxu0 %v1690
      %v1729 = vpop.f32.mrb[0].mxu0
      %v1730 = vadd.f32 %v1632, %v1729
      %v1731 = vpop.f32.mrb[0].mxu0
      %v1732 = vpop.f32.mrb[0].mxu0
      %v1733 = vadd.f32 %v1635, %v1732
      %v1734 = vpop.f32.mrb[0].mxu0
      %1735 = vmatprep.mubr.bf16.mxu0 0
      %1736 = vmatmul.mubr.bf16.gmra.mrb[0].mxu0 %v1693
      %v1737 = vpop.f32.mrb[0].mxu0
      %v1738 = vadd.f32 %v1640, %v1737
      %v1739 = vpop.f32.mrb[0].mxu0
      %v1740 = vpop.f32.mrb[0].mxu0
      %v1741 = vadd.f32 %v1643, %v1740
      %v1742 = vpop.f32.mrb[0].mxu0
      %1743 = vdwg.mxu0
      %s1744 = scalar_lea.vmem %s10, 112
      %v1745 = vld [vmem:[%s1744] sm:$0xf]
      %v1746 = vld [vmem:[%s1744 + $0x4] sm:$0xf]
      %v1747 = vld [vmem:[%s1744 + $0x8] sm:$0xf]
      %v1748 = vld [vmem:[%s1744 + $0xc] sm:$0xf]
      %v1753 = vunpack.c.l.b16 %v1745
      %v1754 = vunpack.c.l.b16 %v1746
      %v1755 = vunpack.c.l.b16 %v1747
      %v1756 = vunpack.c.l.b16 %v1748
      %v1757 = vpack.c.b16 %v1754, %v1753
      %v1758 = vpack.c.b16 %v1756, %v1755
      %1759 = vrot.lane.b32.xlu0 %v1564, 120
      %v1760 = vpop.permute.xlu0 %1759
      %1761 = vrot.lane.b32.xlu0 %v1566, 120
      %v1762 = vpop.permute.xlu0 %1761
      %1763 = vrot.lane.b32.xlu0 %v1568, 120
      %v1764 = vpop.permute.xlu0 %1763
      %1765 = vrot.lane.b32.xlu0 %v1570, 120
      %v1766 = vpop.permute.xlu0 %1765
      %v1772 = vsel %vm733, %v1757, 0
      %v1775 = vsel %vm733, %v1758, 0
      %1777 = vmatprep.subr.bf16.mxu0 0
      %1778 = vmatpush1.bf16.msra.mxu0 %v1760
      %1779 = vmatprep.subr.bf16.mxu0 0
      %1780 = vmatpush1.bf16.msra.mxu0 %v1762
      %1781 = vmatprep.subr.bf16.mxu0 0
      %1782 = vmatpush1.bf16.msra.mxu0 %v1764
      %1783 = vmatprep.subr.bf16.mxu0 0
      %1784 = vmatpush1.bf16.msra.mxu0 %v1766
      %1785 = vmatprep.subr.bf16.mxu0 0
      %1786 = vmatpush1.bf16.msra.mxu0 0
      %1787 = vmatprep.subr.bf16.mxu0 0
      %1788 = vmatpush1.bf16.msra.mxu0 0
      %1789 = vmatprep.subr.bf16.mxu0 0
      %1790 = vmatpush1.bf16.msra.mxu0 0
      %1791 = vmatprep.subr.bf16.mxu0 0
      %1792 = vmatpush1.bf16.msra.mxu0 0
      %1793 = vmatprep.subr.bf16.mxu0 0
      %1794 = vmatpush1.bf16.msra.mxu0 0
      %1795 = vmatprep.subr.bf16.mxu0 0
      %1796 = vmatpush1.bf16.msra.mxu0 0
      %1797 = vmatprep.subr.bf16.mxu0 0
      %1798 = vmatpush1.bf16.msra.mxu0 0
      %1799 = vmatprep.subr.bf16.mxu0 0
      %1800 = vmatpush1.bf16.msra.mxu0 0
      %1801 = vmatprep.subr.bf16.mxu0 0
      %1802 = vmatpush1.bf16.msra.mxu0 0
      %1803 = vmatprep.subr.bf16.mxu0 0
      %1804 = vmatpush1.bf16.msra.mxu0 0
      %1805 = vmatprep.subr.bf16.mxu0 0
      %1806 = vmatpush1.bf16.msra.mxu0 0
      %1807 = vmatprep.subr.bf16.mxu0 0
      %1808 = vmatpush1.bf16.msra.mxu0 0
      %1809 = vmatprep.mubr.bf16.mxu0 0
      %1810 = vmatmul.mubr.bf16.gmra.mrb[0].mxu0 %v1772
      %v1811 = vpop.f32.mrb[0].mxu0
      %v1812 = vadd.f32 0.0, %v1811
      %v1813 = vpop.f32.mrb[0].mxu0
      %v1814 = vpop.f32.mrb[0].mxu0
      %v1815 = vadd.f32 0.0, %v1814
      %v1816 = vpop.f32.mrb[0].mxu0
      %1817 = vmatprep.mubr.bf16.mxu0 0
      %1818 = vmatmul.mubr.bf16.gmra.mrb[0].mxu0 %v1775
      %v1819 = vpop.f32.mrb[0].mxu0
      %v1820 = vadd.f32 0.0, %v1819
      %v1821 = vpop.f32.mrb[0].mxu0
      %v1822 = vpop.f32.mrb[0].mxu0
      %v1823 = vadd.f32 0.0, %v1822
      %v1824 = vpop.f32.mrb[0].mxu0
      %1825 = vdwg.mxu0
      %v1826 = vadd.f32 %v1730, %v1812
      %v1827 = vadd.f32 %v1733, %v1815
      %v1828 = vadd.f32 %v1738, %v1820
      %v1829 = vadd.f32 %v1741, %v1823
      %v1830 = vld [vmem:[%s10] sm:$0xf]
      %v1831 = vld [vmem:[%s10 + $0x4] sm:$0xf]
      %v1832 = vld [vmem:[%s10 + $0x8] sm:$0xf]
      %v1833 = vld [vmem:[%s10 + $0xc] sm:$0xf]
      %s1834 = scalar_lea.vmem %s10, 48
      %v1835 = vld [vmem:[%s1834] sm:$0xf]
      %v1836 = vld [vmem:[%s1834 + $0x4] sm:$0xf]
      %v1837 = vld [vmem:[%s1834 + $0x8] sm:$0xf]
      %v1838 = vld [vmem:[%s1834 + $0xc] sm:$0xf]
      %v1843 = vunpack.c.l.b16 %v1835
      %v1844 = vunpack.c.l.b16 %v1836
      %v1845 = vunpack.c.l.b16 %v1837
      %v1846 = vunpack.c.l.b16 %v1838
      %v1847 = vpack.c.b16 %v1844, %v1843
      %v1848 = vpack.c.b16 %v1846, %v1845
      %1849 = vrot.lane.b32.xlu0 %v1563, 1
      %v1850 = vpop.permute.xlu0 %1849
      %1851 = vrot.lane.b32.xlu0 %v1564, 1
      %v1852 = vpop.permute.xlu0 %1851
      %1853 = vrot.lane.b32.xlu0 %v1565, 1
      %v1854 = vpop.permute.xlu0 %1853
      %1855 = vrot.lane.b32.xlu0 %v1566, 1
      %v1856 = vpop.permute.xlu0 %1855
      %1857 = vrot.lane.b32.xlu0 %v1567, 1
      %v1858 = vpop.permute.xlu0 %1857
      %1859 = vrot.lane.b32.xlu0 %v1568, 1
      %v1860 = vpop.permute.xlu0 %1859
      %1861 = vrot.lane.b32.xlu0 %v1569, 1
      %v1862 = vpop.permute.xlu0 %1861
      %1863 = vrot.lane.b32.xlu0 %v1570, 1
      %v1864 = vpop.permute.xlu0 %1863
      %vm1865 = vcmask 7168
      %v1866 = vsel %vm1865, %v1850, %v1852
      %v1867 = vsel %vm1865, %v1854, %v1856
      %v1868 = vsel %vm1865, %v1858, %v1860
      %v1869 = vsel %vm1865, %v1862, %v1864
      %v1875 = vsel %vm733, %v1847, 0
      %v1878 = vsel %vm733, %v1848, 0
      %1880 = vmatprep.subr.bf16.mxu0 0
      %1881 = vmatpush1.bf16.msra.mxu0 %v1866
      %1882 = vmatprep.subr.bf16.mxu0 0
      %1883 = vmatpush1.bf16.msra.mxu0 %v1867
      %1884 = vmatprep.subr.bf16.mxu0 0
      %1885 = vmatpush1.bf16.msra.mxu0 %v1868
      %1886 = vmatprep.subr.bf16.mxu0 0
      %1887 = vmatpush1.bf16.msra.mxu0 %v1869
      %1888 = vmatprep.subr.bf16.mxu0 0
      %1889 = vmatpush1.bf16.msra.mxu0 0
      %1890 = vmatprep.subr.bf16.mxu0 0
      %1891 = vmatpush1.bf16.msra.mxu0 0
      %1892 = vmatprep.subr.bf16.mxu0 0
      %1893 = vmatpush1.bf16.msra.mxu0 0
      %1894 = vmatprep.subr.bf16.mxu0 0
      %1895 = vmatpush1.bf16.msra.mxu0 0
      %1896 = vmatprep.subr.bf16.mxu0 0
      %1897 = vmatpush1.bf16.msra.mxu0 0
      %1898 = vmatprep.subr.bf16.mxu0 0
      %1899 = vmatpush1.bf16.msra.mxu0 0
      %1900 = vmatprep.subr.bf16.mxu0 0
      %1901 = vmatpush1.bf16.msra.mxu0 0
      %1902 = vmatprep.subr.bf16.mxu0 0
      %1903 = vmatpush1.bf16.msra.mxu0 0
      %1904 = vmatprep.subr.bf16.mxu0 0
      %1905 = vmatpush1.bf16.msra.mxu0 0
      %1906 = vmatprep.subr.bf16.mxu0 0
      %1907 = vmatpush1.bf16.msra.mxu0 0
      %1908 = vmatprep.subr.bf16.mxu0 0
      %1909 = vmatpush1.bf16.msra.mxu0 0
      %1910 = vmatprep.subr.bf16.mxu0 0
      %1911 = vmatpush1.bf16.msra.mxu0 0
      %1912 = vmatprep.mubr.bf16.mxu0 0
      %1913 = vmatmul.mubr.bf16.gmra.mrb[0].mxu0 %v1875
      %v1914 = vpop.f32.mrb[0].mxu0
      %v1915 = vadd.f32 0.0, %v1914
      %v1916 = vpop.f32.mrb[0].mxu0
      %v1917 = vpop.f32.mrb[0].mxu0
      %v1918 = vadd.f32 0.0, %v1917
      %v1919 = vpop.f32.mrb[0].mxu0
      %1920 = vmatprep.mubr.bf16.mxu0 0
      %1921 = vmatmul.mubr.bf16.gmra.mrb[0].mxu0 %v1878
      %v1922 = vpop.f32.mrb[0].mxu0
      %v1923 = vadd.f32 0.0, %v1922
      %v1924 = vpop.f32.mrb[0].mxu0
      %v1925 = vpop.f32.mrb[0].mxu0
      %v1926 = vadd.f32 0.0, %v1925
      %v1927 = vpop.f32.mrb[0].mxu0
      %1928 = vdwg.mxu0
      %v1933 = vunpack.c.l.b16 %v1830
      %v1934 = vunpack.c.l.b16 %v1831
      %v1935 = vunpack.c.l.b16 %v1832
      %v1936 = vunpack.c.l.b16 %v1833
      %v1937 = vpack.c.b16 %v1934, %v1933
      %v1938 = vpack.c.b16 %v1936, %v1935
      %1939 = vrot.lane.b32.xlu0 %v1563, 9
      %v1940 = vpop.permute.xlu0 %1939
      %1941 = vrot.lane.b32.xlu0 %v1564, 9
      %v1942 = vpop.permute.xlu0 %1941
      %1943 = vrot.lane.b32.xlu0 %v1565, 9
      %v1944 = vpop.permute.xlu0 %1943
      %1945 = vrot.lane.b32.xlu0 %v1566, 9
      %v1946 = vpop.permute.xlu0 %1945
      %1947 = vrot.lane.b32.xlu0 %v1567, 9
      %v1948 = vpop.permute.xlu0 %1947
      %1949 = vrot.lane.b32.xlu0 %v1568, 9
      %v1950 = vpop.permute.xlu0 %1949
      %1951 = vrot.lane.b32.xlu0 %v1569, 9
      %v1952 = vpop.permute.xlu0 %1951
      %1953 = vrot.lane.b32.xlu0 %v1570, 9
      %v1954 = vpop.permute.xlu0 %1953
      %vm1955 = vcmask 72704
      %v1956 = vsel %vm1955, %v1940, %v1942
      %v1957 = vsel %vm1955, %v1944, %v1946
      %v1958 = vsel %vm1955, %v1948, %v1950
      %v1959 = vsel %vm1955, %v1952, %v1954
      %v1965 = vsel %vm733, %v1937, 0
      %v1968 = vsel %vm733, %v1938, 0
      %1970 = vmatprep.subr.bf16.mxu0 0
      %1971 = vmatpush1.bf16.msra.mxu0 %v1956
      %1972 = vmatprep.subr.bf16.mxu0 0
      %1973 = vmatpush1.bf16.msra.mxu0 %v1957
      %1974 = vmatprep.subr.bf16.mxu0 0
      %1975 = vmatpush1.bf16.msra.mxu0 %v1958
      %1976 = vmatprep.subr.bf16.mxu0 0
      %1977 = vmatpush1.bf16.msra.mxu0 %v1959
      %1978 = vmatprep.subr.bf16.mxu0 0
      %1979 = vmatpush1.bf16.msra.mxu0 0
      %1980 = vmatprep.subr.bf16.mxu0 0
      %1981 = vmatpush1.bf16.msra.mxu0 0
      %1982 = vmatprep.subr.bf16.mxu0 0
      %1983 = vmatpush1.bf16.msra.mxu0 0
      %1984 = vmatprep.subr.bf16.mxu0 0
      %1985 = vmatpush1.bf16.msra.mxu0 0
      %1986 = vmatprep.subr.bf16.mxu0 0
      %1987 = vmatpush1.bf16.msra.mxu0 0
      %1988 = vmatprep.subr.bf16.mxu0 0
      %1989 = vmatpush1.bf16.msra.mxu0 0
      %1990 = vmatprep.subr.bf16.mxu0 0
      %1991 = vmatpush1.bf16.msra.mxu0 0
      %1992 = vmatprep.subr.bf16.mxu0 0
      %1993 = vmatpush1.bf16.msra.mxu0 0
      %1994 = vmatprep.subr.bf16.mxu0 0
      %1995 = vmatpush1.bf16.msra.mxu0 0
      %1996 = vmatprep.subr.bf16.mxu0 0
      %1997 = vmatpush1.bf16.msra.mxu0 0
      %1998 = vmatprep.subr.bf16.mxu0 0
      %1999 = vmatpush1.bf16.msra.mxu0 0
      %2000 = vmatprep.subr.bf16.mxu0 0
      %2001 = vmatpush1.bf16.msra.mxu0 0
      %2002 = vmatprep.mubr.bf16.mxu0 0
      %2003 = vmatmul.mubr.bf16.gmra.mrb[0].mxu0 %v1965
      %v2004 = vpop.f32.mrb[0].mxu0
      %v2005 = vadd.f32 %v1915, %v2004
      %v2006 = vpop.f32.mrb[0].mxu0
      %v2007 = vpop.f32.mrb[0].mxu0
      %v2008 = vadd.f32 %v1918, %v2007
      %v2009 = vpop.f32.mrb[0].mxu0
      %2010 = vmatprep.mubr.bf16.mxu0 0
      %2011 = vmatmul.mubr.bf16.gmra.mrb[0].mxu0 %v1968
      %v2012 = vpop.f32.mrb[0].mxu0
      %v2013 = vadd.f32 %v1923, %v2012
      %v2014 = vpop.f32.mrb[0].mxu0
      %v2015 = vpop.f32.mrb[0].mxu0
      %v2016 = vadd.f32 %v1926, %v2015
      %v2017 = vpop.f32.mrb[0].mxu0
      %2018 = vdwg.mxu0
      %s2019 = scalar_lea.vmem %s10, 96
      %v2020 = vld [vmem:[%s2019] sm:$0xf]
      %v2021 = vld [vmem:[%s2019 + $0x4] sm:$0xf]
      %v2022 = vld [vmem:[%s2019 + $0x8] sm:$0xf]
      %v2023 = vld [vmem:[%s2019 + $0xc] sm:$0xf]
      %v2028 = vunpack.c.l.b16 %v2020
      %v2029 = vunpack.c.l.b16 %v2021
      %v2030 = vunpack.c.l.b16 %v2022
      %v2031 = vunpack.c.l.b16 %v2023
      %v2032 = vpack.c.b16 %v2029, %v2028
      %v2033 = vpack.c.b16 %v2031, %v2030
      %2034 = vrot.lane.b32.xlu0 %v1564, 121
      %v2035 = vpop.permute.xlu0 %2034
      %2036 = vrot.lane.b32.xlu0 %v1566, 121
      %v2037 = vpop.permute.xlu0 %2036
      %2038 = vrot.lane.b32.xlu0 %v1568, 121
      %v2039 = vpop.permute.xlu0 %2038
      %2040 = vrot.lane.b32.xlu0 %v1570, 121
      %v2041 = vpop.permute.xlu0 %2040
      %v2047 = vsel %vm733, %v2032, 0
      %v2050 = vsel %vm733, %v2033, 0
      %2052 = vmatprep.subr.bf16.mxu0 0
      %2053 = vmatpush1.bf16.msra.mxu0 %v2035
      %2054 = vmatprep.subr.bf16.mxu0 0
      %2055 = vmatpush1.bf16.msra.mxu0 %v2037
      %2056 = vmatprep.subr.bf16.mxu0 0
      %2057 = vmatpush1.bf16.msra.mxu0 %v2039
      %2058 = vmatprep.subr.bf16.mxu0 0
      %2059 = vmatpush1.bf16.msra.mxu0 %v2041
      %2060 = vmatprep.subr.bf16.mxu0 0
      %2061 = vmatpush1.bf16.msra.mxu0 0
      %2062 = vmatprep.subr.bf16.mxu0 0
      %2063 = vmatpush1.bf16.msra.mxu0 0
      %2064 = vmatprep.subr.bf16.mxu0 0
      %2065 = vmatpush1.bf16.msra.mxu0 0
      %2066 = vmatprep.subr.bf16.mxu0 0
      %2067 = vmatpush1.bf16.msra.mxu0 0
      %2068 = vmatprep.subr.bf16.mxu0 0
      %2069 = vmatpush1.bf16.msra.mxu0 0
      %2070 = vmatprep.subr.bf16.mxu0 0
      %2071 = vmatpush1.bf16.msra.mxu0 0
      %2072 = vmatprep.subr.bf16.mxu0 0
      %2073 = vmatpush1.bf16.msra.mxu0 0
      %2074 = vmatprep.subr.bf16.mxu0 0
      %2075 = vmatpush1.bf16.msra.mxu0 0
      %2076 = vmatprep.subr.bf16.mxu0 0
      %2077 = vmatpush1.bf16.msra.mxu0 0
      %2078 = vmatprep.subr.bf16.mxu0 0
      %2079 = vmatpush1.bf16.msra.mxu0 0
      %2080 = vmatprep.subr.bf16.mxu0 0
      %2081 = vmatpush1.bf16.msra.mxu0 0
      %2082 = vmatprep.subr.bf16.mxu0 0
      %2083 = vmatpush1.bf16.msra.mxu0 0
      %2084 = vmatprep.mubr.bf16.mxu0 0
      %2085 = vmatmul.mubr.bf16.gmra.mrb[0].mxu0 %v2047
      %v2086 = vpop.f32.mrb[0].mxu0
      %v2087 = vadd.f32 0.0, %v2086
      %v2088 = vpop.f32.mrb[0].mxu0
      %v2089 = vpop.f32.mrb[0].mxu0
      %v2090 = vadd.f32 0.0, %v2089
      %v2091 = vpop.f32.mrb[0].mxu0
      %2092 = vmatprep.mubr.bf16.mxu0 0
      %2093 = vmatmul.mubr.bf16.gmra.mrb[0].mxu0 %v2050
      %v2094 = vpop.f32.mrb[0].mxu0
      %v2095 = vadd.f32 0.0, %v2094
      %v2096 = vpop.f32.mrb[0].mxu0
      %v2097 = vpop.f32.mrb[0].mxu0
      %v2098 = vadd.f32 0.0, %v2097
      %v2099 = vpop.f32.mrb[0].mxu0
      %2100 = vdwg.mxu0
      %v2101 = vadd.f32 %v2005, %v2087
      %v2102 = vadd.f32 %v2008, %v2090
      %v2103 = vadd.f32 %v2013, %v2095
      %v2104 = vadd.f32 %v2016, %v2098
      %v2105 = vlaneseq
      %v2106 = vshrl.u32 %v2105, 7
      %v2107 = vsub.s32 0, %v2106
      %v2108 = vrot.slane %v1561, %v2107
      %v2109 = vmul.f32 %v2101, %v2108
      %v2110 = vmul.f32 %v2102, %v2108
      %v2111 = vmul.f32 %v2103, %v2108
      %v2112 = vmul.f32 %v2104, %v2108
      %v2113 = vadd.f32 %v1826, %v2109
      %v2114 = vadd.f32 %v1827, %v2110
      %v2115 = vadd.f32 %v1828, %v2111
      %v2116 = vadd.f32 %v1829, %v2112
      %s2117 = scalar_lea.vmem %s10, 32
      %v2118 = vld [vmem:[%s2117] sm:$0xf]
      %v2119 = vld [vmem:[%s2117 + $0x4] sm:$0xf]
      %v2120 = vld [vmem:[%s2117 + $0x8] sm:$0xf]
      %v2121 = vld [vmem:[%s2117 + $0xc] sm:$0xf]
      %s2122 = scalar_lea.vmem %s10, 80
      %v2123 = vld [vmem:[%s2122] sm:$0xf]
      %v2124 = vld [vmem:[%s2122 + $0x4] sm:$0xf]
      %v2125 = vld [vmem:[%s2122 + $0x8] sm:$0xf]
      %v2126 = vld [vmem:[%s2122 + $0xc] sm:$0xf]
      %v2131 = vunpack.c.l.b16 %v2123
      %v2132 = vunpack.c.l.b16 %v2124
      %v2133 = vunpack.c.l.b16 %v2125
      %v2134 = vunpack.c.l.b16 %v2126
      %v2135 = vpack.c.b16 %v2132, %v2131
      %v2136 = vpack.c.b16 %v2134, %v2133
      %2137 = vrot.lane.b32.xlu0 %v1564, 127
      %v2138 = vpop.permute.xlu0 %2137
      %2139 = vrot.lane.b32.xlu0 %v1566, 127
      %v2140 = vpop.permute.xlu0 %2139
      %2141 = vrot.lane.b32.xlu0 %v1568, 127
      %v2142 = vpop.permute.xlu0 %2141
      %2143 = vrot.lane.b32.xlu0 %v1570, 127
      %v2144 = vpop.permute.xlu0 %2143
      %v2150 = vsel %vm733, %v2135, 0
      %v2153 = vsel %vm733, %v2136, 0
      %2155 = vmatprep.subr.bf16.mxu0 0
      %2156 = vmatpush1.bf16.msra.mxu0 %v2138
      %2157 = vmatprep.subr.bf16.mxu0 0
      %2158 = vmatpush1.bf16.msra.mxu0 %v2140
      %2159 = vmatprep.subr.bf16.mxu0 0
      %2160 = vmatpush1.bf16.msra.mxu0 %v2142
      %2161 = vmatprep.subr.bf16.mxu0 0
      %2162 = vmatpush1.bf16.msra.mxu0 %v2144
      %2163 = vmatprep.subr.bf16.mxu0 0
      %2164 = vmatpush1.bf16.msra.mxu0 0
      %2165 = vmatprep.subr.bf16.mxu0 0
      %2166 = vmatpush1.bf16.msra.mxu0 0
      %2167 = vmatprep.subr.bf16.mxu0 0
      %2168 = vmatpush1.bf16.msra.mxu0 0
      %2169 = vmatprep.subr.bf16.mxu0 0
      %2170 = vmatpush1.bf16.msra.mxu0 0
      %2171 = vmatprep.subr.bf16.mxu0 0
      %2172 = vmatpush1.bf16.msra.mxu0 0
      %2173 = vmatprep.subr.bf16.mxu0 0
      %2174 = vmatpush1.bf16.msra.mxu0 0
      %2175 = vmatprep.subr.bf16.mxu0 0
      %2176 = vmatpush1.bf16.msra.mxu0 0
      %2177 = vmatprep.subr.bf16.mxu0 0
      %2178 = vmatpush1.bf16.msra.mxu0 0
      %2179 = vmatprep.subr.bf16.mxu0 0
      %2180 = vmatpush1.bf16.msra.mxu0 0
      %2181 = vmatprep.subr.bf16.mxu0 0
      %2182 = vmatpush1.bf16.msra.mxu0 0
      %2183 = vmatprep.subr.bf16.mxu0 0
      %2184 = vmatpush1.bf16.msra.mxu0 0
      %2185 = vmatprep.subr.bf16.mxu0 0
      %2186 = vmatpush1.bf16.msra.mxu0 0
      %2187 = vmatprep.mubr.bf16.mxu0 0
      %2188 = vmatmul.mubr.bf16.gmra.mrb[0].mxu0 %v2150
      %v2189 = vpop.f32.mrb[0].mxu0
      %v2190 = vadd.f32 0.0, %v2189
      %v2191 = vpop.f32.mrb[0].mxu0
      %v2192 = vpop.f32.mrb[0].mxu0
      %v2193 = vadd.f32 0.0, %v2192
      %v2194 = vpop.f32.mrb[0].mxu0
      %2195 = vmatprep.mubr.bf16.mxu0 0
      %2196 = vmatmul.mubr.bf16.gmra.mrb[0].mxu0 %v2153
      %v2197 = vpop.f32.mrb[0].mxu0
      %v2198 = vadd.f32 0.0, %v2197
      %v2199 = vpop.f32.mrb[0].mxu0
      %v2200 = vpop.f32.mrb[0].mxu0
      %v2201 = vadd.f32 0.0, %v2200
      %v2202 = vpop.f32.mrb[0].mxu0
      %2203 = vdwg.mxu0
      %v2208 = vunpack.c.l.b16 %v2118
      %v2209 = vunpack.c.l.b16 %v2119
      %v2210 = vunpack.c.l.b16 %v2120
      %v2211 = vunpack.c.l.b16 %v2121
      %v2212 = vpack.c.b16 %v2209, %v2208
      %v2213 = vpack.c.b16 %v2211, %v2210
      %2214 = vrot.lane.b32.xlu0 %v1563, 7
      %v2215 = vpop.permute.xlu0 %2214
      %2216 = vrot.lane.b32.xlu0 %v1564, 7
      %v2217 = vpop.permute.xlu0 %2216
      %2218 = vrot.lane.b32.xlu0 %v1565, 7
      %v2219 = vpop.permute.xlu0 %2218
      %2220 = vrot.lane.b32.xlu0 %v1566, 7
      %v2221 = vpop.permute.xlu0 %2220
      %2222 = vrot.lane.b32.xlu0 %v1567, 7
      %v2223 = vpop.permute.xlu0 %2222
      %2224 = vrot.lane.b32.xlu0 %v1568, 7
      %v2225 = vpop.permute.xlu0 %2224
      %2226 = vrot.lane.b32.xlu0 %v1569, 7
      %v2227 = vpop.permute.xlu0 %2226
      %2228 = vrot.lane.b32.xlu0 %v1570, 7
      %v2229 = vpop.permute.xlu0 %2228
      %vm2230 = vcmask 56320
      %v2231 = vsel %vm2230, %v2215, %v2217
      %v2232 = vsel %vm2230, %v2219, %v2221
      %v2233 = vsel %vm2230, %v2223, %v2225
      %v2234 = vsel %vm2230, %v2227, %v2229
      %v2240 = vsel %vm733, %v2212, 0
      %v2243 = vsel %vm733, %v2213, 0
      %2245 = vmatprep.subr.bf16.mxu0 0
      %2246 = vmatpush1.bf16.msra.mxu0 %v2231
      %2247 = vmatprep.subr.bf16.mxu0 0
      %2248 = vmatpush1.bf16.msra.mxu0 %v2232
      %2249 = vmatprep.subr.bf16.mxu0 0
      %2250 = vmatpush1.bf16.msra.mxu0 %v2233
      %2251 = vmatprep.subr.bf16.mxu0 0
      %2252 = vmatpush1.bf16.msra.mxu0 %v2234
      %2253 = vmatprep.subr.bf16.mxu0 0
      %2254 = vmatpush1.bf16.msra.mxu0 0
      %2255 = vmatprep.subr.bf16.mxu0 0
      %2256 = vmatpush1.bf16.msra.mxu0 0
      %2257 = vmatprep.subr.bf16.mxu0 0
      %2258 = vmatpush1.bf16.msra.mxu0 0
      %2259 = vmatprep.subr.bf16.mxu0 0
      %2260 = vmatpush1.bf16.msra.mxu0 0
      %2261 = vmatprep.subr.bf16.mxu0 0
      %2262 = vmatpush1.bf16.msra.mxu0 0
      %2263 = vmatprep.subr.bf16.mxu0 0
      %2264 = vmatpush1.bf16.msra.mxu0 0
      %2265 = vmatprep.subr.bf16.mxu0 0
      %2266 = vmatpush1.bf16.msra.mxu0 0
      %2267 = vmatprep.subr.bf16.mxu0 0
      %2268 = vmatpush1.bf16.msra.mxu0 0
      %2269 = vmatprep.subr.bf16.mxu0 0
      %2270 = vmatpush1.bf16.msra.mxu0 0
      %2271 = vmatprep.subr.bf16.mxu0 0
      %2272 = vmatpush1.bf16.msra.mxu0 0
      %2273 = vmatprep.subr.bf16.mxu0 0
      %2274 = vmatpush1.bf16.msra.mxu0 0
      %2275 = vmatprep.subr.bf16.mxu0 0
      %2276 = vmatpush1.bf16.msra.mxu0 0
      %2277 = vmatprep.mubr.bf16.mxu0 0
      %2278 = vmatmul.mubr.bf16.gmra.mrb[0].mxu0 %v2240
      %v2279 = vpop.f32.mrb[0].mxu0
      %v2280 = vadd.f32 %v2190, %v2279
      %v2281 = vpop.f32.mrb[0].mxu0
      %v2282 = vpop.f32.mrb[0].mxu0
      %v2283 = vadd.f32 %v2193, %v2282
      %v2284 = vpop.f32.mrb[0].mxu0
      %2285 = vmatprep.mubr.bf16.mxu0 0
      %2286 = vmatmul.mubr.bf16.gmra.mrb[0].mxu0 %v2243
      %v2287 = vpop.f32.mrb[0].mxu0
      %v2288 = vadd.f32 %v2198, %v2287
      %v2289 = vpop.f32.mrb[0].mxu0
      %v2290 = vpop.f32.mrb[0].mxu0
      %v2291 = vadd.f32 %v2201, %v2290
      %v2292 = vpop.f32.mrb[0].mxu0
      %2293 = vdwg.mxu0
      %s2294 = scalar_lea.vmem %s10, 128
      %v2295 = vld [vmem:[%s2294] sm:$0xf]
      %v2296 = vld [vmem:[%s2294 + $0x4] sm:$0xf]
      %v2297 = vld [vmem:[%s2294 + $0x8] sm:$0xf]
      %v2298 = vld [vmem:[%s2294 + $0xc] sm:$0xf]
      %v2303 = vunpack.c.l.b16 %v2295
      %v2304 = vunpack.c.l.b16 %v2296
      %v2305 = vunpack.c.l.b16 %v2297
      %v2306 = vunpack.c.l.b16 %v2298
      %v2307 = vpack.c.b16 %v2304, %v2303
      %v2308 = vpack.c.b16 %v2306, %v2305
      %2309 = vrot.lane.b32.xlu0 %v1564, 119
      %v2310 = vpop.permute.xlu0 %2309
      %2311 = vrot.lane.b32.xlu0 %v1566, 119
      %v2312 = vpop.permute.xlu0 %2311
      %2313 = vrot.lane.b32.xlu0 %v1568, 119
      %v2314 = vpop.permute.xlu0 %2313
      %2315 = vrot.lane.b32.xlu0 %v1570, 119
      %v2316 = vpop.permute.xlu0 %2315
      %v2322 = vsel %vm733, %v2307, 0
      %v2325 = vsel %vm733, %v2308, 0
      %2327 = vmatprep.subr.bf16.mxu0 0
      %2328 = vmatpush1.bf16.msra.mxu0 %v2310
      %2329 = vmatprep.subr.bf16.mxu0 0
      %2330 = vmatpush1.bf16.msra.mxu0 %v2312
      %2331 = vmatprep.subr.bf16.mxu0 0
      %2332 = vmatpush1.bf16.msra.mxu0 %v2314
      %2333 = vmatprep.subr.bf16.mxu0 0
      %2334 = vmatpush1.bf16.msra.mxu0 %v2316
      %2335 = vmatprep.subr.bf16.mxu0 0
      %2336 = vmatpush1.bf16.msra.mxu0 0
      %2337 = vmatprep.subr.bf16.mxu0 0
      %2338 = vmatpush1.bf16.msra.mxu0 0
      %2339 = vmatprep.subr.bf16.mxu0 0
      %2340 = vmatpush1.bf16.msra.mxu0 0
      %2341 = vmatprep.subr.bf16.mxu0 0
      %2342 = vmatpush1.bf16.msra.mxu0 0
      %2343 = vmatprep.subr.bf16.mxu0 0
      %2344 = vmatpush1.bf16.msra.mxu0 0
      %2345 = vmatprep.subr.bf16.mxu0 0
      %2346 = vmatpush1.bf16.msra.mxu0 0
      %2347 = vmatprep.subr.bf16.mxu0 0
      %2348 = vmatpush1.bf16.msra.mxu0 0
      %2349 = vmatprep.subr.bf16.mxu0 0
      %2350 = vmatpush1.bf16.msra.mxu0 0
      %2351 = vmatprep.subr.bf16.mxu0 0
      %2352 = vmatpush1.bf16.msra.mxu0 0
      %2353 = vmatprep.subr.bf16.mxu0 0
      %2354 = vmatpush1.bf16.msra.mxu0 0
      %2355 = vmatprep.subr.bf16.mxu0 0
      %2356 = vmatpush1.bf16.msra.mxu0 0
      %2357 = vmatprep.subr.bf16.mxu0 0
      %2358 = vmatpush1.bf16.msra.mxu0 0
      %2359 = vmatprep.mubr.bf16.mxu0 0
      %2360 = vmatmul.mubr.bf16.gmra.mrb[0].mxu0 %v2322
      %v2361 = vpop.f32.mrb[0].mxu0
      %v2362 = vadd.f32 0.0, %v2361
      %v2363 = vpop.f32.mrb[0].mxu0
      %v2364 = vpop.f32.mrb[0].mxu0
      %v2365 = vadd.f32 0.0, %v2364
      %v2366 = vpop.f32.mrb[0].mxu0
      %2367 = vmatprep.mubr.bf16.mxu0 0
      %2368 = vmatmul.mubr.bf16.gmra.mrb[0].mxu0 %v2325
      %v2369 = vpop.f32.mrb[0].mxu0
      %v2370 = vadd.f32 0.0, %v2369
      %v2371 = vpop.f32.mrb[0].mxu0
      %v2372 = vpop.f32.mrb[0].mxu0
      %v2373 = vadd.f32 0.0, %v2372
      %v2374 = vpop.f32.mrb[0].mxu0
      %2375 = vdwg.mxu0
      %v2376 = vadd.f32 %v2280, %v2362
      %v2377 = vadd.f32 %v2283, %v2365
      %v2378 = vadd.f32 %v2288, %v2370
      %v2379 = vadd.f32 %v2291, %v2373
      %v2380 = vlaneseq
      %v2381 = vshrl.u32 %v2380, 7
      %v2382 = vsub.s32 0, %v2381
      %v2383 = vrot.slane %v1562, %v2382
      %v2384 = vmul.f32 %v2376, %v2383
      %v2385 = vmul.f32 %v2377, %v2383
      %v2386 = vmul.f32 %v2378, %v2383
      %v2387 = vmul.f32 %v2379, %v2383
      %v2388 = vadd.f32 %v2113, %v2384
      %v2389 = vadd.f32 %v2114, %v2385
      %v2390 = vadd.f32 %v2115, %v2386
      %v2391 = vadd.f32 %v2116, %v2387
      %v2392 = vld [vmem:[#allocation3] sm:$0xff]
      %v2393 = vld [vmem:[#allocation3 + $0x8] sm:$0xff]
      %v2394 = vld [vmem:[#allocation3 + $0x10] sm:$0xff]
      %v2395 = vld [vmem:[#allocation3 + $0x18] sm:$0xff]
      %v2396 = vld [vmem:[#allocation3 + $0x20] sm:$0xff]
      %v2397 = vld [vmem:[#allocation3 + $0x28] sm:$0xff]
      %v2398 = vld [vmem:[#allocation3 + $0x30] sm:$0xff]
      %v2399 = vld [vmem:[#allocation3 + $0x38] sm:$0xff]
      %s2400 = scalar_lea.vmem %s11, 16
      %v2401 = vld [vmem:[%s2400] sm:$0xf]
      %v2402 = vld [vmem:[%s2400 + $0x4] sm:$0xf]
      %v2403 = vld [vmem:[%s2400 + $0x8] sm:$0xf]
      %v2404 = vld [vmem:[%s2400 + $0xc] sm:$0xf]
      %s2405 = scalar_lea.vmem %s11, 64
      %v2406 = vld [vmem:[%s2405] sm:$0xf]
      %v2407 = vld [vmem:[%s2405 + $0x4] sm:$0xf]
      %v2408 = vld [vmem:[%s2405 + $0x8] sm:$0xf]
      %v2409 = vld [vmem:[%s2405 + $0xc] sm:$0xf]
      %v2414 = vunpack.c.l.b16 %v2406
      %v2415 = vunpack.c.l.b16 %v2407
      %v2416 = vunpack.c.l.b16 %v2408
      %v2417 = vunpack.c.l.b16 %v2409
      %v2418 = vpack.c.b16 %v2415, %v2414
      %v2419 = vpack.c.b16 %v2417, %v2416
      %v2421 = vsel %vm733, %v2418, 0
      %v2424 = vsel %vm733, %v2419, 0
      %2426 = vmatprep.subr.bf16.mxu0 0
      %2427 = vmatpush1.bf16.msra.mxu0 %v2393
      %2428 = vmatprep.subr.bf16.mxu0 0
      %2429 = vmatpush1.bf16.msra.mxu0 %v2395
      %2430 = vmatprep.subr.bf16.mxu0 0
      %2431 = vmatpush1.bf16.msra.mxu0 %v2397
      %2432 = vmatprep.subr.bf16.mxu0 0
      %2433 = vmatpush1.bf16.msra.mxu0 %v2399
      %2434 = vmatprep.subr.bf16.mxu0 0
      %2435 = vmatpush1.bf16.msra.mxu0 0
      %2436 = vmatprep.subr.bf16.mxu0 0
      %2437 = vmatpush1.bf16.msra.mxu0 0
      %2438 = vmatprep.subr.bf16.mxu0 0
      %2439 = vmatpush1.bf16.msra.mxu0 0
      %2440 = vmatprep.subr.bf16.mxu0 0
      %2441 = vmatpush1.bf16.msra.mxu0 0
      %2442 = vmatprep.subr.bf16.mxu0 0
      %2443 = vmatpush1.bf16.msra.mxu0 0
      %2444 = vmatprep.subr.bf16.mxu0 0
      %2445 = vmatpush1.bf16.msra.mxu0 0
      %2446 = vmatprep.subr.bf16.mxu0 0
      %2447 = vmatpush1.bf16.msra.mxu0 0
      %2448 = vmatprep.subr.bf16.mxu0 0
      %2449 = vmatpush1.bf16.msra.mxu0 0
      %2450 = vmatprep.subr.bf16.mxu0 0
      %2451 = vmatpush1.bf16.msra.mxu0 0
      %2452 = vmatprep.subr.bf16.mxu0 0
      %2453 = vmatpush1.bf16.msra.mxu0 0
      %2454 = vmatprep.subr.bf16.mxu0 0
      %2455 = vmatpush1.bf16.msra.mxu0 0
      %2456 = vmatprep.subr.bf16.mxu0 0
      %2457 = vmatpush1.bf16.msra.mxu0 0
      %2458 = vmatprep.mubr.bf16.mxu0 0
      %2459 = vmatmul.mubr.bf16.gmra.mrb[0].mxu0 %v2421
      %v2460 = vpop.f32.mrb[0].mxu0
      %v2461 = vadd.f32 0.0, %v2460
      %v2462 = vpop.f32.mrb[0].mxu0
      %v2463 = vpop.f32.mrb[0].mxu0
      %v2464 = vadd.f32 0.0, %v2463
      %v2465 = vpop.f32.mrb[0].mxu0
      %2466 = vmatprep.mubr.bf16.mxu0 0
      %2467 = vmatmul.mubr.bf16.gmra.mrb[0].mxu0 %v2424
      %v2468 = vpop.f32.mrb[0].mxu0
      %v2469 = vadd.f32 0.0, %v2468
      %v2470 = vpop.f32.mrb[0].mxu0
      %v2471 = vpop.f32.mrb[0].mxu0
      %v2472 = vadd.f32 0.0, %v2471
      %v2473 = vpop.f32.mrb[0].mxu0
      %2474 = vdwg.mxu0
      %v2479 = vunpack.c.l.b16 %v2401
      %v2480 = vunpack.c.l.b16 %v2402
      %v2481 = vunpack.c.l.b16 %v2403
      %v2482 = vunpack.c.l.b16 %v2404
      %v2483 = vpack.c.b16 %v2480, %v2479
      %v2484 = vpack.c.b16 %v2482, %v2481
      %2493 = vrot.lane.b32.xlu0 %v2392, 8
      %v2494 = vpop.permute.xlu0 %2493
      %2495 = vrot.lane.b32.xlu0 %v2393, 8
      %v2496 = vpop.permute.xlu0 %2495
      %2497 = vrot.lane.b32.xlu0 %v2394, 8
      %v2498 = vpop.permute.xlu0 %2497
      %2499 = vrot.lane.b32.xlu0 %v2395, 8
      %v2500 = vpop.permute.xlu0 %2499
      %2501 = vrot.lane.b32.xlu0 %v2396, 8
      %v2502 = vpop.permute.xlu0 %2501
      %2503 = vrot.lane.b32.xlu0 %v2397, 8
      %v2504 = vpop.permute.xlu0 %2503
      %2505 = vrot.lane.b32.xlu0 %v2398, 8
      %v2506 = vpop.permute.xlu0 %2505
      %2507 = vrot.lane.b32.xlu0 %v2399, 8
      %v2508 = vpop.permute.xlu0 %2507
      %v2509 = vsel %vm1680, %v2494, %v2496
      %v2510 = vsel %vm1680, %v2498, %v2500
      %v2511 = vsel %vm1680, %v2502, %v2504
      %v2512 = vsel %vm1680, %v2506, %v2508
      %v2518 = vsel %vm733, %v2483, 0
      %v2521 = vsel %vm733, %v2484, 0
      %2523 = vmatprep.subr.bf16.mxu0 0
      %2524 = vmatpush1.bf16.msra.mxu0 %v2509
      %2525 = vmatprep.subr.bf16.mxu0 0
      %2526 = vmatpush1.bf16.msra.mxu0 %v2510
      %2527 = vmatprep.subr.bf16.mxu0 0
      %2528 = vmatpush1.bf16.msra.mxu0 %v2511
      %2529 = vmatprep.subr.bf16.mxu0 0
      %2530 = vmatpush1.bf16.msra.mxu0 %v2512
      %2531 = vmatprep.subr.bf16.mxu0 0
      %2532 = vmatpush1.bf16.msra.mxu0 0
      %2533 = vmatprep.subr.bf16.mxu0 0
      %2534 = vmatpush1.bf16.msra.mxu0 0
      %2535 = vmatprep.subr.bf16.mxu0 0
      %2536 = vmatpush1.bf16.msra.mxu0 0
      %2537 = vmatprep.subr.bf16.mxu0 0
      %2538 = vmatpush1.bf16.msra.mxu0 0
      %2539 = vmatprep.subr.bf16.mxu0 0
      %2540 = vmatpush1.bf16.msra.mxu0 0
      %2541 = vmatprep.subr.bf16.mxu0 0
      %2542 = vmatpush1.bf16.msra.mxu0 0
      %2543 = vmatprep.subr.bf16.mxu0 0
      %2544 = vmatpush1.bf16.msra.mxu0 0
      %2545 = vmatprep.subr.bf16.mxu0 0
      %2546 = vmatpush1.bf16.msra.mxu0 0
      %2547 = vmatprep.subr.bf16.mxu0 0
      %2548 = vmatpush1.bf16.msra.mxu0 0
      %2549 = vmatprep.subr.bf16.mxu0 0
      %2550 = vmatpush1.bf16.msra.mxu0 0
      %2551 = vmatprep.subr.bf16.mxu0 0
      %2552 = vmatpush1.bf16.msra.mxu0 0
      %2553 = vmatprep.subr.bf16.mxu0 0
      %2554 = vmatpush1.bf16.msra.mxu0 0
      %2555 = vmatprep.mubr.bf16.mxu0 0
      %2556 = vmatmul.mubr.bf16.gmra.mrb[0].mxu0 %v2518
      %v2557 = vpop.f32.mrb[0].mxu0
      %v2558 = vadd.f32 %v2461, %v2557
      %v2559 = vpop.f32.mrb[0].mxu0
      %v2560 = vpop.f32.mrb[0].mxu0
      %v2561 = vadd.f32 %v2464, %v2560
      %v2562 = vpop.f32.mrb[0].mxu0
      %2563 = vmatprep.mubr.bf16.mxu0 0
      %2564 = vmatmul.mubr.bf16.gmra.mrb[0].mxu0 %v2521
      %v2565 = vpop.f32.mrb[0].mxu0
      %v2566 = vadd.f32 %v2469, %v2565
      %v2567 = vpop.f32.mrb[0].mxu0
      %v2568 = vpop.f32.mrb[0].mxu0
      %v2569 = vadd.f32 %v2472, %v2568
      %v2570 = vpop.f32.mrb[0].mxu0
      %2571 = vdwg.mxu0
      %s2572 = scalar_lea.vmem %s11, 112
      %v2573 = vld [vmem:[%s2572] sm:$0xf]
      %v2574 = vld [vmem:[%s2572 + $0x4] sm:$0xf]
      %v2575 = vld [vmem:[%s2572 + $0x8] sm:$0xf]
      %v2576 = vld [vmem:[%s2572 + $0xc] sm:$0xf]
      %v2581 = vunpack.c.l.b16 %v2573
      %v2582 = vunpack.c.l.b16 %v2574
      %v2583 = vunpack.c.l.b16 %v2575
      %v2584 = vunpack.c.l.b16 %v2576
      %v2585 = vpack.c.b16 %v2582, %v2581
      %v2586 = vpack.c.b16 %v2584, %v2583
      %2587 = vrot.lane.b32.xlu0 %v2393, 120
      %v2588 = vpop.permute.xlu0 %2587
      %2589 = vrot.lane.b32.xlu0 %v2395, 120
      %v2590 = vpop.permute.xlu0 %2589
      %2591 = vrot.lane.b32.xlu0 %v2397, 120
      %v2592 = vpop.permute.xlu0 %2591
      %2593 = vrot.lane.b32.xlu0 %v2399, 120
      %v2594 = vpop.permute.xlu0 %2593
      %v2600 = vsel %vm733, %v2585, 0
      %v2603 = vsel %vm733, %v2586, 0
      %2605 = vmatprep.subr.bf16.mxu0 0
      %2606 = vmatpush1.bf16.msra.mxu0 %v2588
      %2607 = vmatprep.subr.bf16.mxu0 0
      %2608 = vmatpush1.bf16.msra.mxu0 %v2590
      %2609 = vmatprep.subr.bf16.mxu0 0
      %2610 = vmatpush1.bf16.msra.mxu0 %v2592
      %2611 = vmatprep.subr.bf16.mxu0 0
      %2612 = vmatpush1.bf16.msra.mxu0 %v2594
      %2613 = vmatprep.subr.bf16.mxu0 0
      %2614 = vmatpush1.bf16.msra.mxu0 0
      %2615 = vmatprep.subr.bf16.mxu0 0
      %2616 = vmatpush1.bf16.msra.mxu0 0
      %2617 = vmatprep.subr.bf16.mxu0 0
      %2618 = vmatpush1.bf16.msra.mxu0 0
      %2619 = vmatprep.subr.bf16.mxu0 0
      %2620 = vmatpush1.bf16.msra.mxu0 0
      %2621 = vmatprep.subr.bf16.mxu0 0
      %2622 = vmatpush1.bf16.msra.mxu0 0
      %2623 = vmatprep.subr.bf16.mxu0 0
      %2624 = vmatpush1.bf16.msra.mxu0 0
      %2625 = vmatprep.subr.bf16.mxu0 0
      %2626 = vmatpush1.bf16.msra.mxu0 0
      %2627 = vmatprep.subr.bf16.mxu0 0
      %2628 = vmatpush1.bf16.msra.mxu0 0
      %2629 = vmatprep.subr.bf16.mxu0 0
      %2630 = vmatpush1.bf16.msra.mxu0 0
      %2631 = vmatprep.subr.bf16.mxu0 0
      %2632 = vmatpush1.bf16.msra.mxu0 0
      %2633 = vmatprep.subr.bf16.mxu0 0
      %2634 = vmatpush1.bf16.msra.mxu0 0
      %2635 = vmatprep.subr.bf16.mxu0 0
      %2636 = vmatpush1.bf16.msra.mxu0 0
      %2637 = vmatprep.mubr.bf16.mxu0 0
      %2638 = vmatmul.mubr.bf16.gmra.mrb[0].mxu0 %v2600
      %v2639 = vpop.f32.mrb[0].mxu0
      %v2640 = vadd.f32 0.0, %v2639
      %v2641 = vpop.f32.mrb[0].mxu0
      %v2642 = vpop.f32.mrb[0].mxu0
      %v2643 = vadd.f32 0.0, %v2642
      %v2644 = vpop.f32.mrb[0].mxu0
      %2645 = vmatprep.mubr.bf16.mxu0 0
      %2646 = vmatmul.mubr.bf16.gmra.mrb[0].mxu0 %v2603
      %v2647 = vpop.f32.mrb[0].mxu0
      %v2648 = vadd.f32 0.0, %v2647
      %v2649 = vpop.f32.mrb[0].mxu0
      %v2650 = vpop.f32.mrb[0].mxu0
      %v2651 = vadd.f32 0.0, %v2650
      %v2652 = vpop.f32.mrb[0].mxu0
      %2653 = vdwg.mxu0
      %v2654 = vadd.f32 %v2558, %v2640
      %v2655 = vadd.f32 %v2561, %v2643
      %v2656 = vadd.f32 %v2566, %v2648
      %v2657 = vadd.f32 %v2569, %v2651
      %v2658 = vld [vmem:[%s11] sm:$0xf]
      %v2659 = vld [vmem:[%s11 + $0x4] sm:$0xf]
      %v2660 = vld [vmem:[%s11 + $0x8] sm:$0xf]
      %v2661 = vld [vmem:[%s11 + $0xc] sm:$0xf]
      %s2662 = scalar_lea.vmem %s11, 48
      %v2663 = vld [vmem:[%s2662] sm:$0xf]
      %v2664 = vld [vmem:[%s2662 + $0x4] sm:$0xf]
      %v2665 = vld [vmem:[%s2662 + $0x8] sm:$0xf]
      %v2666 = vld [vmem:[%s2662 + $0xc] sm:$0xf]
      %v2671 = vunpack.c.l.b16 %v2663
      %v2672 = vunpack.c.l.b16 %v2664
      %v2673 = vunpack.c.l.b16 %v2665
      %v2674 = vunpack.c.l.b16 %v2666
      %v2675 = vpack.c.b16 %v2672, %v2671
      %v2676 = vpack.c.b16 %v2674, %v2673
      %2677 = vrot.lane.b32.xlu0 %v2392, 1
      %v2678 = vpop.permute.xlu0 %2677
      %2679 = vrot.lane.b32.xlu0 %v2393, 1
      %v2680 = vpop.permute.xlu0 %2679
      %2681 = vrot.lane.b32.xlu0 %v2394, 1
      %v2682 = vpop.permute.xlu0 %2681
      %2683 = vrot.lane.b32.xlu0 %v2395, 1
      %v2684 = vpop.permute.xlu0 %2683
      %2685 = vrot.lane.b32.xlu0 %v2396, 1
      %v2686 = vpop.permute.xlu0 %2685
      %2687 = vrot.lane.b32.xlu0 %v2397, 1
      %v2688 = vpop.permute.xlu0 %2687
      %2689 = vrot.lane.b32.xlu0 %v2398, 1
      %v2690 = vpop.permute.xlu0 %2689
      %2691 = vrot.lane.b32.xlu0 %v2399, 1
      %v2692 = vpop.permute.xlu0 %2691
      %v2693 = vsel %vm1865, %v2678, %v2680
      %v2694 = vsel %vm1865, %v2682, %v2684
      %v2695 = vsel %vm1865, %v2686, %v2688
      %v2696 = vsel %vm1865, %v2690, %v2692
      %v2702 = vsel %vm733, %v2675, 0
      %v2705 = vsel %vm733, %v2676, 0
      %2707 = vmatprep.subr.bf16.mxu0 0
      %2708 = vmatpush1.bf16.msra.mxu0 %v2693
      %2709 = vmatprep.subr.bf16.mxu0 0
      %2710 = vmatpush1.bf16.msra.mxu0 %v2694
      %2711 = vmatprep.subr.bf16.mxu0 0
      %2712 = vmatpush1.bf16.msra.mxu0 %v2695
      %2713 = vmatprep.subr.bf16.mxu0 0
      %2714 = vmatpush1.bf16.msra.mxu0 %v2696
      %2715 = vmatprep.subr.bf16.mxu0 0
      %2716 = vmatpush1.bf16.msra.mxu0 0
      %2717 = vmatprep.subr.bf16.mxu0 0
      %2718 = vmatpush1.bf16.msra.mxu0 0
      %2719 = vmatprep.subr.bf16.mxu0 0
      %2720 = vmatpush1.bf16.msra.mxu0 0
      %2721 = vmatprep.subr.bf16.mxu0 0
      %2722 = vmatpush1.bf16.msra.mxu0 0
      %2723 = vmatprep.subr.bf16.mxu0 0
      %2724 = vmatpush1.bf16.msra.mxu0 0
      %2725 = vmatprep.subr.bf16.mxu0 0
      %2726 = vmatpush1.bf16.msra.mxu0 0
      %2727 = vmatprep.subr.bf16.mxu0 0
      %2728 = vmatpush1.bf16.msra.mxu0 0
      %2729 = vmatprep.subr.bf16.mxu0 0
      %2730 = vmatpush1.bf16.msra.mxu0 0
      %2731 = vmatprep.subr.bf16.mxu0 0
      %2732 = vmatpush1.bf16.msra.mxu0 0
      %2733 = vmatprep.subr.bf16.mxu0 0
      %2734 = vmatpush1.bf16.msra.mxu0 0
      %2735 = vmatprep.subr.bf16.mxu0 0
      %2736 = vmatpush1.bf16.msra.mxu0 0
      %2737 = vmatprep.subr.bf16.mxu0 0
      %2738 = vmatpush1.bf16.msra.mxu0 0
      %2739 = vmatprep.mubr.bf16.mxu0 0
      %2740 = vmatmul.mubr.bf16.gmra.mrb[0].mxu0 %v2702
      %v2741 = vpop.f32.mrb[0].mxu0
      %v2742 = vadd.f32 0.0, %v2741
      %v2743 = vpop.f32.mrb[0].mxu0
      %v2744 = vpop.f32.mrb[0].mxu0
      %v2745 = vadd.f32 0.0, %v2744
      %v2746 = vpop.f32.mrb[0].mxu0
      %2747 = vmatprep.mubr.bf16.mxu0 0
      %2748 = vmatmul.mubr.bf16.gmra.mrb[0].mxu0 %v2705
      %v2749 = vpop.f32.mrb[0].mxu0
      %v2750 = vadd.f32 0.0, %v2749
      %v2751 = vpop.f32.mrb[0].mxu0
      %v2752 = vpop.f32.mrb[0].mxu0
      %v2753 = vadd.f32 0.0, %v2752
      %v2754 = vpop.f32.mrb[0].mxu0
      %2755 = vdwg.mxu0
      %v2760 = vunpack.c.l.b16 %v2658
      %v2761 = vunpack.c.l.b16 %v2659
      %v2762 = vunpack.c.l.b16 %v2660
      %v2763 = vunpack.c.l.b16 %v2661
      %v2764 = vpack.c.b16 %v2761, %v2760
      %v2765 = vpack.c.b16 %v2763, %v2762
      %2766 = vrot.lane.b32.xlu0 %v2392, 9
      %v2767 = vpop.permute.xlu0 %2766
      %2768 = vrot.lane.b32.xlu0 %v2393, 9
      %v2769 = vpop.permute.xlu0 %2768
      %2770 = vrot.lane.b32.xlu0 %v2394, 9
      %v2771 = vpop.permute.xlu0 %2770
      %2772 = vrot.lane.b32.xlu0 %v2395, 9
      %v2773 = vpop.permute.xlu0 %2772
      %2774 = vrot.lane.b32.xlu0 %v2396, 9
      %v2775 = vpop.permute.xlu0 %2774
      %2776 = vrot.lane.b32.xlu0 %v2397, 9
      %v2777 = vpop.permute.xlu0 %2776
      %2778 = vrot.lane.b32.xlu0 %v2398, 9
      %v2779 = vpop.permute.xlu0 %2778
      %2780 = vrot.lane.b32.xlu0 %v2399, 9
      %v2781 = vpop.permute.xlu0 %2780
      %v2782 = vsel %vm1955, %v2767, %v2769
      %v2783 = vsel %vm1955, %v2771, %v2773
      %v2784 = vsel %vm1955, %v2775, %v2777
      %v2785 = vsel %vm1955, %v2779, %v2781
      %v2791 = vsel %vm733, %v2764, 0
      %v2794 = vsel %vm733, %v2765, 0
      %2796 = vmatprep.subr.bf16.mxu0 0
      %2797 = vmatpush1.bf16.msra.mxu0 %v2782
      %2798 = vmatprep.subr.bf16.mxu0 0
      %2799 = vmatpush1.bf16.msra.mxu0 %v2783
      %2800 = vmatprep.subr.bf16.mxu0 0
      %2801 = vmatpush1.bf16.msra.mxu0 %v2784
      %2802 = vmatprep.subr.bf16.mxu0 0
      %2803 = vmatpush1.bf16.msra.mxu0 %v2785
      %2804 = vmatprep.subr.bf16.mxu0 0
      %2805 = vmatpush1.bf16.msra.mxu0 0
      %2806 = vmatprep.subr.bf16.mxu0 0
      %2807 = vmatpush1.bf16.msra.mxu0 0
      %2808 = vmatprep.subr.bf16.mxu0 0
      %2809 = vmatpush1.bf16.msra.mxu0 0
      %2810 = vmatprep.subr.bf16.mxu0 0
      %2811 = vmatpush1.bf16.msra.mxu0 0
      %2812 = vmatprep.subr.bf16.mxu0 0
      %2813 = vmatpush1.bf16.msra.mxu0 0
      %2814 = vmatprep.subr.bf16.mxu0 0
      %2815 = vmatpush1.bf16.msra.mxu0 0
      %2816 = vmatprep.subr.bf16.mxu0 0
      %2817 = vmatpush1.bf16.msra.mxu0 0
      %2818 = vmatprep.subr.bf16.mxu0 0
      %2819 = vmatpush1.bf16.msra.mxu0 0
      %2820 = vmatprep.subr.bf16.mxu0 0
      %2821 = vmatpush1.bf16.msra.mxu0 0
      %2822 = vmatprep.subr.bf16.mxu0 0
      %2823 = vmatpush1.bf16.msra.mxu0 0
      %2824 = vmatprep.subr.bf16.mxu0 0
      %2825 = vmatpush1.bf16.msra.mxu0 0
      %2826 = vmatprep.subr.bf16.mxu0 0
      %2827 = vmatpush1.bf16.msra.mxu0 0
      %2828 = vmatprep.mubr.bf16.mxu0 0
      %2829 = vmatmul.mubr.bf16.gmra.mrb[0].mxu0 %v2791
      %v2830 = vpop.f32.mrb[0].mxu0
      %v2831 = vadd.f32 %v2742, %v2830
      %v2832 = vpop.f32.mrb[0].mxu0
      %v2833 = vpop.f32.mrb[0].mxu0
      %v2834 = vadd.f32 %v2745, %v2833
      %v2835 = vpop.f32.mrb[0].mxu0
      %2836 = vmatprep.mubr.bf16.mxu0 0
      %2837 = vmatmul.mubr.bf16.gmra.mrb[0].mxu0 %v2794
      %v2838 = vpop.f32.mrb[0].mxu0
      %v2839 = vadd.f32 %v2750, %v2838
      %v2840 = vpop.f32.mrb[0].mxu0
      %v2841 = vpop.f32.mrb[0].mxu0
      %v2842 = vadd.f32 %v2753, %v2841
      %v2843 = vpop.f32.mrb[0].mxu0
      %2844 = vdwg.mxu0
      %s2845 = scalar_lea.vmem %s11, 96
      %v2846 = vld [vmem:[%s2845] sm:$0xf]
      %v2847 = vld [vmem:[%s2845 + $0x4] sm:$0xf]
      %v2848 = vld [vmem:[%s2845 + $0x8] sm:$0xf]
      %v2849 = vld [vmem:[%s2845 + $0xc] sm:$0xf]
      %v2854 = vunpack.c.l.b16 %v2846
      %v2855 = vunpack.c.l.b16 %v2847
      %v2856 = vunpack.c.l.b16 %v2848
      %v2857 = vunpack.c.l.b16 %v2849
      %v2858 = vpack.c.b16 %v2855, %v2854
      %v2859 = vpack.c.b16 %v2857, %v2856
      %2860 = vrot.lane.b32.xlu0 %v2393, 121
      %v2861 = vpop.permute.xlu0 %2860
      %2862 = vrot.lane.b32.xlu0 %v2395, 121
      %v2863 = vpop.permute.xlu0 %2862
      %2864 = vrot.lane.b32.xlu0 %v2397, 121
      %v2865 = vpop.permute.xlu0 %2864
      %2866 = vrot.lane.b32.xlu0 %v2399, 121
      %v2867 = vpop.permute.xlu0 %2866
      %v2873 = vsel %vm733, %v2858, 0
      %v2876 = vsel %vm733, %v2859, 0
      %2878 = vmatprep.subr.bf16.mxu0 0
      %2879 = vmatpush1.bf16.msra.mxu0 %v2861
      %2880 = vmatprep.subr.bf16.mxu0 0
      %2881 = vmatpush1.bf16.msra.mxu0 %v2863
      %2882 = vmatprep.subr.bf16.mxu0 0
      %2883 = vmatpush1.bf16.msra.mxu0 %v2865
      %2884 = vmatprep.subr.bf16.mxu0 0
      %2885 = vmatpush1.bf16.msra.mxu0 %v2867
      %2886 = vmatprep.subr.bf16.mxu0 0
      %2887 = vmatpush1.bf16.msra.mxu0 0
      %2888 = vmatprep.subr.bf16.mxu0 0
      %2889 = vmatpush1.bf16.msra.mxu0 0
      %2890 = vmatprep.subr.bf16.mxu0 0
      %2891 = vmatpush1.bf16.msra.mxu0 0
      %2892 = vmatprep.subr.bf16.mxu0 0
      %2893 = vmatpush1.bf16.msra.mxu0 0
      %2894 = vmatprep.subr.bf16.mxu0 0
      %2895 = vmatpush1.bf16.msra.mxu0 0
      %2896 = vmatprep.subr.bf16.mxu0 0
      %2897 = vmatpush1.bf16.msra.mxu0 0
      %2898 = vmatprep.subr.bf16.mxu0 0
      %2899 = vmatpush1.bf16.msra.mxu0 0
      %2900 = vmatprep.subr.bf16.mxu0 0
      %2901 = vmatpush1.bf16.msra.mxu0 0
      %2902 = vmatprep.subr.bf16.mxu0 0
      %2903 = vmatpush1.bf16.msra.mxu0 0
      %2904 = vmatprep.subr.bf16.mxu0 0
      %2905 = vmatpush1.bf16.msra.mxu0 0
      %2906 = vmatprep.subr.bf16.mxu0 0
      %2907 = vmatpush1.bf16.msra.mxu0 0
      %2908 = vmatprep.subr.bf16.mxu0 0
      %2909 = vmatpush1.bf16.msra.mxu0 0
      %2910 = vmatprep.mubr.bf16.mxu0 0
      %2911 = vmatmul.mubr.bf16.gmra.mrb[0].mxu0 %v2873
      %v2912 = vpop.f32.mrb[0].mxu0
      %v2913 = vadd.f32 0.0, %v2912
      %v2914 = vpop.f32.mrb[0].mxu0
      %v2915 = vpop.f32.mrb[0].mxu0
      %v2916 = vadd.f32 0.0, %v2915
      %v2917 = vpop.f32.mrb[0].mxu0
      %2918 = vmatprep.mubr.bf16.mxu0 0
      %2919 = vmatmul.mubr.bf16.gmra.mrb[0].mxu0 %v2876
      %v2920 = vpop.f32.mrb[0].mxu0
      %v2921 = vadd.f32 0.0, %v2920
      %v2922 = vpop.f32.mrb[0].mxu0
      %v2923 = vpop.f32.mrb[0].mxu0
      %v2924 = vadd.f32 0.0, %v2923
      %v2925 = vpop.f32.mrb[0].mxu0
      %2926 = vdwg.mxu0
      %v2927 = vadd.f32 %v2831, %v2913
      %v2928 = vadd.f32 %v2834, %v2916
      %v2929 = vadd.f32 %v2839, %v2921
      %v2930 = vadd.f32 %v2842, %v2924
      %v2931 = vmul.f32 %v2927, %v2108
      %v2932 = vmul.f32 %v2928, %v2108
      %v2933 = vmul.f32 %v2929, %v2108
      %v2934 = vmul.f32 %v2930, %v2108
      %v2935 = vadd.f32 %v2654, %v2931
      %v2936 = vadd.f32 %v2655, %v2932
      %v2937 = vadd.f32 %v2656, %v2933
      %v2938 = vadd.f32 %v2657, %v2934
      %s2939 = scalar_lea.vmem %s11, 32
      %v2940 = vld [vmem:[%s2939] sm:$0xf]
      %v2941 = vld [vmem:[%s2939 + $0x4] sm:$0xf]
      %v2942 = vld [vmem:[%s2939 + $0x8] sm:$0xf]
      %v2943 = vld [vmem:[%s2939 + $0xc] sm:$0xf]
      %s2944 = scalar_lea.vmem %s11, 80
      %v2945 = vld [vmem:[%s2944] sm:$0xf]
      %v2946 = vld [vmem:[%s2944 + $0x4] sm:$0xf]
      %v2947 = vld [vmem:[%s2944 + $0x8] sm:$0xf]
      %v2948 = vld [vmem:[%s2944 + $0xc] sm:$0xf]
      %v2953 = vunpack.c.l.b16 %v2945
      %v2954 = vunpack.c.l.b16 %v2946
      %v2955 = vunpack.c.l.b16 %v2947
      %v2956 = vunpack.c.l.b16 %v2948
      %v2957 = vpack.c.b16 %v2954, %v2953
      %v2958 = vpack.c.b16 %v2956, %v2955
      %2959 = vrot.lane.b32.xlu0 %v2393, 127
      %v2960 = vpop.permute.xlu0 %2959
      %2961 = vrot.lane.b32.xlu0 %v2395, 127
      %v2962 = vpop.permute.xlu0 %2961
      %2963 = vrot.lane.b32.xlu0 %v2397, 127
      %v2964 = vpop.permute.xlu0 %2963
      %2965 = vrot.lane.b32.xlu0 %v2399, 127
      %v2966 = vpop.permute.xlu0 %2965
      %v2972 = vsel %vm733, %v2957, 0
      %v2975 = vsel %vm733, %v2958, 0
      %2977 = vmatprep.subr.bf16.mxu0 0
      %2978 = vmatpush1.bf16.msra.mxu0 %v2960
      %2979 = vmatprep.subr.bf16.mxu0 0
      %2980 = vmatpush1.bf16.msra.mxu0 %v2962
      %2981 = vmatprep.subr.bf16.mxu0 0
      %2982 = vmatpush1.bf16.msra.mxu0 %v2964
      %2983 = vmatprep.subr.bf16.mxu0 0
      %2984 = vmatpush1.bf16.msra.mxu0 %v2966
      %2985 = vmatprep.subr.bf16.mxu0 0
      %2986 = vmatpush1.bf16.msra.mxu0 0
      %2987 = vmatprep.subr.bf16.mxu0 0
      %2988 = vmatpush1.bf16.msra.mxu0 0
      %2989 = vmatprep.subr.bf16.mxu0 0
      %2990 = vmatpush1.bf16.msra.mxu0 0
      %2991 = vmatprep.subr.bf16.mxu0 0
      %2992 = vmatpush1.bf16.msra.mxu0 0
      %2993 = vmatprep.subr.bf16.mxu0 0
      %2994 = vmatpush1.bf16.msra.mxu0 0
      %2995 = vmatprep.subr.bf16.mxu0 0
      %2996 = vmatpush1.bf16.msra.mxu0 0
      %2997 = vmatprep.subr.bf16.mxu0 0
      %2998 = vmatpush1.bf16.msra.mxu0 0
      %2999 = vmatprep.subr.bf16.mxu0 0
      %3000 = vmatpush1.bf16.msra.mxu0 0
      %3001 = vmatprep.subr.bf16.mxu0 0
      %3002 = vmatpush1.bf16.msra.mxu0 0
      %3003 = vmatprep.subr.bf16.mxu0 0
      %3004 = vmatpush1.bf16.msra.mxu0 0
      %3005 = vmatprep.subr.bf16.mxu0 0
      %3006 = vmatpush1.bf16.msra.mxu0 0
      %3007 = vmatprep.subr.bf16.mxu0 0
      %3008 = vmatpush1.bf16.msra.mxu0 0
      %3009 = vmatprep.mubr.bf16.mxu0 0
      %3010 = vmatmul.mubr.bf16.gmra.mrb[0].mxu0 %v2972
      %v3011 = vpop.f32.mrb[0].mxu0
      %v3012 = vadd.f32 0.0, %v3011
      %v3013 = vpop.f32.mrb[0].mxu0
      %v3014 = vpop.f32.mrb[0].mxu0
      %v3015 = vadd.f32 0.0, %v3014
      %v3016 = vpop.f32.mrb[0].mxu0
      %3017 = vmatprep.mubr.bf16.mxu0 0
      %3018 = vmatmul.mubr.bf16.gmra.mrb[0].mxu0 %v2975
      %v3019 = vpop.f32.mrb[0].mxu0
      %v3020 = vadd.f32 0.0, %v3019
      %v3021 = vpop.f32.mrb[0].mxu0
      %v3022 = vpop.f32.mrb[0].mxu0
      %v3023 = vadd.f32 0.0, %v3022
      %v3024 = vpop.f32.mrb[0].mxu0
      %3025 = vdwg.mxu0
      %v3030 = vunpack.c.l.b16 %v2940
      %v3031 = vunpack.c.l.b16 %v2941
      %v3032 = vunpack.c.l.b16 %v2942
      %v3033 = vunpack.c.l.b16 %v2943
      %v3034 = vpack.c.b16 %v3031, %v3030
      %v3035 = vpack.c.b16 %v3033, %v3032
      %3036 = vrot.lane.b32.xlu0 %v2392, 7
      %v3037 = vpop.permute.xlu0 %3036
      %3038 = vrot.lane.b32.xlu0 %v2393, 7
      %v3039 = vpop.permute.xlu0 %3038
      %3040 = vrot.lane.b32.xlu0 %v2394, 7
      %v3041 = vpop.permute.xlu0 %3040
      %3042 = vrot.lane.b32.xlu0 %v2395, 7
      %v3043 = vpop.permute.xlu0 %3042
      %3044 = vrot.lane.b32.xlu0 %v2396, 7
      %v3045 = vpop.permute.xlu0 %3044
      %3046 = vrot.lane.b32.xlu0 %v2397, 7
      %v3047 = vpop.permute.xlu0 %3046
      %3048 = vrot.lane.b32.xlu0 %v2398, 7
      %v3049 = vpop.permute.xlu0 %3048
      %3050 = vrot.lane.b32.xlu0 %v2399, 7
      %v3051 = vpop.permute.xlu0 %3050
      %v3052 = vsel %vm2230, %v3037, %v3039
      %v3053 = vsel %vm2230, %v3041, %v3043
      %v3054 = vsel %vm2230, %v3045, %v3047
      %v3055 = vsel %vm2230, %v3049, %v3051
      %v3061 = vsel %vm733, %v3034, 0
      %v3064 = vsel %vm733, %v3035, 0
      %3066 = vmatprep.subr.bf16.mxu0 0
      %3067 = vmatpush1.bf16.msra.mxu0 %v3052
      %3068 = vmatprep.subr.bf16.mxu0 0
      %3069 = vmatpush1.bf16.msra.mxu0 %v3053
      %3070 = vmatprep.subr.bf16.mxu0 0
      %3071 = vmatpush1.bf16.msra.mxu0 %v3054
      %3072 = vmatprep.subr.bf16.mxu0 0
      %3073 = vmatpush1.bf16.msra.mxu0 %v3055
      %3074 = vmatprep.subr.bf16.mxu0 0
      %3075 = vmatpush1.bf16.msra.mxu0 0
      %3076 = vmatprep.subr.bf16.mxu0 0
      %3077 = vmatpush1.bf16.msra.mxu0 0
      %3078 = vmatprep.subr.bf16.mxu0 0
      %3079 = vmatpush1.bf16.msra.mxu0 0
      %3080 = vmatprep.subr.bf16.mxu0 0
      %3081 = vmatpush1.bf16.msra.mxu0 0
      %3082 = vmatprep.subr.bf16.mxu0 0
      %3083 = vmatpush1.bf16.msra.mxu0 0
      %3084 = vmatprep.subr.bf16.mxu0 0
      %3085 = vmatpush1.bf16.msra.mxu0 0
      %3086 = vmatprep.subr.bf16.mxu0 0
      %3087 = vmatpush1.bf16.msra.mxu0 0
      %3088 = vmatprep.subr.bf16.mxu0 0
      %3089 = vmatpush1.bf16.msra.mxu0 0
      %3090 = vmatprep.subr.bf16.mxu0 0
      %3091 = vmatpush1.bf16.msra.mxu0 0
      %3092 = vmatprep.subr.bf16.mxu0 0
      %3093 = vmatpush1.bf16.msra.mxu0 0
      %3094 = vmatprep.subr.bf16.mxu0 0
      %3095 = vmatpush1.bf16.msra.mxu0 0
      %3096 = vmatprep.subr.bf16.mxu0 0
      %3097 = vmatpush1.bf16.msra.mxu0 0
      %3098 = vmatprep.mubr.bf16.mxu0 0
      %3099 = vmatmul.mubr.bf16.gmra.mrb[0].mxu0 %v3061
      %v3100 = vpop.f32.mrb[0].mxu0
      %v3101 = vadd.f32 %v3012, %v3100
      %v3102 = vpop.f32.mrb[0].mxu0
      %v3103 = vpop.f32.mrb[0].mxu0
      %v3104 = vadd.f32 %v3015, %v3103
      %v3105 = vpop.f32.mrb[0].mxu0
      %3106 = vmatprep.mubr.bf16.mxu0 0
      %3107 = vmatmul.mubr.bf16.gmra.mrb[0].mxu0 %v3064
      %v3108 = vpop.f32.mrb[0].mxu0
      %v3109 = vadd.f32 %v3020, %v3108
      %v3110 = vpop.f32.mrb[0].mxu0
      %v3111 = vpop.f32.mrb[0].mxu0
      %v3112 = vadd.f32 %v3023, %v3111
      %v3113 = vpop.f32.mrb[0].mxu0
      %3114 = vdwg.mxu0
      %s3115 = scalar_lea.vmem %s11, 128
      %v3116 = vld [vmem:[%s3115] sm:$0xf]
      %v3117 = vld [vmem:[%s3115 + $0x4] sm:$0xf]
      %v3118 = vld [vmem:[%s3115 + $0x8] sm:$0xf]
      %v3119 = vld [vmem:[%s3115 + $0xc] sm:$0xf]
      %v3124 = vunpack.c.l.b16 %v3116
      %v3125 = vunpack.c.l.b16 %v3117
      %v3126 = vunpack.c.l.b16 %v3118
      %v3127 = vunpack.c.l.b16 %v3119
      %v3128 = vpack.c.b16 %v3125, %v3124
      %v3129 = vpack.c.b16 %v3127, %v3126
      %3130 = vrot.lane.b32.xlu0 %v2393, 119
      %v3131 = vpop.permute.xlu0 %3130
      %3132 = vrot.lane.b32.xlu0 %v2395, 119
      %v3133 = vpop.permute.xlu0 %3132
      %3134 = vrot.lane.b32.xlu0 %v2397, 119
      %v3135 = vpop.permute.xlu0 %3134
      %3136 = vrot.lane.b32.xlu0 %v2399, 119
      %v3137 = vpop.permute.xlu0 %3136
      %v3143 = vsel %vm733, %v3128, 0
      %v3146 = vsel %vm733, %v3129, 0
      %3148 = vmatprep.subr.bf16.mxu0 0
      %3149 = vmatpush1.bf16.msra.mxu0 %v3131
      %3150 = vmatprep.subr.bf16.mxu0 0
      %3151 = vmatpush1.bf16.msra.mxu0 %v3133
      %3152 = vmatprep.subr.bf16.mxu0 0
      %3153 = vmatpush1.bf16.msra.mxu0 %v3135
      %3154 = vmatprep.subr.bf16.mxu0 0
      %3155 = vmatpush1.bf16.msra.mxu0 %v3137
      %3156 = vmatprep.subr.bf16.mxu0 0
      %3157 = vmatpush1.bf16.msra.mxu0 0
      %3158 = vmatprep.subr.bf16.mxu0 0
      %3159 = vmatpush1.bf16.msra.mxu0 0
      %3160 = vmatprep.subr.bf16.mxu0 0
      %3161 = vmatpush1.bf16.msra.mxu0 0
      %3162 = vmatprep.subr.bf16.mxu0 0
      %3163 = vmatpush1.bf16.msra.mxu0 0
      %3164 = vmatprep.subr.bf16.mxu0 0
      %3165 = vmatpush1.bf16.msra.mxu0 0
      %3166 = vmatprep.subr.bf16.mxu0 0
      %3167 = vmatpush1.bf16.msra.mxu0 0
      %3168 = vmatprep.subr.bf16.mxu0 0
      %3169 = vmatpush1.bf16.msra.mxu0 0
      %3170 = vmatprep.subr.bf16.mxu0 0
      %3171 = vmatpush1.bf16.msra.mxu0 0
      %3172 = vmatprep.subr.bf16.mxu0 0
      %3173 = vmatpush1.bf16.msra.mxu0 0
      %3174 = vmatprep.subr.bf16.mxu0 0
      %3175 = vmatpush1.bf16.msra.mxu0 0
      %3176 = vmatprep.subr.bf16.mxu0 0
      %3177 = vmatpush1.bf16.msra.mxu0 0
      %3178 = vmatprep.subr.bf16.mxu0 0
      %3179 = vmatpush1.bf16.msra.mxu0 0
      %3180 = vmatprep.mubr.bf16.mxu0 0
      %3181 = vmatmul.mubr.bf16.gmra.mrb[0].mxu0 %v3143
      %v3182 = vpop.f32.mrb[0].mxu0
      %v3183 = vadd.f32 0.0, %v3182
      %v3184 = vpop.f32.mrb[0].mxu0
      %v3185 = vpop.f32.mrb[0].mxu0
      %v3186 = vadd.f32 0.0, %v3185
      %v3187 = vpop.f32.mrb[0].mxu0
      %3188 = vmatprep.mubr.bf16.mxu0 0
      %3189 = vmatmul.mubr.bf16.gmra.mrb[0].mxu0 %v3146
      %v3190 = vpop.f32.mrb[0].mxu0
      %v3191 = vadd.f32 0.0, %v3190
      %v3192 = vpop.f32.mrb[0].mxu0
      %v3193 = vpop.f32.mrb[0].mxu0
      %v3194 = vadd.f32 0.0, %v3193
      %v3195 = vpop.f32.mrb[0].mxu0
      %3196 = vdwg.mxu0
      %v3197 = vadd.f32 %v3101, %v3183
      %v3198 = vadd.f32 %v3104, %v3186
      %v3199 = vadd.f32 %v3109, %v3191
      %v3200 = vadd.f32 %v3112, %v3194
      %v3201 = vmul.f32 %v3197, %v2383
      %v3202 = vmul.f32 %v3198, %v2383
      %v3203 = vmul.f32 %v3199, %v2383
      %v3204 = vmul.f32 %v3200, %v2383
      %v3205 = vadd.f32 %v2935, %v3201
      %v3206 = vadd.f32 %v2936, %v3202
      %v3207 = vadd.f32 %v2937, %v3203
      %v3208 = vadd.f32 %v2938, %v3204
      %v3209 = vld [vmem:[%s12] sm:$0xff]
      %v3210 = vld [vmem:[%s12 + $0x8] sm:$0xff]
      %v3211 = vld [vmem:[%s12 + $0x10] sm:$0xff]
      %v3212 = vld [vmem:[%s12 + $0x18] sm:$0xff]
      %3214 = vset.pattern.permute.xlu0 0
      %3215 = vperm.xlu0 %3214, %v3209
      %v3216 = vpop.permute.xlu0 %3215
      %3219 = vset.pattern.permute.xlu0 0
      %3220 = vperm.xlu0 %3219, %v3210
      %v3221 = vpop.permute.xlu0 %3220
      %3224 = vset.pattern.permute.xlu0 0
      %3225 = vperm.xlu0 %3224, %v3211
      %v3226 = vpop.permute.xlu0 %3225
      %3229 = vset.pattern.permute.xlu0 0
      %3230 = vperm.xlu0 %3229, %v3212
      %v3231 = vpop.permute.xlu0 %3230
      %v3233 = vmul.f32 %v2388, %v3216
      %v3234 = vmul.f32 %v2389, %v3221
      %v3235 = vmul.f32 %v2390, %v3226
      %v3236 = vmul.f32 %v2391, %v3231
      %v3237 = vld [vmem:[%s13] sm:$0xff]
      %v3238 = vld [vmem:[%s13 + $0x8] sm:$0xff]
      %v3239 = vld [vmem:[%s13 + $0x10] sm:$0xff]
      %v3240 = vld [vmem:[%s13 + $0x18] sm:$0xff]
      %3242 = vset.pattern.permute.xlu0 0
      %3243 = vperm.xlu0 %3242, %v3237
      %v3244 = vpop.permute.xlu0 %3243
      %3247 = vset.pattern.permute.xlu0 0
      %3248 = vperm.xlu0 %3247, %v3238
      %v3249 = vpop.permute.xlu0 %3248
      %3252 = vset.pattern.permute.xlu0 0
      %3253 = vperm.xlu0 %3252, %v3239
      %v3254 = vpop.permute.xlu0 %3253
      %3257 = vset.pattern.permute.xlu0 0
      %3258 = vperm.xlu0 %3257, %v3240
      %v3259 = vpop.permute.xlu0 %3258
      %v3261 = vadd.f32 %v3233, %v3244
      %v3262 = vadd.f32 %v3234, %v3249
      %v3263 = vadd.f32 %v3235, %v3254
      %v3264 = vadd.f32 %v3236, %v3259
      %v3265 = vmax.f32 %v3261, 0.0
      %v3266 = vmax.f32 %v3262, 0.0
      %v3267 = vmax.f32 %v3263, 0.0
      %v3268 = vmax.f32 %v3264, 0.0
      %3269 = vst.msk [vmem:[%s549] sm:$0xff] %vm733, %v3265
      %3270 = vst.msk [vmem:[%s549 + $0x8] sm:$0xff] %vm733, %v3266
      %3271 = vst.msk [vmem:[%s549 + $0x10] sm:$0xff] %vm733, %v3267
      %3272 = vst.msk [vmem:[%s549 + $0x18] sm:$0xff] %vm733, %v3268
      %v3273 = vld [vmem:[%s12] sm:$0xff]
      %v3274 = vld [vmem:[%s12 + $0x8] sm:$0xff]
      %v3275 = vld [vmem:[%s12 + $0x10] sm:$0xff]
      %v3276 = vld [vmem:[%s12 + $0x18] sm:$0xff]
      %3278 = vset.pattern.permute.xlu0 1
      %3279 = vperm.xlu0 %3278, %v3273
      %v3280 = vpop.permute.xlu0 %3279
      %3283 = vset.pattern.permute.xlu0 1
      %3284 = vperm.xlu0 %3283, %v3274
      %v3285 = vpop.permute.xlu0 %3284
      %3288 = vset.pattern.permute.xlu0 1
      %3289 = vperm.xlu0 %3288, %v3275
      %v3290 = vpop.permute.xlu0 %3289
      %3293 = vset.pattern.permute.xlu0 1
      %3294 = vperm.xlu0 %3293, %v3276
      %v3295 = vpop.permute.xlu0 %3294
      %v3297 = vmul.f32 %v3205, %v3280
      %v3298 = vmul.f32 %v3206, %v3285
      %v3299 = vmul.f32 %v3207, %v3290
      %v3300 = vmul.f32 %v3208, %v3295
      %v3301 = vld [vmem:[%s13] sm:$0xff]
      %v3302 = vld [vmem:[%s13 + $0x8] sm:$0xff]
      %v3303 = vld [vmem:[%s13 + $0x10] sm:$0xff]
      %v3304 = vld [vmem:[%s13 + $0x18] sm:$0xff]
      %3306 = vset.pattern.permute.xlu0 1
      %3307 = vperm.xlu0 %3306, %v3301
      %v3308 = vpop.permute.xlu0 %3307
      %3311 = vset.pattern.permute.xlu0 1
      %3312 = vperm.xlu0 %3311, %v3302
      %v3313 = vpop.permute.xlu0 %3312
      %3316 = vset.pattern.permute.xlu0 1
      %3317 = vperm.xlu0 %3316, %v3303
      %v3318 = vpop.permute.xlu0 %3317
      %3321 = vset.pattern.permute.xlu0 1
      %3322 = vperm.xlu0 %3321, %v3304
      %v3323 = vpop.permute.xlu0 %3322
      %v3325 = vadd.f32 %v3297, %v3308
      %v3326 = vadd.f32 %v3298, %v3313
      %v3327 = vadd.f32 %v3299, %v3318
      %v3328 = vadd.f32 %v3300, %v3323
      %v3329 = vmax.f32 %v3325, 0.0
      %v3330 = vmax.f32 %v3326, 0.0
      %v3331 = vmax.f32 %v3327, 0.0
      %v3332 = vmax.f32 %v3328, 0.0
      %3333 = vst.msk [vmem:[%s554] sm:$0xff] %vm733, %v3329
      %3334 = vst.msk [vmem:[%s554 + $0x8] sm:$0xff] %vm733, %v3330
      %3335 = vst.msk [vmem:[%s554 + $0x10] sm:$0xff] %vm733, %v3331
      %3336 = vst.msk [vmem:[%s554 + $0x18] sm:$0xff] %vm733, %v3332
      %p3337 = scmp.lt.s32.totalorder %s28, 1
      %s3338 = scalar_select %p3337, %s28, 1
      %s3339 = smul.addr %s3338, 4
      %s3340 = smul.addr %s3339, 8
      %s3341 = scalar_lea.vmem %s15, %s3340
      %p3342 = scmp.lt.s32.totalorder %s28, 1
      %s3343 = scalar_select %p3342, %s28, 1
      %s3344 = smul.addr %s3343, 4
      %s3345 = smul.addr %s3344, 8
      %s3346 = scalar_lea.vmem %s16, %s3345
      // Predicated region
      $region81: #{coattention_forward.1} parent=79 // pred_check
        %p3347 = pneg %p371
      $region82: #{coattention_forward.1} parent=79 // pred_check_branch
        %3349 = sbr.rel (%p3347) target = $region84
      $region83: #{coattention_forward.1} parent=79 // pred_region
        _
      $region84: #{coattention_forward.1} parent=79 // pred_fallthru
        _
      // Predicated region
      $region85: #{coattention_forward.1} parent=79 // pred_check
        %p3350 = pneg %p397
      $region86: #{coattention_forward.1} parent=79 // pred_check_branch
        %3352 = sbr.rel (%p3350) target = $region88
      $region87: #{coattention_forward.1} parent=79 // pred_region
        _
      $region88: #{coattention_forward.1} parent=79 // pred_fallthru
        _
    $region80: #{coattention_forward.1} parent=5 // pred_fallthru
      _
    %p3353 = scmp.le.s32.totalorder 2, %s23
    // Predicated region
    $region89: #{coattention_forward.1} parent=5 // pred_check
      %p3354 = pneg %p3353
    $region90: #{coattention_forward.1} parent=5 // pred_check_branch
      %3356 = sbr.rel (%p3354) target = $region92
    $region91: #{coattention_forward.1} parent=5 // pred_region
      %s3357 = ssub.s32 %s23, 2
      // Predicated region
      $region93: #{coattention_forward.1} parent=91 // pred_check
        %p3358 = pneg %p377
      $region94: #{coattention_forward.1} parent=91 // pred_check_branch
        %3360 = sbr.rel (%p3358) target = $region96
      $region95: #{coattention_forward.1} parent=91 // pred_region
        %p3361 = scmp.lt.s32.totalorder %s29, 1
        %s3362 = scalar_select %p3361, %s29, 1
        %s3363 = smul.addr %s3362, 4
        %s3364 = smul.addr %s3363, 8
        %s3365 = scalar_lea.vmem %s15, %s3364
      $region96: #{coattention_forward.1} parent=91 // pred_fallthru
        _
      // Predicated region
      $region97: #{coattention_forward.1} parent=91 // pred_check
        %p3366 = pneg %p403
      $region98: #{coattention_forward.1} parent=91 // pred_check_branch
        %3368 = sbr.rel (%p3366) target = $region100
      $region99: #{coattention_forward.1} parent=91 // pred_region
        %p3369 = scmp.lt.s32.totalorder %s29, 1
        %s3370 = scalar_select %p3369, %s29, 1
        %s3371 = smul.addr %s3370, 4
        %s3372 = smul.addr %s3371, 8
        %s3373 = scalar_lea.vmem %s16, %s3372
      $region100: #{coattention_forward.1} parent=91 // pred_fallthru
        _
    $region92: #{coattention_forward.1} parent=5 // pred_fallthru
      _
  $region6: #{coattention_forward.1} parent=0 // loop_footer
    %s27 = sadd.s32 1, %s23
  $region7: #{coattention_forward.1} parent=0 // loop_footer_branch
    %22 = sbr.rel target = $region3
  $region8: #{coattention_forward.1} parent=0 // loop_exit
    _

</llo_original>
